<compile_context>
chip_gen: v6e
topology: v6e:2x2x1
jax: 0.10.0
libtpu: 0.0.40
codegen_flags: <defaults>
</compile_context>

<pallas_src>
import functools

import numpy as np
import jax
import jax.numpy as jnp
from jax.experimental import pallas as pl
from jax.experimental.pallas import tpu as pltpu

# ---------------- model config (synthetic, deterministic) ----------------
B = 2            # batch
S = 8            # sequence length
IN_DIM = 16      # var_input feature dim
N_BINS = 16      # expression bins
DIM = 32         # transformer dim
DEPTH = 2        # transformer depth
HEADS = 4
DIM_HEAD = 8
INNER = HEADS * DIM_HEAD
MULT = 4
NB_FEATURES = 16  # performer random features per head
LN_EPS = 1e-5


# ---------------- in-kernel helpers (pure jnp on loaded values) ----------------

def _layernorm(x, g, b):
    mu = jnp.mean(x, axis=-1, keepdims=True)
    xc = x - mu
    var = jnp.mean(xc * xc, axis=-1, keepdims=True)
    return xc * jax.lax.rsqrt(var + LN_EPS) * g + b


def _feedforward(x, w1, b1, w2, b2):
    h = jnp.dot(x, w1, preferred_element_type=jnp.float32) + b1
    # TODO(synk): torch nn.GELU defaults to exact erf-GELU; tanh approximation used here.
    h = jax.nn.gelu(h, approximate=True)
    return jnp.dot(h, w2, preferred_element_type=jnp.float32) + b2


def _favor_attention(q, k, v, proj_bd, sumsq_bd, selmat, cmask_nb, cmask_dh, mask_incl):
    """Causal FAVOR+ self-attention for ALL (batch, head) pairs with dense matmuls.

    q, k, v: (B*S, INNER).  The "_bd" operands live in a block layout whose rows are
    indexed by (batch*HEADS + head)*S + position; selmat / cmask_* / mask_incl are
    constant 0/1 matrices baked into the parameter slab.
    """
    c = float(DIM_HEAD) ** -0.25          # dh^(-1/4) data normalizer
    ratio = float(NB_FEATURES) ** -0.5
    eps = 1e-6
    qs = q * c
    ks = k * c
    qp = jnp.dot(qs, proj_bd, preferred_element_type=jnp.float32)           # (BS, H*NB)
    kp = jnp.dot(ks, proj_bd, preferred_element_type=jnp.float32)
    qn = 0.5 * jnp.dot(qs * qs, sumsq_bd, preferred_element_type=jnp.float32)  # per-head |q|^2/2
    kn = 0.5 * jnp.dot(ks * ks, sumsq_bd, preferred_element_type=jnp.float32)
    phi_q = ratio * (jnp.exp(qp - qn) + eps)
    phi_k = ratio * (jnp.exp(kp - kn) + eps)
    # Stack (batch, head) blocks on rows and zero other heads' feature columns.
    phi_k_bd = jnp.dot(selmat, phi_k, preferred_element_type=jnp.float32) * cmask_nb  # (BHS, H*NB)
    v_bd = jnp.dot(selmat, v, preferred_element_type=jnp.float32) * cmask_dh          # (BHS, INNER)
    # a[b*S+i, (b'*H+h)*S+j] = phi_q_{b,h}[i] . phi_k_{b',h}[j]
    a = jax.lax.dot_general(phi_q, phi_k_bd, (((1,), (1,)), ((), ())),
                            preferred_element_type=jnp.float32)             # (BS, BHS)
    a = a * mask_incl                                                        # causal & same-batch
    num = jnp.dot(a, v_bd, preferred_element_type=jnp.float32)               # (BS, INNER), head-merged
    den = jnp.dot(a, cmask_dh, preferred_element_type=jnp.float32)           # (BS, INNER), per-head bcast
    return num * pl.reciprocal(den, approx=True)


def _softmax_cross_attention(q, k, v, selmat, cmask_dh, mask_strict):
    """Strict-causal softmax cross attention for ALL (batch, head) pairs at once.

    Row 0 of each batch attends nothing -> its output is exactly 0 here; it is replaced
    later by var_norm row 0 (the torch.cat of the original module)."""
    scale = float(DIM_HEAD) ** -0.5
    k_bd = jnp.dot(selmat, k, preferred_element_type=jnp.float32) * cmask_dh  # (BHS, INNER)
    v_bd = jnp.dot(selmat, v, preferred_element_type=jnp.float32) * cmask_dh
    s = jax.lax.dot_general(q, k_bd, (((1,), (1,)), ((), ())),
                            preferred_element_type=jnp.float32) * scale       # (BS, BHS)
    s = jnp.where(mask_strict > 0.5, s, -1e30)
    s = s - jnp.max(s, axis=-1, keepdims=True)
    p = jnp.exp(s) * mask_strict            # fully-masked rows become exactly 0
    num = jnp.dot(p, v_bd, preferred_element_type=jnp.float32)                # (BS, INNER)
    den = jnp.dot(p, cmask_dh, preferred_element_type=jnp.float32)
    return num * pl.reciprocal(den + 1e-9, approx=True)


# ---------------- the single fused Pallas kernel ----------------

def _fused_forward_kernel(idx_ref, var_ref, slab_ref, logits_ref, *, off):
    f32 = jnp.float32

    def P(name):  # static slice of the packed parameter slab
        r0, r, c = off[name]
        return slab_ref[r0:r0 + r, 0:c]

    # constants for the batched (batch, head)-block attention
    selmat = P("selmat")          # (B*H*S, B*S)
    cmask_nb = P("cmask_nb")      # (B*H*S, H*NB)
    cmask_dh = P("cmask_dh")      # (B*H*S, INNER)
    mask_incl = P("mask_incl")    # (B*S, B*H*S)   j <= i, same batch
    mask_strict = P("mask_strict")  # (B*S, B*H*S) j <  i, same batch
    sumsq_bd = P("sumsq_bd")      # (INNER, H*NB)

    # ---- embeddings (in-kernel one-hot matmul == embedding-table lookup) ----
    idx = idx_ref[...]                                               # (B*S, 1) int32
    lanes = jax.lax.broadcasted_iota(jnp.int32, (B * S, N_BINS), 1)
    onehot = (lanes == idx).astype(f32)
    expr = jnp.dot(onehot, P("emb_table"), preferred_element_type=f32)
    var = jnp.dot(var_ref[...], P("var_w"), preferred_element_type=f32) + P("var_b")
    x = var + expr                                                   # (B*S, DIM)

    # ---- Performer transformer (pre-LN attn + pre-LN FF, residuals) ----
    for li in range(DEPTH):
        pre = f"L{li}_"
        h = _layernorm(x, P(pre + "ln1_g"), P(pre + "ln1_b"))
        qkv = jnp.dot(h, P(pre + "wqkv"), preferred_element_type=f32) + P(pre + "bqkv")
        q = qkv[:, 0:INNER]
        k = qkv[:, INNER:2 * INNER]
        v = qkv[:, 2 * INNER:3 * INNER]
        heads = _favor_attention(q, k, v, P(pre + "proj_bd"), sumsq_bd,
                                 selmat, cmask_nb, cmask_dh, mask_incl)
        x = x + jnp.dot(heads, P(pre + "wo"), preferred_element_type=f32) + P(pre + "bo")
        h = _layernorm(x, P(pre + "ln2_g"), P(pre + "ln2_b"))
        x = x + _feedforward(h, P(pre + "ff_w1"), P(pre + "ff_b1"),
                             P(pre + "ff_w2"), P(pre + "ff_b2"))

    # ---- cross-attention block ----
    ctx = _layernorm(x, P("ln_ctx_g"), P("ln_ctx_b"))      # LN of transformer output
    varn = _layernorm(var, P("ln_q_g"), P("ln_q_b"))        # LN of var embedding
    qc = jnp.dot(varn, P("ca_wq"), preferred_element_type=f32) + P("ca_bq")
    kvc = jnp.dot(ctx, P("ca_wkv"), preferred_element_type=f32) + P("ca_bkv")
    kc = kvc[:, 0:INNER]
    vc = kvc[:, INNER:2 * INNER]
    cross_h = _softmax_cross_attention(qc, kc, vc, selmat, cmask_dh, mask_strict)
    cross = jnp.dot(cross_h, P("ca_wo"), preferred_element_type=f32) + P("ca_bo")

    # torch.cat((var_norm[:, :1], cross_out), dim=1): seq position 0 of each batch
    rowpos = jax.lax.broadcasted_iota(jnp.int32, (B * S, DIM), 0)
    is_first = rowpos == 0
    for b in range(1, B):
        is_first = jnp.logical_or(is_first, rowpos == b * S)
    out = jnp.where(is_first, varn, cross)

    # ---- PreLayerNorm(FeedForward) (no residual) + expression head ----
    h = _layernorm(out, P("ffn_ln_g"), P("ffn_ln_b"))
    out = _feedforward(h, P("ffn_w1"), P("ffn_b1"), P("ffn_w2"), P("ffn_b2"))
    logits_ref[...] = jnp.dot(out, P("head_w"), preferred_element_type=f32) + P("head_b")


# ---------------- wrapper: one pallas_call for the whole forward pass ----------------

def make_forward(offsets):
    kernel = functools.partial(_fused_forward_kernel, off=offsets)
    vmem = pl.BlockSpec(memory_space=pltpu.MemorySpace.VMEM)

    @jax.jit
    def forward(slab, expression_target, var_input):
        b, s = expression_target.shape
        idx = expression_target.reshape(b * s, 1).astype(jnp.int32)
        var2d = var_input.reshape(b * s, IN_DIM).astype(jnp.float32)
        logits = pl.pallas_call(
            kernel,
            out_shape=jax.ShapeDtypeStruct((b * s, N_BINS), jnp.float32),
            in_specs=[vmem, vmem, vmem],
            out_specs=vmem,
        )(idx, var2d, slab)
        return logits.reshape(b, s, N_BINS)

    return forward


# ---------------- host-side parameter packing into one (rows, 128) slab ----------------

def _round8(n):
    return (n + 7) & ~7


def pack_params(params):
    entries = []

    def add(name, a):
        a = np.asarray(a, dtype=np.float32)
        assert a.ndim == 2 and a.shape[1] <= 128, (name, a.shape)
        entries.append((name, a))

    add("emb_table", params["emb_table"])
    add("var_w", params["var_w"])
    add("var_b", params["var_b"])
    for li, lp in enumerate(params["layers"]):
        pre = f"L{li}_"
        add(pre + "ln1_g", lp["ln1_g"]); add(pre + "ln1_b", lp["ln1_b"])
        add(pre + "wqkv", lp["wqkv"]);   add(pre + "bqkv", lp["bqkv"])
        add(pre + "wo", lp["wo"]);       add(pre + "bo", lp["bo"])
        # block-diagonal FAVOR+ feature projection (same proj for every head of this layer)
        proj = np.asarray(lp["proj"], np.float32)
        proj_bd = np.zeros((INNER, HEADS * NB_FEATURES), np.float32)
        for h in range(HEADS):
            proj_bd[h * DIM_HEAD:(h + 1) * DIM_HEAD,
                    h * NB_FEATURES:(h + 1) * NB_FEATURES] = proj
        add(pre + "proj_bd", proj_bd)
        add(pre + "ln2_g", lp["ln2_g"]); add(pre + "ln2_b", lp["ln2_b"])
        add(pre + "ff_w1", lp["ff_w1"]); add(pre + "ff_b1", lp["ff_b1"])
        add(pre + "ff_w2", lp["ff_w2"]); add(pre + "ff_b2", lp["ff_b2"])
    add("ln_ctx_g", params["ln_ctx_g"]); add("ln_ctx_b", params["ln_ctx_b"])
    add("ln_q_g", params["ln_q_g"]);     add("ln_q_b", params["ln_q_b"])
    add("ca_wq", params["ca_wq"]);       add("ca_bq", params["ca_bq"])
    add("ca_wkv", params["ca_wkv"]);     add("ca_bkv", params["ca_bkv"])
    add("ca_wo", params["ca_wo"]);       add("ca_bo", params["ca_bo"])
    add("ffn_ln_g", params["ffn_ln_g"]); add("ffn_ln_b", params["ffn_ln_b"])
    add("ffn_w1", params["ffn_w1"]);     add("ffn_b1", params["ffn_b1"])
    add("ffn_w2", params["ffn_w2"]);     add("ffn_b2", params["ffn_b2"])
    add("head_w", params["head_w"]);     add("head_b", params["head_b"])

    # ---- constant 0/1 matrices for the batched (batch, head)-block attention ----
    BHS = B * HEADS * S
    selmat = np.zeros((BHS, B * S), np.float32)           # row (b,h,j) <- source row (b,j)
    cmask_nb = np.zeros((BHS, HEADS * NB_FEATURES), np.float32)
    cmask_dh = np.zeros((BHS, INNER), np.float32)
    for b in range(B):
        for h in range(HEADS):
            r0 = (b * HEADS + h) * S
            for j in range(S):
                selmat[r0 + j, b * S + j] = 1.0
            cmask_nb[r0:r0 + S, h * NB_FEATURES:(h + 1) * NB_FEATURES] = 1.0
            cmask_dh[r0:r0 + S, h * DIM_HEAD:(h + 1) * DIM_HEAD] = 1.0
    mask_incl = np.zeros((B * S, BHS), np.float32)
    mask_strict = np.zeros((B * S, BHS), np.float32)
    for b in range(B):
        for i in range(S):
            for h in range(HEADS):
                for j in range(S):
                    col = (b * HEADS + h) * S + j
                    if j <= i:
                        mask_incl[b * S + i, col] = 1.0
                    if j < i:
                        mask_strict[b * S + i, col] = 1.0
    sumsq_bd = np.zeros((INNER, HEADS * NB_FEATURES), np.float32)
    for h in range(HEADS):
        sumsq_bd[h * DIM_HEAD:(h + 1) * DIM_HEAD,
                 h * NB_FEATURES:(h + 1) * NB_FEATURES] = 1.0
    add("selmat", selmat)
    add("cmask_nb", cmask_nb)
    add("cmask_dh", cmask_dh)
    add("mask_incl", mask_incl)
    add("mask_strict", mask_strict)
    add("sumsq_bd", sumsq_bd)

    # pack: each entry at an 8-row-aligned offset, lane offset 0, slab width 128
    offsets = {}
    row = 0
    for name, a in entries:
        offsets[name] = (row, a.shape[0], a.shape[1])
        row += _round8(a.shape[0])
    slab = np.zeros((_round8(row), 128), np.float32)
    for name, a in entries:
        r0, r, c = offsets[name]
        slab[r0:r0 + r, :c] = a
    return jnp.asarray(slab), offsets


# ---------------- parameter init (deterministic, synthetic) ----------------

def _dense(key, fan_in, fan_out):
    kw, kb = jax.random.split(key)
    w = jax.random.normal(kw, (fan_in, fan_out), jnp.float32) * 0.02
    b = jax.random.normal(kb, (1, fan_out), jnp.float32) * 0.02
    return w, b


def init_params(key):
    keys = iter(jax.random.split(key, 64))
    p = {}
    p["emb_table"] = jax.random.normal(next(keys), (N_BINS, DIM), jnp.float32) * 0.02
    p["var_w"], p["var_b"] = _dense(next(keys), IN_DIM, DIM)
    layers = []
    for _ in range(DEPTH):
        lp = {}
        lp["ln1_g"] = jnp.ones((1, DIM), jnp.float32)
        lp["ln1_b"] = jnp.zeros((1, DIM), jnp.float32)
        wq, bq = _dense(next(keys), DIM, INNER)
        wk, bk = _dense(next(keys), DIM, INNER)
        wv, bv = _dense(next(keys), DIM, INNER)
        lp["wqkv"] = jnp.concatenate([wq, wk, wv], axis=1)
        lp["bqkv"] = jnp.concatenate([bq, bk, bv], axis=1)
        lp["wo"], lp["bo"] = _dense(next(keys), INNER, DIM)
        lp["proj"] = jax.random.normal(next(keys), (DIM_HEAD, NB_FEATURES), jnp.float32)
        lp["ln2_g"] = jnp.ones((1, DIM), jnp.float32)
        lp["ln2_b"] = jnp.zeros((1, DIM), jnp.float32)
        lp["ff_w1"], lp["ff_b1"] = _dense(next(keys), DIM, DIM * MULT)
        lp["ff_w2"], lp["ff_b2"] = _dense(next(keys), DIM * MULT, DIM)
        layers.append(lp)
    p["layers"] = layers
    p["ln_ctx_g"] = jnp.ones((1, DIM), jnp.float32)
    p["ln_ctx_b"] = jnp.zeros((1, DIM), jnp.float32)
    p["ln_q_g"] = jnp.ones((1, DIM), jnp.float32)
    p["ln_q_b"] = jnp.zeros((1, DIM), jnp.float32)
    p["ca_wq"], p["ca_bq"] = _dense(next(keys), DIM, INNER)
    wk, bk = _dense(next(keys), DIM, INNER)
    wv, bv = _dense(next(keys), DIM, INNER)
    p["ca_wkv"] = jnp.concatenate([wk, wv], axis=1)
    p["ca_bkv"] = jnp.concatenate([bk, bv], axis=1)
    p["ca_wo"], p["ca_bo"] = _dense(next(keys), INNER, DIM)
    p["ffn_ln_g"] = jnp.ones((1, DIM), jnp.float32)
    p["ffn_ln_b"] = jnp.zeros((1, DIM), jnp.float32)
    p["ffn_w1"], p["ffn_b1"] = _dense(next(keys), DIM, DIM * MULT)
    p["ffn_w2"], p["ffn_b2"] = _dense(next(keys), DIM * MULT, DIM)
    p["head_w"], p["head_b"] = _dense(next(keys), DIM, N_BINS)
    return p


if __name__ == "__main__":
    key = jax.random.PRNGKey(0)
    k_expr, k_var, k_param = jax.random.split(key, 3)
    expression_target = jax.random.randint(k_expr, (B, S), 0, N_BINS)
    var_input = jax.random.normal(k_var, (B, S, IN_DIM), dtype=jnp.float32)
    params = init_params(k_param)
    slab, offsets = pack_params(params)

    fwd = make_forward(offsets)
    logits = fwd(slab, expression_target, var_input)
    logits = jax.block_until_ready(logits)
    assert logits.shape == (B, S, N_BINS)
    assert bool(jnp.all(jnp.isfinite(logits)))
    print("KERNEL_OK")
</pallas_src>

<mosaic_0001>
module attributes {stable_mosaic.version = 11 : i64} {
  func.func @_fused_forward_kernel(%arg0: memref<16x1xi32, #tpu.memory_space<vmem>>, %arg1: memref<16x16xf32, #tpu.memory_space<vmem>>, %arg2: memref<1320x128xf32, #tpu.memory_space<vmem>>, %arg3: memref<16x16xf32, #tpu.memory_space<vmem>>) attributes {dimension_semantics = [], scalar_prefetch = 0 : i64, scratch_operands = 0 : i64, tpu.core_type = #tpu.core_type<tc>} {
    %c1064 = arith.constant 1064 : index
    %c0 = arith.constant 0 : index
    %0 = vector.load %arg2[%c1064, %c0] : memref<1320x128xf32, #tpu.memory_space<vmem>>, vector<64x16xf32>
    %c1128 = arith.constant 1128 : index
    %c0_0 = arith.constant 0 : index
    %1 = vector.load %arg2[%c1128, %c0_0] : memref<1320x128xf32, #tpu.memory_space<vmem>>, vector<64x64xf32>
    %c1192 = arith.constant 1192 : index
    %c0_1 = arith.constant 0 : index
    %2 = vector.load %arg2[%c1192, %c0_1] : memref<1320x128xf32, #tpu.memory_space<vmem>>, vector<64x32xf32>
    %c1256 = arith.constant 1256 : index
    %c0_2 = arith.constant 0 : index
    %3 = vector.load %arg2[%c1256, %c0_2] : memref<1320x128xf32, #tpu.memory_space<vmem>>, vector<16x64xf32>
    %c1272 = arith.constant 1272 : index
    %c0_3 = arith.constant 0 : index
    %4 = vector.load %arg2[%c1272, %c0_3] : memref<1320x128xf32, #tpu.memory_space<vmem>>, vector<16x64xf32>
    %c1288 = arith.constant 1288 : index
    %c0_4 = arith.constant 0 : index
    %5 = vector.load %arg2[%c1288, %c0_4] : memref<1320x128xf32, #tpu.memory_space<vmem>>, vector<32x64xf32>
    %c0_5 = arith.constant 0 : index
    %c0_6 = arith.constant 0 : index
    %6 = vector.load %arg0[%c0_5, %c0_6] : memref<16x1xi32, #tpu.memory_space<vmem>>, vector<16x1xi32>
    %7 = tpu.iota {dimensions = array<i32: 1>} : vector<16x16xi32>
    %8 = vector.broadcast %6 : vector<16x1xi32> to vector<16x16xi32>
    %9 = arith.cmpi eq, %7, %8 : vector<16x16xi32>
    %10 = arith.extui %9 : vector<16x16xi1> to vector<16x16xi32>
    %11 = arith.sitofp %10 : vector<16x16xi32> to vector<16x16xf32>
    %c0_7 = arith.constant 0 : index
    %c0_8 = arith.constant 0 : index
    %12 = vector.load %arg2[%c0_7, %c0_8] : memref<1320x128xf32, #tpu.memory_space<vmem>>, vector<16x32xf32>
    %cst = arith.constant dense<0.000000e+00> : vector<16x32xf32>
    %13 = tpu.matmul %11, %12, %cst {dimension_numbers = #tpu.dot_dimension_numbers<[1], [0], [0], [1], [0, 0, 1, 1], [], []>} : vector<16x16xf32>, vector<16x32xf32>, vector<16x32xf32> -> vector<16x32xf32>
    %c0_9 = arith.constant 0 : index
    %c0_10 = arith.constant 0 : index
    %14 = vector.load %arg1[%c0_9, %c0_10] : memref<16x16xf32, #tpu.memory_space<vmem>>, vector<16x16xf32>
    %c16 = arith.constant 16 : index
    %c0_11 = arith.constant 0 : index
    %15 = vector.load %arg2[%c16, %c0_11] : memref<1320x128xf32, #tpu.memory_space<vmem>>, vector<16x32xf32>
    %cst_12 = arith.constant dense<0.000000e+00> : vector<16x32xf32>
    %16 = tpu.matmul %14, %15, %cst_12 {dimension_numbers = #tpu.dot_dimension_numbers<[1], [0], [0], [1], [0, 0, 1, 1], [], []>} : vector<16x16xf32>, vector<16x32xf32>, vector<16x32xf32> -> vector<16x32xf32>
    %c32 = arith.constant 32 : index
    %c0_13 = arith.constant 0 : index
    %17 = vector.load %arg2[%c32, %c0_13] : memref<1320x128xf32, #tpu.memory_space<vmem>>, vector<1x32xf32>
    %18 = vector.broadcast %17 : vector<1x32xf32> to vector<16x32xf32>
    %19 = arith.addf %16, %18 : vector<16x32xf32>
    %20 = arith.addf %19, %13 : vector<16x32xf32>
    %c40 = arith.constant 40 : index
    %c0_14 = arith.constant 0 : index
    %21 = vector.load %arg2[%c40, %c0_14] : memref<1320x128xf32, #tpu.memory_space<vmem>>, vector<1x32xf32>
    %c48 = arith.constant 48 : index
    %c0_15 = arith.constant 0 : index
    %22 = vector.load %arg2[%c48, %c0_15] : memref<1320x128xf32, #tpu.memory_space<vmem>>, vector<1x32xf32>
    %cst_16 = arith.constant dense<0.000000e+00> : vector<16xf32>
    %23 = vector.multi_reduction <add>, %20, %cst_16 [1] : vector<16x32xf32> to vector<16xf32>
    %24 = vector.shape_cast %23 : vector<16xf32> to vector<16x1xf32>
    %cst_17 = arith.constant 3.200000e+01 : f32
    %25 = vector.broadcast %cst_17 : f32 to vector<16x1xf32>
    %26 = arith.divf %24, %25 : vector<16x1xf32>
    %27 = vector.broadcast %26 : vector<16x1xf32> to vector<16x32xf32>
    %28 = arith.subf %20, %27 : vector<16x32xf32>
    %29 = arith.mulf %28, %28 : vector<16x32xf32>
    %cst_18 = arith.constant dense<0.000000e+00> : vector<16xf32>
    %30 = vector.multi_reduction <add>, %29, %cst_18 [1] : vector<16x32xf32> to vector<16xf32>
    %31 = vector.shape_cast %30 : vector<16xf32> to vector<16x1xf32>
    %cst_19 = arith.constant 3.200000e+01 : f32
    %32 = vector.broadcast %cst_19 : f32 to vector<16x1xf32>
    %33 = arith.divf %31, %32 : vector<16x1xf32>
    %cst_20 = arith.constant 9.99999974E-6 : f32
    %34 = vector.broadcast %cst_20 : f32 to vector<16x1xf32>
    %35 = arith.addf %33, %34 : vector<16x1xf32>
    %36 = math.rsqrt %35 : vector<16x1xf32>
    %37 = vector.broadcast %36 : vector<16x1xf32> to vector<16x32xf32>
    %38 = arith.mulf %28, %37 : vector<16x32xf32>
    %39 = vector.broadcast %21 : vector<1x32xf32> to vector<16x32xf32>
    %40 = arith.mulf %38, %39 : vector<16x32xf32>
    %41 = vector.broadcast %22 : vector<1x32xf32> to vector<16x32xf32>
    %42 = arith.addf %40, %41 : vector<16x32xf32>
    %c56 = arith.constant 56 : index
    %c0_21 = arith.constant 0 : index
    %43 = vector.load %arg2[%c56, %c0_21] : memref<1320x128xf32, #tpu.memory_space<vmem>>, vector<32x96xf32>
    %cst_22 = arith.constant dense<0.000000e+00> : vector<16x96xf32>
    %44 = tpu.matmul %42, %43, %cst_22 {dimension_numbers = #tpu.dot_dimension_numbers<[1], [0], [0], [1], [0, 0, 1, 1], [], []>} : vector<16x32xf32>, vector<32x96xf32>, vector<16x96xf32> -> vector<16x96xf32>
    %c88 = arith.constant 88 : index
    %c0_23 = arith.constant 0 : index
    %45 = vector.load %arg2[%c88, %c0_23] : memref<1320x128xf32, #tpu.memory_space<vmem>>, vector<1x96xf32>
    %46 = vector.broadcast %45 : vector<1x96xf32> to vector<16x96xf32>
    %47 = arith.addf %44, %46 : vector<16x96xf32>
    %48 = vector.extract_strided_slice %47 {offsets = [0, 0], sizes = [16, 32], strides = [1, 1]} : vector<16x96xf32> to vector<16x32xf32>
    %49 = vector.extract_strided_slice %47 {offsets = [0, 32], sizes = [16, 32], strides = [1, 1]} : vector<16x96xf32> to vector<16x32xf32>
    %50 = vector.extract_strided_slice %47 {offsets = [0, 64], sizes = [16, 32], strides = [1, 1]} : vector<16x96xf32> to vector<16x32xf32>
    %c136 = arith.constant 136 : index
    %c0_24 = arith.constant 0 : index
    %51 = vector.load %arg2[%c136, %c0_24] : memref<1320x128xf32, #tpu.memory_space<vmem>>, vector<32x64xf32>
    %cst_25 = arith.constant 0.594603539 : f32
    %52 = vector.broadcast %cst_25 : f32 to vector<16x32xf32>
    %53 = arith.mulf %48, %52 : vector<16x32xf32>
    %cst_26 = arith.constant 0.594603539 : f32
    %54 = vector.broadcast %cst_26 : f32 to vector<16x32xf32>
    %55 = arith.mulf %49, %54 : vector<16x32xf32>
    %cst_27 = arith.constant dense<0.000000e+00> : vector<16x64xf32>
    %56 = tpu.matmul %53, %51, %cst_27 {dimension_numbers = #tpu.dot_dimension_numbers<[1], [0], [0], [1], [0, 0, 1, 1], [], []>} : vector<16x32xf32>, vector<32x64xf32>, vector<16x64xf32> -> vector<16x64xf32>
    %cst_28 = arith.constant dense<0.000000e+00> : vector<16x64xf32>
    %57 = tpu.matmul %55, %51, %cst_28 {dimension_numbers = #tpu.dot_dimension_numbers<[1], [0], [0], [1], [0, 0, 1, 1], [], []>} : vector<16x32xf32>, vector<32x64xf32>, vector<16x64xf32> -> vector<16x64xf32>
    %58 = arith.mulf %53, %53 : vector<16x32xf32>
    %cst_29 = arith.constant dense<0.000000e+00> : vector<16x64xf32>
    %59 = tpu.matmul %58, %5, %cst_29 {dimension_numbers = #tpu.dot_dimension_numbers<[1], [0], [0], [1], [0, 0, 1, 1], [], []>} : vector<16x32xf32>, vector<32x64xf32>, vector<16x64xf32> -> vector<16x64xf32>
    %cst_30 = arith.constant 5.000000e-01 : f32
    %60 = vector.broadcast %cst_30 : f32 to vector<16x64xf32>
    %61 = arith.mulf %60, %59 : vector<16x64xf32>
    %62 = arith.mulf %55, %55 : vector<16x32xf32>
    %cst_31 = arith.constant dense<0.000000e+00> : vector<16x64xf32>
    %63 = tpu.matmul %62, %5, %cst_31 {dimension_numbers = #tpu.dot_dimension_numbers<[1], [0], [0], [1], [0, 0, 1, 1], [], []>} : vector<16x32xf32>, vector<32x64xf32>, vector<16x64xf32> -> vector<16x64xf32>
    %cst_32 = arith.constant 5.000000e-01 : f32
    %64 = vector.broadcast %cst_32 : f32 to vector<16x64xf32>
    %65 = arith.mulf %64, %63 : vector<16x64xf32>
    %66 = arith.subf %56, %61 : vector<16x64xf32>
    %67 = math.exp %66 : vector<16x64xf32>
    %cst_33 = arith.constant 9.99999997E-7 : f32
    %68 = vector.broadcast %cst_33 : f32 to vector<16x64xf32>
    %69 = arith.addf %67, %68 : vector<16x64xf32>
    %cst_34 = arith.constant 2.500000e-01 : f32
    %70 = vector.broadcast %cst_34 : f32 to vector<16x64xf32>
    %71 = arith.mulf %70, %69 : vector<16x64xf32>
    %72 = arith.subf %57, %65 : vector<16x64xf32>
    %73 = math.exp %72 : vector<16x64xf32>
    %cst_35 = arith.constant 9.99999997E-7 : f32
    %74 = vector.broadcast %cst_35 : f32 to vector<16x64xf32>
    %75 = arith.addf %73, %74 : vector<16x64xf32>
    %cst_36 = arith.constant 2.500000e-01 : f32
    %76 = vector.broadcast %cst_36 : f32 to vector<16x64xf32>
    %77 = arith.mulf %76, %75 : vector<16x64xf32>
    %cst_37 = arith.constant dense<0.000000e+00> : vector<64x64xf32>
    %78 = tpu.matmul %0, %77, %cst_37 {dimension_numbers = #tpu.dot_dimension_numbers<[1], [0], [0], [1], [0, 0, 1, 1], [], []>} : vector<64x16xf32>, vector<16x64xf32>, vector<64x64xf32> -> vector<64x64xf32>
    %79 = arith.mulf %78, %1 : vector<64x64xf32>
    %cst_38 = arith.constant dense<0.000000e+00> : vector<64x32xf32>
    %80 = tpu.matmul %0, %50, %cst_38 {dimension_numbers = #tpu.dot_dimension_numbers<[1], [0], [0], [1], [0, 0, 1, 1], [], []>} : vector<64x16xf32>, vector<16x32xf32>, vector<64x32xf32> -> vector<64x32xf32>
    %81 = arith.mulf %80, %2 : vector<64x32xf32>
    %cst_39 = arith.constant dense<0.000000e+00> : vector<16x64xf32>
    %82 = tpu.matmul %71, %79, %cst_39 {dimension_numbers = #tpu.dot_dimension_numbers<[1], [1], [0], [0], [0, 0, 1, 0], [], []>} : vector<16x64xf32>, vector<64x64xf32>, vector<16x64xf32> -> vector<16x64xf32>
    %83 = arith.mulf %82, %3 : vector<16x64xf32>
    %cst_40 = arith.constant dense<0.000000e+00> : vector<16x32xf32>
    %84 = tpu.matmul %83, %81, %cst_40 {dimension_numbers = #tpu.dot_dimension_numbers<[1], [0], [0], [1], [0, 0, 1, 1], [], []>} : vector<16x64xf32>, vector<64x32xf32>, vector<16x32xf32> -> vector<16x32xf32>
    %cst_41 = arith.constant dense<0.000000e+00> : vector<16x32xf32>
    %85 = tpu.matmul %83, %2, %cst_41 {dimension_numbers = #tpu.dot_dimension_numbers<[1], [0], [0], [1], [0, 0, 1, 1], [], []>} : vector<16x64xf32>, vector<64x32xf32>, vector<16x32xf32> -> vector<16x32xf32>
    %86 = tpu.reciprocal %85 {approx = true} : vector<16x32xf32> -> vector<16x32xf32>
    %87 = arith.mulf %84, %86 : vector<16x32xf32>
    %c96 = arith.constant 96 : index
    %c0_42 = arith.constant 0 : index
    %88 = vector.load %arg2[%c96, %c0_42] : memref<1320x128xf32, #tpu.memory_space<vmem>>, vector<32x32xf32>
    %cst_43 = arith.constant dense<0.000000e+00> : vector<16x32xf32>
    %89 = tpu.matmul %87, %88, %cst_43 {dimension_numbers = #tpu.dot_dimension_numbers<[1], [0], [0], [1], [0, 0, 1, 1], [], []>} : vector<16x32xf32>, vector<32x32xf32>, vector<16x32xf32> -> vector<16x32xf32>
    %90 = arith.addf %20, %89 : vector<16x32xf32>
    %c128 = arith.constant 128 : index
    %c0_44 = arith.constant 0 : index
    %91 = vector.load %arg2[%c128, %c0_44] : memref<1320x128xf32, #tpu.memory_space<vmem>>, vector<1x32xf32>
    %92 = vector.broadcast %91 : vector<1x32xf32> to vector<16x32xf32>
    %93 = arith.addf %90, %92 : vector<16x32xf32>
    %c168 = arith.constant 168 : index
    %c0_45 = arith.constant 0 : index
    %94 = vector.load %arg2[%c168, %c0_45] : memref<1320x128xf32, #tpu.memory_space<vmem>>, vector<1x32xf32>
    %c176 = arith.constant 176 : index
    %c0_46 = arith.constant 0 : index
    %95 = vector.load %arg2[%c176, %c0_46] : memref<1320x128xf32, #tpu.memory_space<vmem>>, vector<1x32xf32>
    %cst_47 = arith.constant dense<0.000000e+00> : vector<16xf32>
    %96 = vector.multi_reduction <add>, %93, %cst_47 [1] : vector<16x32xf32> to vector<16xf32>
    %97 = vector.shape_cast %96 : vector<16xf32> to vector<16x1xf32>
    %cst_48 = arith.constant 3.200000e+01 : f32
    %98 = vector.broadcast %cst_48 : f32 to vector<16x1xf32>
    %99 = arith.divf %97, %98 : vector<16x1xf32>
    %100 = vector.broadcast %99 : vector<16x1xf32> to vector<16x32xf32>
    %101 = arith.subf %93, %100 : vector<16x32xf32>
    %102 = arith.mulf %101, %101 : vector<16x32xf32>
    %cst_49 = arith.constant dense<0.000000e+00> : vector<16xf32>
    %103 = vector.multi_reduction <add>, %102, %cst_49 [1] : vector<16x32xf32> to vector<16xf32>
    %104 = vector.shape_cast %103 : vector<16xf32> to vector<16x1xf32>
    %cst_50 = arith.constant 3.200000e+01 : f32
    %105 = vector.broadcast %cst_50 : f32 to vector<16x1xf32>
    %106 = arith.divf %104, %105 : vector<16x1xf32>
    %cst_51 = arith.constant 9.99999974E-6 : f32
    %107 = vector.broadcast %cst_51 : f32 to vector<16x1xf32>
    %108 = arith.addf %106, %107 : vector<16x1xf32>
    %109 = math.rsqrt %108 : vector<16x1xf32>
    %110 = vector.broadcast %109 : vector<16x1xf32> to vector<16x32xf32>
    %111 = arith.mulf %101, %110 : vector<16x32xf32>
    %112 = vector.broadcast %94 : vector<1x32xf32> to vector<16x32xf32>
    %113 = arith.mulf %111, %112 : vector<16x32xf32>
    %114 = vector.broadcast %95 : vector<1x32xf32> to vector<16x32xf32>
    %115 = arith.addf %113, %114 : vector<16x32xf32>
    %c184 = arith.constant 184 : index
    %c0_52 = arith.constant 0 : index
    %116 = vector.load %arg2[%c184, %c0_52] : memref<1320x128xf32, #tpu.memory_space<vmem>>, vector<32x128xf32>
    %c216 = arith.constant 216 : index
    %c0_53 = arith.constant 0 : index
    %117 = vector.load %arg2[%c216, %c0_53] : memref<1320x128xf32, #tpu.memory_space<vmem>>, vector<1x128xf32>
    %c224 = arith.constant 224 : index
    %c0_54 = arith.constant 0 : index
    %118 = vector.load %arg2[%c224, %c0_54] : memref<1320x128xf32, #tpu.memory_space<vmem>>, vector<128x32xf32>
    %c352 = arith.constant 352 : index
    %c0_55 = arith.constant 0 : index
    %119 = vector.load %arg2[%c352, %c0_55] : memref<1320x128xf32, #tpu.memory_space<vmem>>, vector<1x32xf32>
    %cst_56 = arith.constant dense<0.000000e+00> : vector<16x128xf32>
    %120 = tpu.matmul %115, %116, %cst_56 {dimension_numbers = #tpu.dot_dimension_numbers<[1], [0], [0], [1], [0, 0, 1, 1], [], []>} : vector<16x32xf32>, vector<32x128xf32>, vector<16x128xf32> -> vector<16x128xf32>
    %121 = vector.broadcast %117 : vector<1x128xf32> to vector<16x128xf32>
    %122 = arith.addf %120, %121 : vector<16x128xf32>
    %123 = arith.mulf %122, %122 : vector<16x128xf32>
    %124 = arith.mulf %122, %123 : vector<16x128xf32>
    %cst_57 = arith.constant 4.471500e-02 : f32
    %125 = vector.broadcast %cst_57 : f32 to vector<16x128xf32>
    %126 = arith.mulf %125, %124 : vector<16x128xf32>
    %127 = arith.addf %122, %126 : vector<16x128xf32>
    %cst_58 = arith.constant 0.797884583 : f32
    %128 = vector.broadcast %cst_58 : f32 to vector<16x128xf32>
    %129 = arith.mulf %128, %127 : vector<16x128xf32>
    %130 = math.tanh %129 : vector<16x128xf32>
    %cst_59 = arith.constant 1.000000e+00 : f32
    %131 = vector.broadcast %cst_59 : f32 to vector<16x128xf32>
    %132 = arith.addf %131, %130 : vector<16x128xf32>
    %cst_60 = arith.constant 5.000000e-01 : f32
    %133 = vector.broadcast %cst_60 : f32 to vector<16x128xf32>
    %134 = arith.mulf %133, %132 : vector<16x128xf32>
    %135 = arith.mulf %122, %134 : vector<16x128xf32>
    %cst_61 = arith.constant dense<0.000000e+00> : vector<16x32xf32>
    %136 = tpu.matmul %135, %118, %cst_61 {dimension_numbers = #tpu.dot_dimension_numbers<[1], [0], [0], [1], [0, 0, 1, 1], [], []>} : vector<16x128xf32>, vector<128x32xf32>, vector<16x32xf32> -> vector<16x32xf32>
    %137 = vector.broadcast %119 : vector<1x32xf32> to vector<16x32xf32>
    %138 = arith.addf %136, %137 : vector<16x32xf32>
    %139 = arith.addf %93, %138 : vector<16x32xf32>
    %c360 = arith.constant 360 : index
    %c0_62 = arith.constant 0 : index
    %140 = vector.load %arg2[%c360, %c0_62] : memref<1320x128xf32, #tpu.memory_space<vmem>>, vector<1x32xf32>
    %c368 = arith.constant 368 : index
    %c0_63 = arith.constant 0 : index
    %141 = vector.load %arg2[%c368, %c0_63] : memref<1320x128xf32, #tpu.memory_space<vmem>>, vector<1x32xf32>
    %cst_64 = arith.constant dense<0.000000e+00> : vector<16xf32>
    %142 = vector.multi_reduction <add>, %139, %cst_64 [1] : vector<16x32xf32> to vector<16xf32>
    %143 = vector.shape_cast %142 : vector<16xf32> to vector<16x1xf32>
    %cst_65 = arith.constant 3.200000e+01 : f32
    %144 = vector.broadcast %cst_65 : f32 to vector<16x1xf32>
    %145 = arith.divf %143, %144 : vector<16x1xf32>
    %146 = vector.broadcast %145 : vector<16x1xf32> to vector<16x32xf32>
    %147 = arith.subf %139, %146 : vector<16x32xf32>
    %148 = arith.mulf %147, %147 : vector<16x32xf32>
    %cst_66 = arith.constant dense<0.000000e+00> : vector<16xf32>
    %149 = vector.multi_reduction <add>, %148, %cst_66 [1] : vector<16x32xf32> to vector<16xf32>
    %150 = vector.shape_cast %149 : vector<16xf32> to vector<16x1xf32>
    %cst_67 = arith.constant 3.200000e+01 : f32
    %151 = vector.broadcast %cst_67 : f32 to vector<16x1xf32>
    %152 = arith.divf %150, %151 : vector<16x1xf32>
    %cst_68 = arith.constant 9.99999974E-6 : f32
    %153 = vector.broadcast %cst_68 : f32 to vector<16x1xf32>
    %154 = arith.addf %152, %153 : vector<16x1xf32>
    %155 = math.rsqrt %154 : vector<16x1xf32>
    %156 = vector.broadcast %155 : vector<16x1xf32> to vector<16x32xf32>
    %157 = arith.mulf %147, %156 : vector<16x32xf32>
    %158 = vector.broadcast %140 : vector<1x32xf32> to vector<16x32xf32>
    %159 = arith.mulf %157, %158 : vector<16x32xf32>
    %160 = vector.broadcast %141 : vector<1x32xf32> to vector<16x32xf32>
    %161 = arith.addf %159, %160 : vector<16x32xf32>
    %c376 = arith.constant 376 : index
    %c0_69 = arith.constant 0 : index
    %162 = vector.load %arg2[%c376, %c0_69] : memref<1320x128xf32, #tpu.memory_space<vmem>>, vector<32x96xf32>
    %cst_70 = arith.constant dense<0.000000e+00> : vector<16x96xf32>
    %163 = tpu.matmul %161, %162, %cst_70 {dimension_numbers = #tpu.dot_dimension_numbers<[1], [0], [0], [1], [0, 0, 1, 1], [], []>} : vector<16x32xf32>, vector<32x96xf32>, vector<16x96xf32> -> vector<16x96xf32>
    %c408 = arith.constant 408 : index
    %c0_71 = arith.constant 0 : index
    %164 = vector.load %arg2[%c408, %c0_71] : memref<1320x128xf32, #tpu.memory_space<vmem>>, vector<1x96xf32>
    %165 = vector.broadcast %164 : vector<1x96xf32> to vector<16x96xf32>
    %166 = arith.addf %163, %165 : vector<16x96xf32>
    %167 = vector.extract_strided_slice %166 {offsets = [0, 0], sizes = [16, 32], strides = [1, 1]} : vector<16x96xf32> to vector<16x32xf32>
    %168 = vector.extract_strided_slice %166 {offsets = [0, 32], sizes = [16, 32], strides = [1, 1]} : vector<16x96xf32> to vector<16x32xf32>
    %169 = vector.extract_strided_slice %166 {offsets = [0, 64], sizes = [16, 32], strides = [1, 1]} : vector<16x96xf32> to vector<16x32xf32>
    %c456 = arith.constant 456 : index
    %c0_72 = arith.constant 0 : index
    %170 = vector.load %arg2[%c456, %c0_72] : memref<1320x128xf32, #tpu.memory_space<vmem>>, vector<32x64xf32>
    %cst_73 = arith.constant 0.594603539 : f32
    %171 = vector.broadcast %cst_73 : f32 to vector<16x32xf32>
    %172 = arith.mulf %167, %171 : vector<16x32xf32>
    %cst_74 = arith.constant 0.594603539 : f32
    %173 = vector.broadcast %cst_74 : f32 to vector<16x32xf32>
    %174 = arith.mulf %168, %173 : vector<16x32xf32>
    %cst_75 = arith.constant dense<0.000000e+00> : vector<16x64xf32>
    %175 = tpu.matmul %172, %170, %cst_75 {dimension_numbers = #tpu.dot_dimension_numbers<[1], [0], [0], [1], [0, 0, 1, 1], [], []>} : vector<16x32xf32>, vector<32x64xf32>, vector<16x64xf32> -> vector<16x64xf32>
    %cst_76 = arith.constant dense<0.000000e+00> : vector<16x64xf32>
    %176 = tpu.matmul %174, %170, %cst_76 {dimension_numbers = #tpu.dot_dimension_numbers<[1], [0], [0], [1], [0, 0, 1, 1], [], []>} : vector<16x32xf32>, vector<32x64xf32>, vector<16x64xf32> -> vector<16x64xf32>
    %177 = arith.mulf %172, %172 : vector<16x32xf32>
    %cst_77 = arith.constant dense<0.000000e+00> : vector<16x64xf32>
    %178 = tpu.matmul %177, %5, %cst_77 {dimension_numbers = #tpu.dot_dimension_numbers<[1], [0], [0], [1], [0, 0, 1, 1], [], []>} : vector<16x32xf32>, vector<32x64xf32>, vector<16x64xf32> -> vector<16x64xf32>
    %cst_78 = arith.constant 5.000000e-01 : f32
    %179 = vector.broadcast %cst_78 : f32 to vector<16x64xf32>
    %180 = arith.mulf %179, %178 : vector<16x64xf32>
    %181 = arith.mulf %174, %174 : vector<16x32xf32>
    %cst_79 = arith.constant dense<0.000000e+00> : vector<16x64xf32>
    %182 = tpu.matmul %181, %5, %cst_79 {dimension_numbers = #tpu.dot_dimension_numbers<[1], [0], [0], [1], [0, 0, 1, 1], [], []>} : vector<16x32xf32>, vector<32x64xf32>, vector<16x64xf32> -> vector<16x64xf32>
    %cst_80 = arith.constant 5.000000e-01 : f32
    %183 = vector.broadcast %cst_80 : f32 to vector<16x64xf32>
    %184 = arith.mulf %183, %182 : vector<16x64xf32>
    %185 = arith.subf %175, %180 : vector<16x64xf32>
    %186 = math.exp %185 : vector<16x64xf32>
    %cst_81 = arith.constant 9.99999997E-7 : f32
    %187 = vector.broadcast %cst_81 : f32 to vector<16x64xf32>
    %188 = arith.addf %186, %187 : vector<16x64xf32>
    %cst_82 = arith.constant 2.500000e-01 : f32
    %189 = vector.broadcast %cst_82 : f32 to vector<16x64xf32>
    %190 = arith.mulf %189, %188 : vector<16x64xf32>
    %191 = arith.subf %176, %184 : vector<16x64xf32>
    %192 = math.exp %191 : vector<16x64xf32>
    %cst_83 = arith.constant 9.99999997E-7 : f32
    %193 = vector.broadcast %cst_83 : f32 to vector<16x64xf32>
    %194 = arith.addf %192, %193 : vector<16x64xf32>
    %cst_84 = arith.constant 2.500000e-01 : f32
    %195 = vector.broadcast %cst_84 : f32 to vector<16x64xf32>
    %196 = arith.mulf %195, %194 : vector<16x64xf32>
    %cst_85 = arith.constant dense<0.000000e+00> : vector<64x64xf32>
    %197 = tpu.matmul %0, %196, %cst_85 {dimension_numbers = #tpu.dot_dimension_numbers<[1], [0], [0], [1], [0, 0, 1, 1], [], []>} : vector<64x16xf32>, vector<16x64xf32>, vector<64x64xf32> -> vector<64x64xf32>
    %198 = arith.mulf %197, %1 : vector<64x64xf32>
    %cst_86 = arith.constant dense<0.000000e+00> : vector<64x32xf32>
    %199 = tpu.matmul %0, %169, %cst_86 {dimension_numbers = #tpu.dot_dimension_numbers<[1], [0], [0], [1], [0, 0, 1, 1], [], []>} : vector<64x16xf32>, vector<16x32xf32>, vector<64x32xf32> -> vector<64x32xf32>
    %200 = arith.mulf %199, %2 : vector<64x32xf32>
    %cst_87 = arith.constant dense<0.000000e+00> : vector<16x64xf32>
    %201 = tpu.matmul %190, %198, %cst_87 {dimension_numbers = #tpu.dot_dimension_numbers<[1], [1], [0], [0], [0, 0, 1, 0], [], []>} : vector<16x64xf32>, vector<64x64xf32>, vector<16x64xf32> -> vector<16x64xf32>
    %202 = arith.mulf %201, %3 : vector<16x64xf32>
    %cst_88 = arith.constant dense<0.000000e+00> : vector<16x32xf32>
    %203 = tpu.matmul %202, %200, %cst_88 {dimension_numbers = #tpu.dot_dimension_numbers<[1], [0], [0], [1], [0, 0, 1, 1], [], []>} : vector<16x64xf32>, vector<64x32xf32>, vector<16x32xf32> -> vector<16x32xf32>
    %cst_89 = arith.constant dense<0.000000e+00> : vector<16x32xf32>
    %204 = tpu.matmul %202, %2, %cst_89 {dimension_numbers = #tpu.dot_dimension_numbers<[1], [0], [0], [1], [0, 0, 1, 1], [], []>} : vector<16x64xf32>, vector<64x32xf32>, vector<16x32xf32> -> vector<16x32xf32>
    %205 = tpu.reciprocal %204 {approx = true} : vector<16x32xf32> -> vector<16x32xf32>
    %206 = arith.mulf %203, %205 : vector<16x32xf32>
    %c416 = arith.constant 416 : index
    %c0_90 = arith.constant 0 : index
    %207 = vector.load %arg2[%c416, %c0_90] : memref<1320x128xf32, #tpu.memory_space<vmem>>, vector<32x32xf32>
    %cst_91 = arith.constant dense<0.000000e+00> : vector<16x32xf32>
    %208 = tpu.matmul %206, %207, %cst_91 {dimension_numbers = #tpu.dot_dimension_numbers<[1], [0], [0], [1], [0, 0, 1, 1], [], []>} : vector<16x32xf32>, vector<32x32xf32>, vector<16x32xf32> -> vector<16x32xf32>
    %209 = arith.addf %139, %208 : vector<16x32xf32>
    %c448 = arith.constant 448 : index
    %c0_92 = arith.constant 0 : index
    %210 = vector.load %arg2[%c448, %c0_92] : memref<1320x128xf32, #tpu.memory_space<vmem>>, vector<1x32xf32>
    %211 = vector.broadcast %210 : vector<1x32xf32> to vector<16x32xf32>
    %212 = arith.addf %209, %211 : vector<16x32xf32>
    %c488 = arith.constant 488 : index
    %c0_93 = arith.constant 0 : index
    %213 = vector.load %arg2[%c488, %c0_93] : memref<1320x128xf32, #tpu.memory_space<vmem>>, vector<1x32xf32>
    %c496 = arith.constant 496 : index
    %c0_94 = arith.constant 0 : index
    %214 = vector.load %arg2[%c496, %c0_94] : memref<1320x128xf32, #tpu.memory_space<vmem>>, vector<1x32xf32>
    %cst_95 = arith.constant dense<0.000000e+00> : vector<16xf32>
    %215 = vector.multi_reduction <add>, %212, %cst_95 [1] : vector<16x32xf32> to vector<16xf32>
    %216 = vector.shape_cast %215 : vector<16xf32> to vector<16x1xf32>
    %cst_96 = arith.constant 3.200000e+01 : f32
    %217 = vector.broadcast %cst_96 : f32 to vector<16x1xf32>
    %218 = arith.divf %216, %217 : vector<16x1xf32>
    %219 = vector.broadcast %218 : vector<16x1xf32> to vector<16x32xf32>
    %220 = arith.subf %212, %219 : vector<16x32xf32>
    %221 = arith.mulf %220, %220 : vector<16x32xf32>
    %cst_97 = arith.constant dense<0.000000e+00> : vector<16xf32>
    %222 = vector.multi_reduction <add>, %221, %cst_97 [1] : vector<16x32xf32> to vector<16xf32>
    %223 = vector.shape_cast %222 : vector<16xf32> to vector<16x1xf32>
    %cst_98 = arith.constant 3.200000e+01 : f32
    %224 = vector.broadcast %cst_98 : f32 to vector<16x1xf32>
    %225 = arith.divf %223, %224 : vector<16x1xf32>
    %cst_99 = arith.constant 9.99999974E-6 : f32
    %226 = vector.broadcast %cst_99 : f32 to vector<16x1xf32>
    %227 = arith.addf %225, %226 : vector<16x1xf32>
    %228 = math.rsqrt %227 : vector<16x1xf32>
    %229 = vector.broadcast %228 : vector<16x1xf32> to vector<16x32xf32>
    %230 = arith.mulf %220, %229 : vector<16x32xf32>
    %231 = vector.broadcast %213 : vector<1x32xf32> to vector<16x32xf32>
    %232 = arith.mulf %230, %231 : vector<16x32xf32>
    %233 = vector.broadcast %214 : vector<1x32xf32> to vector<16x32xf32>
    %234 = arith.addf %232, %233 : vector<16x32xf32>
    %c504 = arith.constant 504 : index
    %c0_100 = arith.constant 0 : index
    %235 = vector.load %arg2[%c504, %c0_100] : memref<1320x128xf32, #tpu.memory_space<vmem>>, vector<32x128xf32>
    %c536 = arith.constant 536 : index
    %c0_101 = arith.constant 0 : index
    %236 = vector.load %arg2[%c536, %c0_101] : memref<1320x128xf32, #tpu.memory_space<vmem>>, vector<1x128xf32>
    %c544 = arith.constant 544 : index
    %c0_102 = arith.constant 0 : index
    %237 = vector.load %arg2[%c544, %c0_102] : memref<1320x128xf32, #tpu.memory_space<vmem>>, vector<128x32xf32>
    %c672 = arith.constant 672 : index
    %c0_103 = arith.constant 0 : index
    %238 = vector.load %arg2[%c672, %c0_103] : memref<1320x128xf32, #tpu.memory_space<vmem>>, vector<1x32xf32>
    %cst_104 = arith.constant dense<0.000000e+00> : vector<16x128xf32>
    %239 = tpu.matmul %234, %235, %cst_104 {dimension_numbers = #tpu.dot_dimension_numbers<[1], [0], [0], [1], [0, 0, 1, 1], [], []>} : vector<16x32xf32>, vector<32x128xf32>, vector<16x128xf32> -> vector<16x128xf32>
    %240 = vector.broadcast %236 : vector<1x128xf32> to vector<16x128xf32>
    %241 = arith.addf %239, %240 : vector<16x128xf32>
    %242 = arith.mulf %241, %241 : vector<16x128xf32>
    %243 = arith.mulf %241, %242 : vector<16x128xf32>
    %cst_105 = arith.constant 4.471500e-02 : f32
    %244 = vector.broadcast %cst_105 : f32 to vector<16x128xf32>
    %245 = arith.mulf %244, %243 : vector<16x128xf32>
    %246 = arith.addf %241, %245 : vector<16x128xf32>
    %cst_106 = arith.constant 0.797884583 : f32
    %247 = vector.broadcast %cst_106 : f32 to vector<16x128xf32>
    %248 = arith.mulf %247, %246 : vector<16x128xf32>
    %249 = math.tanh %248 : vector<16x128xf32>
    %cst_107 = arith.constant 1.000000e+00 : f32
    %250 = vector.broadcast %cst_107 : f32 to vector<16x128xf32>
    %251 = arith.addf %250, %249 : vector<16x128xf32>
    %cst_108 = arith.constant 5.000000e-01 : f32
    %252 = vector.broadcast %cst_108 : f32 to vector<16x128xf32>
    %253 = arith.mulf %252, %251 : vector<16x128xf32>
    %254 = arith.mulf %241, %253 : vector<16x128xf32>
    %cst_109 = arith.constant dense<0.000000e+00> : vector<16x32xf32>
    %255 = tpu.matmul %254, %237, %cst_109 {dimension_numbers = #tpu.dot_dimension_numbers<[1], [0], [0], [1], [0, 0, 1, 1], [], []>} : vector<16x128xf32>, vector<128x32xf32>, vector<16x32xf32> -> vector<16x32xf32>
    %256 = vector.broadcast %238 : vector<1x32xf32> to vector<16x32xf32>
    %257 = arith.addf %255, %256 : vector<16x32xf32>
    %258 = arith.addf %212, %257 : vector<16x32xf32>
    %c680 = arith.constant 680 : index
    %c0_110 = arith.constant 0 : index
    %259 = vector.load %arg2[%c680, %c0_110] : memref<1320x128xf32, #tpu.memory_space<vmem>>, vector<1x32xf32>
    %c688 = arith.constant 688 : index
    %c0_111 = arith.constant 0 : index
    %260 = vector.load %arg2[%c688, %c0_111] : memref<1320x128xf32, #tpu.memory_space<vmem>>, vector<1x32xf32>
    %cst_112 = arith.constant dense<0.000000e+00> : vector<16xf32>
    %261 = vector.multi_reduction <add>, %258, %cst_112 [1] : vector<16x32xf32> to vector<16xf32>
    %262 = vector.shape_cast %261 : vector<16xf32> to vector<16x1xf32>
    %cst_113 = arith.constant 3.200000e+01 : f32
    %263 = vector.broadcast %cst_113 : f32 to vector<16x1xf32>
    %264 = arith.divf %262, %263 : vector<16x1xf32>
    %265 = vector.broadcast %264 : vector<16x1xf32> to vector<16x32xf32>
    %266 = arith.subf %258, %265 : vector<16x32xf32>
    %267 = arith.mulf %266, %266 : vector<16x32xf32>
    %cst_114 = arith.constant dense<0.000000e+00> : vector<16xf32>
    %268 = vector.multi_reduction <add>, %267, %cst_114 [1] : vector<16x32xf32> to vector<16xf32>
    %269 = vector.shape_cast %268 : vector<16xf32> to vector<16x1xf32>
    %cst_115 = arith.constant 3.200000e+01 : f32
    %270 = vector.broadcast %cst_115 : f32 to vector<16x1xf32>
    %271 = arith.divf %269, %270 : vector<16x1xf32>
    %cst_116 = arith.constant 9.99999974E-6 : f32
    %272 = vector.broadcast %cst_116 : f32 to vector<16x1xf32>
    %273 = arith.addf %271, %272 : vector<16x1xf32>
    %274 = math.rsqrt %273 : vector<16x1xf32>
    %275 = vector.broadcast %274 : vector<16x1xf32> to vector<16x32xf32>
    %276 = arith.mulf %266, %275 : vector<16x32xf32>
    %277 = vector.broadcast %259 : vector<1x32xf32> to vector<16x32xf32>
    %278 = arith.mulf %276, %277 : vector<16x32xf32>
    %279 = vector.broadcast %260 : vector<1x32xf32> to vector<16x32xf32>
    %280 = arith.addf %278, %279 : vector<16x32xf32>
    %c696 = arith.constant 696 : index
    %c0_117 = arith.constant 0 : index
    %281 = vector.load %arg2[%c696, %c0_117] : memref<1320x128xf32, #tpu.memory_space<vmem>>, vector<1x32xf32>
    %c704 = arith.constant 704 : index
    %c0_118 = arith.constant 0 : index
    %282 = vector.load %arg2[%c704, %c0_118] : memref<1320x128xf32, #tpu.memory_space<vmem>>, vector<1x32xf32>
    %cst_119 = arith.constant dense<0.000000e+00> : vector<16xf32>
    %283 = vector.multi_reduction <add>, %19, %cst_119 [1] : vector<16x32xf32> to vector<16xf32>
    %284 = vector.shape_cast %283 : vector<16xf32> to vector<16x1xf32>
    %cst_120 = arith.constant 3.200000e+01 : f32
    %285 = vector.broadcast %cst_120 : f32 to vector<16x1xf32>
    %286 = arith.divf %284, %285 : vector<16x1xf32>
    %287 = vector.broadcast %286 : vector<16x1xf32> to vector<16x32xf32>
    %288 = arith.subf %19, %287 : vector<16x32xf32>
    %289 = arith.mulf %288, %288 : vector<16x32xf32>
    %cst_121 = arith.constant dense<0.000000e+00> : vector<16xf32>
    %290 = vector.multi_reduction <add>, %289, %cst_121 [1] : vector<16x32xf32> to vector<16xf32>
    %291 = vector.shape_cast %290 : vector<16xf32> to vector<16x1xf32>
    %cst_122 = arith.constant 3.200000e+01 : f32
    %292 = vector.broadcast %cst_122 : f32 to vector<16x1xf32>
    %293 = arith.divf %291, %292 : vector<16x1xf32>
    %cst_123 = arith.constant 9.99999974E-6 : f32
    %294 = vector.broadcast %cst_123 : f32 to vector<16x1xf32>
    %295 = arith.addf %293, %294 : vector<16x1xf32>
    %296 = math.rsqrt %295 : vector<16x1xf32>
    %297 = vector.broadcast %296 : vector<16x1xf32> to vector<16x32xf32>
    %298 = arith.mulf %288, %297 : vector<16x32xf32>
    %299 = vector.broadcast %281 : vector<1x32xf32> to vector<16x32xf32>
    %300 = arith.mulf %298, %299 : vector<16x32xf32>
    %301 = vector.broadcast %282 : vector<1x32xf32> to vector<16x32xf32>
    %302 = arith.addf %300, %301 : vector<16x32xf32>
    %c712 = arith.constant 712 : index
    %c0_124 = arith.constant 0 : index
    %303 = vector.load %arg2[%c712, %c0_124] : memref<1320x128xf32, #tpu.memory_space<vmem>>, vector<32x32xf32>
    %cst_125 = arith.constant dense<0.000000e+00> : vector<16x32xf32>
    %304 = tpu.matmul %302, %303, %cst_125 {dimension_numbers = #tpu.dot_dimension_numbers<[1], [0], [0], [1], [0, 0, 1, 1], [], []>} : vector<16x32xf32>, vector<32x32xf32>, vector<16x32xf32> -> vector<16x32xf32>
    %c744 = arith.constant 744 : index
    %c0_126 = arith.constant 0 : index
    %305 = vector.load %arg2[%c744, %c0_126] : memref<1320x128xf32, #tpu.memory_space<vmem>>, vector<1x32xf32>
    %306 = vector.broadcast %305 : vector<1x32xf32> to vector<16x32xf32>
    %307 = arith.addf %304, %306 : vector<16x32xf32>
    %c752 = arith.constant 752 : index
    %c0_127 = arith.constant 0 : index
    %308 = vector.load %arg2[%c752, %c0_127] : memref<1320x128xf32, #tpu.memory_space<vmem>>, vector<32x64xf32>
    %cst_128 = arith.constant dense<0.000000e+00> : vector<16x64xf32>
    %309 = tpu.matmul %280, %308, %cst_128 {dimension_numbers = #tpu.dot_dimension_numbers<[1], [0], [0], [1], [0, 0, 1, 1], [], []>} : vector<16x32xf32>, vector<32x64xf32>, vector<16x64xf32> -> vector<16x64xf32>
    %c784 = arith.constant 784 : index
    %c0_129 = arith.constant 0 : index
    %310 = vector.load %arg2[%c784, %c0_129] : memref<1320x128xf32, #tpu.memory_space<vmem>>, vector<1x64xf32>
    %311 = vector.broadcast %310 : vector<1x64xf32> to vector<16x64xf32>
    %312 = arith.addf %309, %311 : vector<16x64xf32>
    %313 = vector.extract_strided_slice %312 {offsets = [0, 0], sizes = [16, 32], strides = [1, 1]} : vector<16x64xf32> to vector<16x32xf32>
    %314 = vector.extract_strided_slice %312 {offsets = [0, 32], sizes = [16, 32], strides = [1, 1]} : vector<16x64xf32> to vector<16x32xf32>
    %cst_130 = arith.constant dense<0.000000e+00> : vector<64x32xf32>
    %315 = tpu.matmul %0, %313, %cst_130 {dimension_numbers = #tpu.dot_dimension_numbers<[1], [0], [0], [1], [0, 0, 1, 1], [], []>} : vector<64x16xf32>, vector<16x32xf32>, vector<64x32xf32> -> vector<64x32xf32>
    %316 = arith.mulf %315, %2 : vector<64x32xf32>
    %cst_131 = arith.constant dense<0.000000e+00> : vector<64x32xf32>
    %317 = tpu.matmul %0, %314, %cst_131 {dimension_numbers = #tpu.dot_dimension_numbers<[1], [0], [0], [1], [0, 0, 1, 1], [], []>} : vector<64x16xf32>, vector<16x32xf32>, vector<64x32xf32> -> vector<64x32xf32>
    %318 = arith.mulf %317, %2 : vector<64x32xf32>
    %cst_132 = arith.constant dense<0.000000e+00> : vector<16x64xf32>
    %319 = tpu.matmul %307, %316, %cst_132 {dimension_numbers = #tpu.dot_dimension_numbers<[1], [1], [0], [0], [0, 0, 1, 0], [], []>} : vector<16x32xf32>, vector<64x32xf32>, vector<16x64xf32> -> vector<16x64xf32>
    %cst_133 = arith.constant 0.353553385 : f32
    %320 = vector.broadcast %cst_133 : f32 to vector<16x64xf32>
    %321 = arith.mulf %319, %320 : vector<16x64xf32>
    %cst_134 = arith.constant 5.000000e-01 : f32
    %322 = vector.broadcast %cst_134 : f32 to vector<16x64xf32>
    %323 = arith.cmpf ogt, %4, %322 : vector<16x64xf32>
    %cst_135 = arith.constant -1.000000e+30 : f32
    %324 = vector.broadcast %cst_135 : f32 to vector<16x64xf32>
    %325 = arith.select %323, %321, %324 : vector<16x64xi1>, vector<16x64xf32>
    %cst_136 = arith.constant dense<0xFF800000> : vector<16xf32>
    %326 = vector.multi_reduction <maximumf>, %325, %cst_136 [1] : vector<16x64xf32> to vector<16xf32>
    %327 = vector.shape_cast %326 : vector<16xf32> to vector<16x1xf32>
    %328 = vector.broadcast %327 : vector<16x1xf32> to vector<16x64xf32>
    %329 = arith.subf %325, %328 : vector<16x64xf32>
    %330 = math.exp %329 : vector<16x64xf32>
    %331 = arith.mulf %330, %4 : vector<16x64xf32>
    %cst_137 = arith.constant dense<0.000000e+00> : vector<16x32xf32>
    %332 = tpu.matmul %331, %318, %cst_137 {dimension_numbers = #tpu.dot_dimension_numbers<[1], [0], [0], [1], [0, 0, 1, 1], [], []>} : vector<16x64xf32>, vector<64x32xf32>, vector<16x32xf32> -> vector<16x32xf32>
    %cst_138 = arith.constant dense<0.000000e+00> : vector<16x32xf32>
    %333 = tpu.matmul %331, %2, %cst_138 {dimension_numbers = #tpu.dot_dimension_numbers<[1], [0], [0], [1], [0, 0, 1, 1], [], []>} : vector<16x64xf32>, vector<64x32xf32>, vector<16x32xf32> -> vector<16x32xf32>
    %cst_139 = arith.constant 9.99999971E-10 : f32
    %334 = vector.broadcast %cst_139 : f32 to vector<16x32xf32>
    %335 = arith.addf %333, %334 : vector<16x32xf32>
    %336 = tpu.reciprocal %335 {approx = true} : vector<16x32xf32> -> vector<16x32xf32>
    %337 = arith.mulf %332, %336 : vector<16x32xf32>
    %c792 = arith.constant 792 : index
    %c0_140 = arith.constant 0 : index
    %338 = vector.load %arg2[%c792, %c0_140] : memref<1320x128xf32, #tpu.memory_space<vmem>>, vector<32x32xf32>
    %cst_141 = arith.constant dense<0.000000e+00> : vector<16x32xf32>
    %339 = tpu.matmul %337, %338, %cst_141 {dimension_numbers = #tpu.dot_dimension_numbers<[1], [0], [0], [1], [0, 0, 1, 1], [], []>} : vector<16x32xf32>, vector<32x32xf32>, vector<16x32xf32> -> vector<16x32xf32>
    %c824 = arith.constant 824 : index
    %c0_142 = arith.constant 0 : index
    %340 = vector.load %arg2[%c824, %c0_142] : memref<1320x128xf32, #tpu.memory_space<vmem>>, vector<1x32xf32>
    %341 = vector.broadcast %340 : vector<1x32xf32> to vector<16x32xf32>
    %342 = arith.addf %339, %341 : vector<16x32xf32>
    %343 = tpu.iota {dimensions = array<i32: 0>} : vector<16x32xi32>
    %c0_i32 = arith.constant 0 : i32
    %344 = vector.broadcast %c0_i32 : i32 to vector<16x32xi32>
    %345 = arith.cmpi eq, %343, %344 : vector<16x32xi32>
    %c8_i32 = arith.constant 8 : i32
    %346 = vector.broadcast %c8_i32 : i32 to vector<16x32xi32>
    %347 = arith.cmpi eq, %343, %346 : vector<16x32xi32>
    %348 = arith.ori %345, %347 : vector<16x32xi1>
    %349 = arith.select %348, %302, %342 : vector<16x32xi1>, vector<16x32xf32>
    %c832 = arith.constant 832 : index
    %c0_143 = arith.constant 0 : index
    %350 = vector.load %arg2[%c832, %c0_143] : memref<1320x128xf32, #tpu.memory_space<vmem>>, vector<1x32xf32>
    %c840 = arith.constant 840 : index
    %c0_144 = arith.constant 0 : index
    %351 = vector.load %arg2[%c840, %c0_144] : memref<1320x128xf32, #tpu.memory_space<vmem>>, vector<1x32xf32>
    %cst_145 = arith.constant dense<0.000000e+00> : vector<16xf32>
    %352 = vector.multi_reduction <add>, %349, %cst_145 [1] : vector<16x32xf32> to vector<16xf32>
    %353 = vector.shape_cast %352 : vector<16xf32> to vector<16x1xf32>
    %cst_146 = arith.constant 3.200000e+01 : f32
    %354 = vector.broadcast %cst_146 : f32 to vector<16x1xf32>
    %355 = arith.divf %353, %354 : vector<16x1xf32>
    %356 = vector.broadcast %355 : vector<16x1xf32> to vector<16x32xf32>
    %357 = arith.subf %349, %356 : vector<16x32xf32>
    %358 = arith.mulf %357, %357 : vector<16x32xf32>
    %cst_147 = arith.constant dense<0.000000e+00> : vector<16xf32>
    %359 = vector.multi_reduction <add>, %358, %cst_147 [1] : vector<16x32xf32> to vector<16xf32>
    %360 = vector.shape_cast %359 : vector<16xf32> to vector<16x1xf32>
    %cst_148 = arith.constant 3.200000e+01 : f32
    %361 = vector.broadcast %cst_148 : f32 to vector<16x1xf32>
    %362 = arith.divf %360, %361 : vector<16x1xf32>
    %cst_149 = arith.constant 9.99999974E-6 : f32
    %363 = vector.broadcast %cst_149 : f32 to vector<16x1xf32>
    %364 = arith.addf %362, %363 : vector<16x1xf32>
    %365 = math.rsqrt %364 : vector<16x1xf32>
    %366 = vector.broadcast %365 : vector<16x1xf32> to vector<16x32xf32>
    %367 = arith.mulf %357, %366 : vector<16x32xf32>
    %368 = vector.broadcast %350 : vector<1x32xf32> to vector<16x32xf32>
    %369 = arith.mulf %367, %368 : vector<16x32xf32>
    %370 = vector.broadcast %351 : vector<1x32xf32> to vector<16x32xf32>
    %371 = arith.addf %369, %370 : vector<16x32xf32>
    %c848 = arith.constant 848 : index
    %c0_150 = arith.constant 0 : index
    %372 = vector.load %arg2[%c848, %c0_150] : memref<1320x128xf32, #tpu.memory_space<vmem>>, vector<32x128xf32>
    %c880 = arith.constant 880 : index
    %c0_151 = arith.constant 0 : index
    %373 = vector.load %arg2[%c880, %c0_151] : memref<1320x128xf32, #tpu.memory_space<vmem>>, vector<1x128xf32>
    %c888 = arith.constant 888 : index
    %c0_152 = arith.constant 0 : index
    %374 = vector.load %arg2[%c888, %c0_152] : memref<1320x128xf32, #tpu.memory_space<vmem>>, vector<128x32xf32>
    %c1016 = arith.constant 1016 : index
    %c0_153 = arith.constant 0 : index
    %375 = vector.load %arg2[%c1016, %c0_153] : memref<1320x128xf32, #tpu.memory_space<vmem>>, vector<1x32xf32>
    %cst_154 = arith.constant dense<0.000000e+00> : vector<16x128xf32>
    %376 = tpu.matmul %371, %372, %cst_154 {dimension_numbers = #tpu.dot_dimension_numbers<[1], [0], [0], [1], [0, 0, 1, 1], [], []>} : vector<16x32xf32>, vector<32x128xf32>, vector<16x128xf32> -> vector<16x128xf32>
    %377 = vector.broadcast %373 : vector<1x128xf32> to vector<16x128xf32>
    %378 = arith.addf %376, %377 : vector<16x128xf32>
    %379 = arith.mulf %378, %378 : vector<16x128xf32>
    %380 = arith.mulf %378, %379 : vector<16x128xf32>
    %cst_155 = arith.constant 4.471500e-02 : f32
    %381 = vector.broadcast %cst_155 : f32 to vector<16x128xf32>
    %382 = arith.mulf %381, %380 : vector<16x128xf32>
    %383 = arith.addf %378, %382 : vector<16x128xf32>
    %cst_156 = arith.constant 0.797884583 : f32
    %384 = vector.broadcast %cst_156 : f32 to vector<16x128xf32>
    %385 = arith.mulf %384, %383 : vector<16x128xf32>
    %386 = math.tanh %385 : vector<16x128xf32>
    %cst_157 = arith.constant 1.000000e+00 : f32
    %387 = vector.broadcast %cst_157 : f32 to vector<16x128xf32>
    %388 = arith.addf %387, %386 : vector<16x128xf32>
    %cst_158 = arith.constant 5.000000e-01 : f32
    %389 = vector.broadcast %cst_158 : f32 to vector<16x128xf32>
    %390 = arith.mulf %389, %388 : vector<16x128xf32>
    %391 = arith.mulf %378, %390 : vector<16x128xf32>
    %cst_159 = arith.constant dense<0.000000e+00> : vector<16x32xf32>
    %392 = tpu.matmul %391, %374, %cst_159 {dimension_numbers = #tpu.dot_dimension_numbers<[1], [0], [0], [1], [0, 0, 1, 1], [], []>} : vector<16x128xf32>, vector<128x32xf32>, vector<16x32xf32> -> vector<16x32xf32>
    %393 = vector.broadcast %375 : vector<1x32xf32> to vector<16x32xf32>
    %394 = arith.addf %392, %393 : vector<16x32xf32>
    %c1024 = arith.constant 1024 : index
    %c0_160 = arith.constant 0 : index
    %395 = vector.load %arg2[%c1024, %c0_160] : memref<1320x128xf32, #tpu.memory_space<vmem>>, vector<32x16xf32>
    %cst_161 = arith.constant dense<0.000000e+00> : vector<16x16xf32>
    %396 = tpu.matmul %394, %395, %cst_161 {dimension_numbers = #tpu.dot_dimension_numbers<[1], [0], [0], [1], [0, 0, 1, 1], [], []>} : vector<16x32xf32>, vector<32x16xf32>, vector<16x16xf32> -> vector<16x16xf32>
    %c1056 = arith.constant 1056 : index
    %c0_162 = arith.constant 0 : index
    %397 = vector.load %arg2[%c1056, %c0_162] : memref<1320x128xf32, #tpu.memory_space<vmem>>, vector<1x16xf32>
    %398 = vector.broadcast %397 : vector<1x16xf32> to vector<16x16xf32>
    %399 = arith.addf %396, %398 : vector<16x16xf32>
    %c0_163 = arith.constant 0 : index
    %c0_164 = arith.constant 0 : index
    %400 = vector.load %arg3[%c0_163, %c0_164] : memref<16x16xf32, #tpu.memory_space<vmem>>, vector<16x16xf32>
    tpu.vector_store %arg3[%c0_163, %c0_164], %399 {strides = array<i32>} : memref<16x16xf32, #tpu.memory_space<vmem>>, vector<16x16xf32>,
    return
  }
}

</mosaic_0001>

<llo_original>
// kernel: forward.1
$region0: #{forward.1}
  #allocation0 [shape = 'u32[]', space=smem, size = 0x4, offset = 0x4, fixed_abs, tag = 'smem constant byte address 0x4 - core index']
  #allocation1 [shape = 'u32[144,128]{1,0:T(1,128)}', space=vmem, size = 0x12000, scoped, tag = 'internal scratch']
  %s0 = inlined_call_operand.vmem [shape: s32[16,1], index: 0, kind: input, shape index: {}]
  %s1 = inlined_call_operand.vmem [shape: f32[16,16], index: 1, kind: input, shape index: {}]
  %s2 = inlined_call_operand.hbm [shape: f32[1320,128], index: 2, kind: input, shape index: {}]
  %s3 = inlined_call_operand.hbm [shape: f32[16,16], index: 3, kind: output, shape index: {}]
  %s4 = sld [smem:[#allocation0]]
  $region26: #{forward.1} parent=0
    _
  %s6 = ssub.s32 1, %s4
  %s7 = scalar_select 0, %s6, %s4
  $region1: #{forward.1} parent=0
    #allocation2 [shape = 'u8[675840]{0}', space=vmem, size = 0xa5000, scoped, tag = 'input window, operand 2, single buffered']
    #allocation3 [shape = 's32[1]{0}', space=sflag, size = 0x4, scoped, tag = 'scoped memory for forward.1']
    #allocation4 [shape = 's32[1]{0}', space=sflag, size = 0x4, scoped, tag = 'scoped memory for forward.1']
    #allocation5 [shape = 'u8[8192]{0}', space=vmem, size = 0x2000, scoped, tag = 'output window, operand 0, single buffered']
    %8 = vsyncpa [#allocation3], 0
    %9 = vsyncpa [#allocation4], 0
    // Predicated region
    $region2: #{forward.1} parent=1 // pred_check
      _
    $region3: #{forward.1} parent=1 // pred_check_branch
      %11 = sbr.rel (0) target = $region5
    $region4: #{forward.1} parent=1 // pred_region
      _
    $region5: #{forward.1} parent=1 // pred_fallthru
      _
    // Predicated region
    $region6: #{forward.1} parent=1 // pred_check
      _
    $region7: #{forward.1} parent=1 // pred_check_branch
      %13 = sbr.rel (0) target = $region9
    $region8: #{forward.1} parent=1 // pred_region
      _
    $region9: #{forward.1} parent=1 // pred_fallthru
      _
    // Predicated region
    $region10: #{forward.1} parent=1 // pred_check
      _
    $region11: #{forward.1} parent=1 // pred_check_branch
      %15 = sbr.rel (0) target = $region13
    $region12: #{forward.1} parent=1 // pred_region
      %s17 = ssub.s32 21120, 21120
      %18 = vsyncadd [#allocation3], %s17
      %s19 = sshll.u32 [#allocation2], 4
      %s20 = int_to_ptr.vmem [resolvable:$true] %s19
      %25 = dma.hbm_to_vmem [thread:$0]  %s2, 21120, %s20, [#allocation3], 128, 128, 8
    $region13: #{forward.1} parent=1 // pred_fallthru
      _
    // Predicated region
    $region14: #{forward.1} parent=1 // pred_check
      _
    $region15: #{forward.1} parent=1 // pred_check_branch
      %27 = sbr.rel (0) target = $region17
    $region16: #{forward.1} parent=1 // pred_region
      %28 = dma.done [#allocation3], 21120
    $region17: #{forward.1} parent=1 // pred_fallthru
      _
    %v29 = vld [vmem:[#allocation2 + $0x428] sm:$0xff]
    %v30 = vld [vmem:[#allocation2 + $0x430] sm:$0xff]
    %v31 = vld [vmem:[#allocation2 + $0x438] sm:$0xff]
    %v32 = vld [vmem:[#allocation2 + $0x440] sm:$0xff]
    %v33 = vld [vmem:[#allocation2 + $0x448] sm:$0xff]
    %v34 = vld [vmem:[#allocation2 + $0x450] sm:$0xff]
    %v35 = vld [vmem:[#allocation2 + $0x458] sm:$0xff]
    %v36 = vld [vmem:[#allocation2 + $0x460] sm:$0xff]
    %v37 = vld [vmem:[#allocation2 + $0x468] sm:$0xff]
    %v38 = vld [vmem:[#allocation2 + $0x470] sm:$0xff]
    %v39 = vld [vmem:[#allocation2 + $0x478] sm:$0xff]
    %v40 = vld [vmem:[#allocation2 + $0x480] sm:$0xff]
    %v41 = vld [vmem:[#allocation2 + $0x488] sm:$0xff]
    %v42 = vld [vmem:[#allocation2 + $0x490] sm:$0xff]
    %v43 = vld [vmem:[#allocation2 + $0x498] sm:$0xff]
    %v44 = vld [vmem:[#allocation2 + $0x4a0] sm:$0xff]
    %v45 = vld [vmem:[#allocation2 + $0x4a8] sm:$0xff]
    %v46 = vld [vmem:[#allocation2 + $0x4b0] sm:$0xff]
    %v47 = vld [vmem:[#allocation2 + $0x4b8] sm:$0xff]
    %v48 = vld [vmem:[#allocation2 + $0x4c0] sm:$0xff]
    %v49 = vld [vmem:[#allocation2 + $0x4c8] sm:$0xff]
    %v50 = vld [vmem:[#allocation2 + $0x4d0] sm:$0xff]
    %v51 = vld [vmem:[#allocation2 + $0x4d8] sm:$0xff]
    %v52 = vld [vmem:[#allocation2 + $0x4e0] sm:$0xff]
    %v53 = vld [vmem:[#allocation2 + $0x4e8] sm:$0xff]
    %v54 = vld [vmem:[#allocation2 + $0x4f0] sm:$0xff]
    %v55 = vld [vmem:[#allocation2 + $0x4f8] sm:$0xff]
    %v56 = vld [vmem:[#allocation2 + $0x500] sm:$0xff]
    %v57 = vld [vmem:[#allocation2 + $0x508] sm:$0xff]
    %v58 = vld [vmem:[#allocation2 + $0x510] sm:$0xff]
    %v59 = vld [vmem:[#allocation2 + $0x518] sm:$0xff]
    %v60 = vld [vmem:[#allocation2 + $0x520] sm:$0xff]
    %v61 = vld [vmem:[%s0] sm:$0xff]
    %v62 = vld [vmem:[%s0 + $0x8] sm:$0xff]
    %v63 = vlaneseq
    %v64 = vand.u32 %v63, 127
    %65 = vset.pattern.permute.xlu0 0
    %66 = vperm.xlu0 %65, %v61
    %v67 = vpop.permute.xlu0 %66
    %68 = vset.pattern.permute.xlu0 0
    %69 = vperm.xlu0 %68, %v62
    %v70 = vpop.permute.xlu0 %69
    %vm71 = vcmp.eq.s32.totalorder %v64, %v67
    %vm72 = vcmp.eq.s32.totalorder %v64, %v70
    %v73 = vsel %vm71, 1, 0
    %v74 = vsel %vm72, 1, 0
    %v75 = vcvt.s32.f32 %v73
    %v76 = vcvt.s32.f32 %v74
    %v77 = vld [vmem:[#allocation2] sm:$0xff]
    %v78 = vld [vmem:[#allocation2 + $0x8] sm:$0xff]
    %vm79 = vcmask 130048
    %v81 = vsel %vm79, %v75, 0
    %v84 = vsel %vm79, %v76, 0
    %86 = vmatprep.subr.mxu0 0.0
    %87 = vmatpush1.msra.mxu0 0.0
    %88 = vmatprep.subr.mxu0 0.0
    %89 = vmatpush1.msra.mxu0 0.0
    %90 = vmatprep.subr.mxu0 0.0
    %91 = vmatpush1.msra.mxu0 0.0
    %92 = vmatprep.subr.mxu0 0.0
    %93 = vmatpush1.msra.mxu0 0.0
    %94 = vmatprep.subr.mxu0 0.0
    %95 = vmatpush1.msra.mxu0 0.0
    %96 = vmatprep.subr.mxu0 0.0
    %97 = vmatpush1.msra.mxu0 0.0
    %98 = vmatprep.subr.mxu0 0.0
    %99 = vmatpush1.msra.mxu0 0.0
    %100 = vmatprep.subr.mxu0 0.0
    %101 = vmatpush1.msra.mxu0 0.0
    %102 = vmatprep.subr.mxu0 0.0
    %103 = vmatpush1.msra.mxu0 0.0
    %104 = vmatprep.subr.mxu0 0.0
    %105 = vmatpush1.msra.mxu0 0.0
    %106 = vmatprep.subr.mxu0 0.0
    %107 = vmatpush1.msra.mxu0 0.0
    %108 = vmatprep.subr.mxu0 0.0
    %109 = vmatpush1.msra.mxu0 0.0
    %110 = vmatprep.subr.mxu0 0.0
    %111 = vmatpush1.msra.mxu0 0.0
    %112 = vmatprep.subr.mxu0 0.0
    %113 = vmatpush1.msra.mxu0 0.0
    %114 = vmatprep.subr.mxu0 0.0
    %115 = vmatpush1.msra.mxu0 %v78
    %116 = vmatprep.subr.mxu0 0.0
    %117 = vmatpush1.msra.mxu0 %v77
    %118 = vmatprep.subr.mxu0 0.0
    %119 = vmatpush2.msra.mxu0 0.0
    %120 = vmatprep.subr.mxu0 0.0
    %121 = vmatpush2.msra.mxu0 0.0
    %122 = vmatprep.subr.mxu0 0.0
    %123 = vmatpush2.msra.mxu0 0.0
    %124 = vmatprep.subr.mxu0 0.0
    %125 = vmatpush2.msra.mxu0 0.0
    %126 = vmatprep.subr.mxu0 0.0
    %127 = vmatpush2.msra.mxu0 0.0
    %128 = vmatprep.subr.mxu0 0.0
    %129 = vmatpush2.msra.mxu0 0.0
    %130 = vmatprep.subr.mxu0 0.0
    %131 = vmatpush2.msra.mxu0 0.0
    %132 = vmatprep.subr.mxu0 0.0
    %133 = vmatpush2.msra.mxu0 0.0
    %134 = vmatprep.subr.mxu0 0.0
    %135 = vmatpush2.msra.mxu0 0.0
    %136 = vmatprep.subr.mxu0 0.0
    %137 = vmatpush2.msra.mxu0 0.0
    %138 = vmatprep.subr.mxu0 0.0
    %139 = vmatpush2.msra.mxu0 0.0
    %140 = vmatprep.subr.mxu0 0.0
    %141 = vmatpush2.msra.mxu0 0.0
    %142 = vmatprep.subr.mxu0 0.0
    %143 = vmatpush2.msra.mxu0 0.0
    %144 = vmatprep.subr.mxu0 0.0
    %145 = vmatpush2.msra.mxu0 0.0
    %146 = vmatprep.subr.mxu0 0.0
    %147 = vmatpush2.msra.mxu0 0.0
    %148 = vmatprep.subr.mxu0 0.0
    %149 = vmatpush2.msra.mxu0 0.0
    %150 = vmatprep.mubr.f32.mxu0 0.0
    %151 = vmatmul.mubr.f32.gmra.mxu0 %v81
    %v152 = vpop.f32.mrf.mxu0
    %v153 = vadd.f32 0.0, %v152
    %v154 = vpop.f32.mrf.mxu0
    %155 = vmatprep.mubr.f32.mxu0 0.0
    %156 = vmatmul.mubr.f32.gmra.mxu0 %v84
    %v157 = vpop.f32.mrf.mxu0
    %v158 = vadd.f32 0.0, %v157
    %v159 = vpop.f32.mrf.mxu0
    %160 = vdwg.mxu0
    %v161 = vld [vmem:[%s1] sm:$0xff]
    %v162 = vld [vmem:[%s1 + $0x8] sm:$0xff]
    %v163 = vld [vmem:[#allocation2 + $0x10] sm:$0xff]
    %v164 = vld [vmem:[#allocation2 + $0x18] sm:$0xff]
    %v165 = vld [vmem:[#allocation2 + $0x20] sm:$0x1]
    %v166 = vlaneseq
    %v167 = vshrl.u32 %v166, 7
    %v168 = vsub.s32 0, %v167
    %v169 = vrot.slane %v165, %v168
    %v171 = vsel %vm79, %v161, 0
    %v174 = vsel %vm79, %v162, 0
    %176 = vmatprep.subr.mxu0 0.0
    %177 = vmatpush1.msra.mxu0 0.0
    %178 = vmatprep.subr.mxu0 0.0
    %179 = vmatpush1.msra.mxu0 0.0
    %180 = vmatprep.subr.mxu0 0.0
    %181 = vmatpush1.msra.mxu0 0.0
    %182 = vmatprep.subr.mxu0 0.0
    %183 = vmatpush1.msra.mxu0 0.0
    %184 = vmatprep.subr.mxu0 0.0
    %185 = vmatpush1.msra.mxu0 0.0
    %186 = vmatprep.subr.mxu0 0.0
    %187 = vmatpush1.msra.mxu0 0.0
    %188 = vmatprep.subr.mxu0 0.0
    %189 = vmatpush1.msra.mxu0 0.0
    %190 = vmatprep.subr.mxu0 0.0
    %191 = vmatpush1.msra.mxu0 0.0
    %192 = vmatprep.subr.mxu0 0.0
    %193 = vmatpush1.msra.mxu0 0.0
    %194 = vmatprep.subr.mxu0 0.0
    %195 = vmatpush1.msra.mxu0 0.0
    %196 = vmatprep.subr.mxu0 0.0
    %197 = vmatpush1.msra.mxu0 0.0
    %198 = vmatprep.subr.mxu0 0.0
    %199 = vmatpush1.msra.mxu0 0.0
    %200 = vmatprep.subr.mxu0 0.0
    %201 = vmatpush1.msra.mxu0 0.0
    %202 = vmatprep.subr.mxu0 0.0
    %203 = vmatpush1.msra.mxu0 0.0
    %204 = vmatprep.subr.mxu0 0.0
    %205 = vmatpush1.msra.mxu0 %v164
    %206 = vmatprep.subr.mxu0 0.0
    %207 = vmatpush1.msra.mxu0 %v163
    %208 = vmatprep.subr.mxu0 0.0
    %209 = vmatpush2.msra.mxu0 0.0
    %210 = vmatprep.subr.mxu0 0.0
    %211 = vmatpush2.msra.mxu0 0.0
    %212 = vmatprep.subr.mxu0 0.0
    %213 = vmatpush2.msra.mxu0 0.0
    %214 = vmatprep.subr.mxu0 0.0
    %215 = vmatpush2.msra.mxu0 0.0
    %216 = vmatprep.subr.mxu0 0.0
    %217 = vmatpush2.msra.mxu0 0.0
    %218 = vmatprep.subr.mxu0 0.0
    %219 = vmatpush2.msra.mxu0 0.0
    %220 = vmatprep.subr.mxu0 0.0
    %221 = vmatpush2.msra.mxu0 0.0
    %222 = vmatprep.subr.mxu0 0.0
    %223 = vmatpush2.msra.mxu0 0.0
    %224 = vmatprep.subr.mxu0 0.0
    %225 = vmatpush2.msra.mxu0 0.0
    %226 = vmatprep.subr.mxu0 0.0
    %227 = vmatpush2.msra.mxu0 0.0
    %228 = vmatprep.subr.mxu0 0.0
    %229 = vmatpush2.msra.mxu0 0.0
    %230 = vmatprep.subr.mxu0 0.0
    %231 = vmatpush2.msra.mxu0 0.0
    %232 = vmatprep.subr.mxu0 0.0
    %233 = vmatpush2.msra.mxu0 0.0
    %234 = vmatprep.subr.mxu0 0.0
    %235 = vmatpush2.msra.mxu0 0.0
    %236 = vmatprep.subr.mxu0 0.0
    %237 = vmatpush2.msra.mxu0 0.0
    %238 = vmatprep.subr.mxu0 0.0
    %239 = vmatpush2.msra.mxu0 0.0
    %240 = vmatprep.mubr.f32.mxu0 0.0
    %241 = vmatmul.mubr.f32.gmra.mxu0 %v171
    %v242 = vpop.f32.mrf.mxu0
    %v243 = vadd.f32 %v169, %v242
    %v244 = vpop.f32.mrf.mxu0
    %245 = vmatprep.mubr.f32.mxu0 0.0
    %246 = vmatmul.mubr.f32.gmra.mxu0 %v174
    %v247 = vpop.f32.mrf.mxu0
    %v248 = vadd.f32 %v169, %v247
    %v249 = vpop.f32.mrf.mxu0
    %250 = vdwg.mxu0
    %v251 = vadd.f32 %v243, %v153
    %v252 = vadd.f32 %v248, %v158
    %v253 = vld [vmem:[#allocation2 + $0x28] sm:$0x1]
    %v254 = vld [vmem:[#allocation2 + $0x30] sm:$0x1]
    %vm255 = vcmask 261120
    %v256 = vsel %vm255, %v251, 0.0
    %257 = vadd.xlane.f32.xlu0 %v256
    %v258 = vpop.xlane.xlu0 %257
    %v259 = vsel %vm255, %v252, 0.0
    %260 = vadd.xlane.f32.xlu0 %v259
    %v261 = vpop.xlane.xlu0 %260
    %v262 = vrcp.pop 32.0
    %v263 = vmul.f32 %v258, %v262
    %v264 = vmul.f32 %v261, %v262
    %v265 = vsub.f32 %v251, %v263
    %v266 = vsub.f32 %v252, %v264
    %v267 = vmul.f32 %v265, %v265
    %v268 = vmul.f32 %v266, %v266
    %v269 = vsel %vm255, %v267, 0.0
    %270 = vadd.xlane.f32.xlu0 %v269
    %v271 = vpop.xlane.xlu0 %270
    %v272 = vsel %vm255, %v268, 0.0
    %273 = vadd.xlane.f32.xlu0 %v272
    %v274 = vpop.xlane.xlu0 %273
    %v275 = vmul.f32 %v271, %v262
    %v276 = vmul.f32 %v274, %v262
    %v277 = vadd.f32 %v275, 1e-05
    %v278 = vadd.f32 %v276, 1e-05
    %v279 = vrsqrt.pop %v277
    %v280 = vrsqrt.pop %v278
    %v281 = vmul.f32 %v265, %v279
    %v282 = vmul.f32 %v266, %v280
    %v283 = vlaneseq
    %v284 = vshrl.u32 %v283, 7
    %v285 = vsub.s32 0, %v284
    %v286 = vrot.slane %v253, %v285
    %v287 = vmul.f32 %v281, %v286
    %v288 = vmul.f32 %v282, %v286
    %v289 = vlaneseq
    %v290 = vshrl.u32 %v289, 7
    %v291 = vsub.s32 0, %v290
    %v292 = vrot.slane %v254, %v291
    %v293 = vadd.f32 %v287, %v292
    %v294 = vadd.f32 %v288, %v292
    %v295 = vld [vmem:[#allocation2 + $0x38] sm:$0xff]
    %v296 = vld [vmem:[#allocation2 + $0x40] sm:$0xff]
    %v297 = vld [vmem:[#allocation2 + $0x48] sm:$0xff]
    %v298 = vld [vmem:[#allocation2 + $0x50] sm:$0xff]
    %v299 = vld [vmem:[#allocation2 + $0x58] sm:$0x1]
    %v300 = vlaneseq
    %v301 = vshrl.u32 %v300, 7
    %v302 = vsub.s32 0, %v301
    %v303 = vrot.slane %v299, %v302
    %v305 = vsel %vm255, %v293, 0
    %v308 = vsel %vm255, %v294, 0
    %310 = vmatprep.subr.mxu0 0.0
    %311 = vmatpush1.msra.mxu0 0.0
    %312 = vmatprep.subr.mxu0 0.0
    %313 = vmatpush1.msra.mxu0 0.0
    %314 = vmatprep.subr.mxu0 0.0
    %315 = vmatpush1.msra.mxu0 0.0
    %316 = vmatprep.subr.mxu0 0.0
    %317 = vmatpush1.msra.mxu0 0.0
    %318 = vmatprep.subr.mxu0 0.0
    %319 = vmatpush1.msra.mxu0 0.0
    %320 = vmatprep.subr.mxu0 0.0
    %321 = vmatpush1.msra.mxu0 0.0
    %322 = vmatprep.subr.mxu0 0.0
    %323 = vmatpush1.msra.mxu0 0.0
    %324 = vmatprep.subr.mxu0 0.0
    %325 = vmatpush1.msra.mxu0 0.0
    %326 = vmatprep.subr.mxu0 0.0
    %327 = vmatpush1.msra.mxu0 0.0
    %328 = vmatprep.subr.mxu0 0.0
    %329 = vmatpush1.msra.mxu0 0.0
    %330 = vmatprep.subr.mxu0 0.0
    %331 = vmatpush1.msra.mxu0 0.0
    %332 = vmatprep.subr.mxu0 0.0
    %333 = vmatpush1.msra.mxu0 0.0
    %334 = vmatprep.subr.mxu0 0.0
    %335 = vmatpush1.msra.mxu0 %v298
    %336 = vmatprep.subr.mxu0 0.0
    %337 = vmatpush1.msra.mxu0 %v297
    %338 = vmatprep.subr.mxu0 0.0
    %339 = vmatpush1.msra.mxu0 %v296
    %340 = vmatprep.subr.mxu0 0.0
    %341 = vmatpush1.msra.mxu0 %v295
    %342 = vmatprep.subr.mxu0 0.0
    %343 = vmatpush2.msra.mxu0 0.0
    %344 = vmatprep.subr.mxu0 0.0
    %345 = vmatpush2.msra.mxu0 0.0
    %346 = vmatprep.subr.mxu0 0.0
    %347 = vmatpush2.msra.mxu0 0.0
    %348 = vmatprep.subr.mxu0 0.0
    %349 = vmatpush2.msra.mxu0 0.0
    %350 = vmatprep.subr.mxu0 0.0
    %351 = vmatpush2.msra.mxu0 0.0
    %352 = vmatprep.subr.mxu0 0.0
    %353 = vmatpush2.msra.mxu0 0.0
    %354 = vmatprep.subr.mxu0 0.0
    %355 = vmatpush2.msra.mxu0 0.0
    %356 = vmatprep.subr.mxu0 0.0
    %357 = vmatpush2.msra.mxu0 0.0
    %358 = vmatprep.subr.mxu0 0.0
    %359 = vmatpush2.msra.mxu0 0.0
    %360 = vmatprep.subr.mxu0 0.0
    %361 = vmatpush2.msra.mxu0 0.0
    %362 = vmatprep.subr.mxu0 0.0
    %363 = vmatpush2.msra.mxu0 0.0
    %364 = vmatprep.subr.mxu0 0.0
    %365 = vmatpush2.msra.mxu0 0.0
    %366 = vmatprep.subr.mxu0 0.0
    %367 = vmatpush2.msra.mxu0 0.0
    %368 = vmatprep.subr.mxu0 0.0
    %369 = vmatpush2.msra.mxu0 0.0
    %370 = vmatprep.subr.mxu0 0.0
    %371 = vmatpush2.msra.mxu0 0.0
    %372 = vmatprep.subr.mxu0 0.0
    %373 = vmatpush2.msra.mxu0 0.0
    %374 = vmatprep.mubr.f32.mxu0 0.0
    %375 = vmatmul.mubr.f32.gmra.mxu0 %v305
    %v376 = vpop.f32.mrf.mxu0
    %v377 = vadd.f32 %v303, %v376
    %v378 = vpop.f32.mrf.mxu0
    %379 = vmatprep.mubr.f32.mxu0 0.0
    %380 = vmatmul.mubr.f32.gmra.mxu0 %v308
    %v381 = vpop.f32.mrf.mxu0
    %v382 = vadd.f32 %v303, %v381
    %v383 = vpop.f32.mrf.mxu0
    %384 = vdwg.mxu0
    %v385 = vld [vmem:[#allocation2 + $0x88] sm:$0xff]
    %v386 = vld [vmem:[#allocation2 + $0x90] sm:$0xff]
    %v387 = vld [vmem:[#allocation2 + $0x98] sm:$0xff]
    %v388 = vld [vmem:[#allocation2 + $0xa0] sm:$0xff]
    %v389 = vmul.f32 %v377, 0.59460354
    %v390 = vmul.f32 %v382, 0.59460354
    %v392 = vsel %vm255, %v389, 0
    %v395 = vsel %vm255, %v390, 0
    %397 = vmatprep.subr.mxu0 0.0
    %398 = vmatpush1.msra.mxu0 0.0
    %399 = vmatprep.subr.mxu0 0.0
    %400 = vmatpush1.msra.mxu0 0.0
    %401 = vmatprep.subr.mxu0 0.0
    %402 = vmatpush1.msra.mxu0 0.0
    %403 = vmatprep.subr.mxu0 0.0
    %404 = vmatpush1.msra.mxu0 0.0
    %405 = vmatprep.subr.mxu0 0.0
    %406 = vmatpush1.msra.mxu0 0.0
    %407 = vmatprep.subr.mxu0 0.0
    %408 = vmatpush1.msra.mxu0 0.0
    %409 = vmatprep.subr.mxu0 0.0
    %410 = vmatpush1.msra.mxu0 0.0
    %411 = vmatprep.subr.mxu0 0.0
    %412 = vmatpush1.msra.mxu0 0.0
    %413 = vmatprep.subr.mxu0 0.0
    %414 = vmatpush1.msra.mxu0 0.0
    %415 = vmatprep.subr.mxu0 0.0
    %416 = vmatpush1.msra.mxu0 0.0
    %417 = vmatprep.subr.mxu0 0.0
    %418 = vmatpush1.msra.mxu0 0.0
    %419 = vmatprep.subr.mxu0 0.0
    %420 = vmatpush1.msra.mxu0 0.0
    %421 = vmatprep.subr.mxu0 0.0
    %422 = vmatpush1.msra.mxu0 %v388
    %423 = vmatprep.subr.mxu0 0.0
    %424 = vmatpush1.msra.mxu0 %v387
    %425 = vmatprep.subr.mxu0 0.0
    %426 = vmatpush1.msra.mxu0 %v386
    %427 = vmatprep.subr.mxu0 0.0
    %428 = vmatpush1.msra.mxu0 %v385
    %429 = vmatprep.subr.mxu0 0.0
    %430 = vmatpush2.msra.mxu0 0.0
    %431 = vmatprep.subr.mxu0 0.0
    %432 = vmatpush2.msra.mxu0 0.0
    %433 = vmatprep.subr.mxu0 0.0
    %434 = vmatpush2.msra.mxu0 0.0
    %435 = vmatprep.subr.mxu0 0.0
    %436 = vmatpush2.msra.mxu0 0.0
    %437 = vmatprep.subr.mxu0 0.0
    %438 = vmatpush2.msra.mxu0 0.0
    %439 = vmatprep.subr.mxu0 0.0
    %440 = vmatpush2.msra.mxu0 0.0
    %441 = vmatprep.subr.mxu0 0.0
    %442 = vmatpush2.msra.mxu0 0.0
    %443 = vmatprep.subr.mxu0 0.0
    %444 = vmatpush2.msra.mxu0 0.0
    %445 = vmatprep.subr.mxu0 0.0
    %446 = vmatpush2.msra.mxu0 0.0
    %447 = vmatprep.subr.mxu0 0.0
    %448 = vmatpush2.msra.mxu0 0.0
    %449 = vmatprep.subr.mxu0 0.0
    %450 = vmatpush2.msra.mxu0 0.0
    %451 = vmatprep.subr.mxu0 0.0
    %452 = vmatpush2.msra.mxu0 0.0
    %453 = vmatprep.subr.mxu0 0.0
    %454 = vmatpush2.msra.mxu0 0.0
    %455 = vmatprep.subr.mxu0 0.0
    %456 = vmatpush2.msra.mxu0 0.0
    %457 = vmatprep.subr.mxu0 0.0
    %458 = vmatpush2.msra.mxu0 0.0
    %459 = vmatprep.subr.mxu0 0.0
    %460 = vmatpush2.msra.mxu0 0.0
    %461 = vmatprep.mubr.f32.mxu0 0.0
    %462 = vmatmul.mubr.f32.gmra.mxu0 %v392
    %v463 = vpop.f32.mrf.mxu0
    %v464 = vadd.f32 0.0, %v463
    %v465 = vpop.f32.mrf.mxu0
    %466 = vmatprep.mubr.f32.mxu0 0.0
    %467 = vmatmul.mubr.f32.gmra.mxu0 %v395
    %v468 = vpop.f32.mrf.mxu0
    %v469 = vadd.f32 0.0, %v468
    %v470 = vpop.f32.mrf.mxu0
    %471 = vdwg.mxu0
    %472 = vrot.lane.b32.xlu0 %v389, 96
    %v473 = vpop.permute.xlu0 %472
    %474 = vrot.lane.b32.xlu0 %v390, 96
    %v475 = vpop.permute.xlu0 %474
    %v476 = vsel %vm255, %v473, 0
    %v478 = vsel %vm255, %v475, 0
    %480 = vmatprep.subr.mxu0 0.0
    %481 = vmatpush1.msra.mxu0 0.0
    %482 = vmatprep.subr.mxu0 0.0
    %483 = vmatpush1.msra.mxu0 0.0
    %484 = vmatprep.subr.mxu0 0.0
    %485 = vmatpush1.msra.mxu0 0.0
    %486 = vmatprep.subr.mxu0 0.0
    %487 = vmatpush1.msra.mxu0 0.0
    %488 = vmatprep.subr.mxu0 0.0
    %489 = vmatpush1.msra.mxu0 0.0
    %490 = vmatprep.subr.mxu0 0.0
    %491 = vmatpush1.msra.mxu0 0.0
    %492 = vmatprep.subr.mxu0 0.0
    %493 = vmatpush1.msra.mxu0 0.0
    %494 = vmatprep.subr.mxu0 0.0
    %495 = vmatpush1.msra.mxu0 0.0
    %496 = vmatprep.subr.mxu0 0.0
    %497 = vmatpush1.msra.mxu0 0.0
    %498 = vmatprep.subr.mxu0 0.0
    %499 = vmatpush1.msra.mxu0 0.0
    %500 = vmatprep.subr.mxu0 0.0
    %501 = vmatpush1.msra.mxu0 0.0
    %502 = vmatprep.subr.mxu0 0.0
    %503 = vmatpush1.msra.mxu0 0.0
    %504 = vmatprep.subr.mxu0 0.0
    %505 = vmatpush1.msra.mxu0 %v388
    %506 = vmatprep.subr.mxu0 0.0
    %507 = vmatpush1.msra.mxu0 %v387
    %508 = vmatprep.subr.mxu0 0.0
    %509 = vmatpush1.msra.mxu0 %v386
    %510 = vmatprep.subr.mxu0 0.0
    %511 = vmatpush1.msra.mxu0 %v385
    %512 = vmatprep.subr.mxu0 0.0
    %513 = vmatpush2.msra.mxu0 0.0
    %514 = vmatprep.subr.mxu0 0.0
    %515 = vmatpush2.msra.mxu0 0.0
    %516 = vmatprep.subr.mxu0 0.0
    %517 = vmatpush2.msra.mxu0 0.0
    %518 = vmatprep.subr.mxu0 0.0
    %519 = vmatpush2.msra.mxu0 0.0
    %520 = vmatprep.subr.mxu0 0.0
    %521 = vmatpush2.msra.mxu0 0.0
    %522 = vmatprep.subr.mxu0 0.0
    %523 = vmatpush2.msra.mxu0 0.0
    %524 = vmatprep.subr.mxu0 0.0
    %525 = vmatpush2.msra.mxu0 0.0
    %526 = vmatprep.subr.mxu0 0.0
    %527 = vmatpush2.msra.mxu0 0.0
    %528 = vmatprep.subr.mxu0 0.0
    %529 = vmatpush2.msra.mxu0 0.0
    %530 = vmatprep.subr.mxu0 0.0
    %531 = vmatpush2.msra.mxu0 0.0
    %532 = vmatprep.subr.mxu0 0.0
    %533 = vmatpush2.msra.mxu0 0.0
    %534 = vmatprep.subr.mxu0 0.0
    %535 = vmatpush2.msra.mxu0 0.0
    %536 = vmatprep.subr.mxu0 0.0
    %537 = vmatpush2.msra.mxu0 0.0
    %538 = vmatprep.subr.mxu0 0.0
    %539 = vmatpush2.msra.mxu0 0.0
    %540 = vmatprep.subr.mxu0 0.0
    %541 = vmatpush2.msra.mxu0 0.0
    %542 = vmatprep.subr.mxu0 0.0
    %543 = vmatpush2.msra.mxu0 0.0
    %544 = vmatprep.mubr.f32.mxu0 0.0
    %545 = vmatmul.mubr.f32.gmra.mxu0 %v476
    %v546 = vpop.f32.mrf.mxu0
    %v547 = vadd.f32 0.0, %v546
    %v548 = vpop.f32.mrf.mxu0
    %549 = vmatprep.mubr.f32.mxu0 0.0
    %550 = vmatmul.mubr.f32.gmra.mxu0 %v478
    %v551 = vpop.f32.mrf.mxu0
    %v552 = vadd.f32 0.0, %v551
    %v553 = vpop.f32.mrf.mxu0
    %554 = vdwg.mxu0
    %v555 = vmul.f32 %v389, %v389
    %v556 = vmul.f32 %v390, %v390
    %v558 = vsel %vm255, %v555, 0
    %v561 = vsel %vm255, %v556, 0
    %563 = vmatprep.subr.mxu0 0.0
    %564 = vmatpush1.msra.mxu0 0.0
    %565 = vmatprep.subr.mxu0 0.0
    %566 = vmatpush1.msra.mxu0 0.0
    %567 = vmatprep.subr.mxu0 0.0
    %568 = vmatpush1.msra.mxu0 0.0
    %569 = vmatprep.subr.mxu0 0.0
    %570 = vmatpush1.msra.mxu0 0.0
    %571 = vmatprep.subr.mxu0 0.0
    %572 = vmatpush1.msra.mxu0 0.0
    %573 = vmatprep.subr.mxu0 0.0
    %574 = vmatpush1.msra.mxu0 0.0
    %575 = vmatprep.subr.mxu0 0.0
    %576 = vmatpush1.msra.mxu0 0.0
    %577 = vmatprep.subr.mxu0 0.0
    %578 = vmatpush1.msra.mxu0 0.0
    %579 = vmatprep.subr.mxu0 0.0
    %580 = vmatpush1.msra.mxu0 0.0
    %581 = vmatprep.subr.mxu0 0.0
    %582 = vmatpush1.msra.mxu0 0.0
    %583 = vmatprep.subr.mxu0 0.0
    %584 = vmatpush1.msra.mxu0 0.0
    %585 = vmatprep.subr.mxu0 0.0
    %586 = vmatpush1.msra.mxu0 0.0
    %587 = vmatprep.subr.mxu0 0.0
    %588 = vmatpush1.msra.mxu0 %v60
    %589 = vmatprep.subr.mxu0 0.0
    %590 = vmatpush1.msra.mxu0 %v59
    %591 = vmatprep.subr.mxu0 0.0
    %592 = vmatpush1.msra.mxu0 %v58
    %593 = vmatprep.subr.mxu0 0.0
    %594 = vmatpush1.msra.mxu0 %v57
    %595 = vmatprep.subr.mxu0 0.0
    %596 = vmatpush2.msra.mxu0 0.0
    %597 = vmatprep.subr.mxu0 0.0
    %598 = vmatpush2.msra.mxu0 0.0
    %599 = vmatprep.subr.mxu0 0.0
    %600 = vmatpush2.msra.mxu0 0.0
    %601 = vmatprep.subr.mxu0 0.0
    %602 = vmatpush2.msra.mxu0 0.0
    %603 = vmatprep.subr.mxu0 0.0
    %604 = vmatpush2.msra.mxu0 0.0
    %605 = vmatprep.subr.mxu0 0.0
    %606 = vmatpush2.msra.mxu0 0.0
    %607 = vmatprep.subr.mxu0 0.0
    %608 = vmatpush2.msra.mxu0 0.0
    %609 = vmatprep.subr.mxu0 0.0
    %610 = vmatpush2.msra.mxu0 0.0
    %611 = vmatprep.subr.mxu0 0.0
    %612 = vmatpush2.msra.mxu0 0.0
    %613 = vmatprep.subr.mxu0 0.0
    %614 = vmatpush2.msra.mxu0 0.0
    %615 = vmatprep.subr.mxu0 0.0
    %616 = vmatpush2.msra.mxu0 0.0
    %617 = vmatprep.subr.mxu0 0.0
    %618 = vmatpush2.msra.mxu0 0.0
    %619 = vmatprep.subr.mxu0 0.0
    %620 = vmatpush2.msra.mxu0 0.0
    %621 = vmatprep.subr.mxu0 0.0
    %622 = vmatpush2.msra.mxu0 0.0
    %623 = vmatprep.subr.mxu0 0.0
    %624 = vmatpush2.msra.mxu0 0.0
    %625 = vmatprep.subr.mxu0 0.0
    %626 = vmatpush2.msra.mxu0 0.0
    %627 = vmatprep.mubr.f32.mxu0 0.0
    %628 = vmatmul.mubr.f32.gmra.mxu0 %v558
    %v629 = vpop.f32.mrf.mxu0
    %v630 = vadd.f32 0.0, %v629
    %v631 = vpop.f32.mrf.mxu0
    %632 = vmatprep.mubr.f32.mxu0 0.0
    %633 = vmatmul.mubr.f32.gmra.mxu0 %v561
    %v634 = vpop.f32.mrf.mxu0
    %v635 = vadd.f32 0.0, %v634
    %v636 = vpop.f32.mrf.mxu0
    %637 = vdwg.mxu0
    %v638 = vmul.f32 %v630, 0.5
    %v639 = vmul.f32 %v635, 0.5
    %640 = vrot.lane.b32.xlu0 %v555, 96
    %v641 = vpop.permute.xlu0 %640
    %642 = vrot.lane.b32.xlu0 %v556, 96
    %v643 = vpop.permute.xlu0 %642
    %v644 = vsel %vm255, %v641, 0
    %v646 = vsel %vm255, %v643, 0
    %648 = vmatprep.subr.mxu0 0.0
    %649 = vmatpush1.msra.mxu0 0.0
    %650 = vmatprep.subr.mxu0 0.0
    %651 = vmatpush1.msra.mxu0 0.0
    %652 = vmatprep.subr.mxu0 0.0
    %653 = vmatpush1.msra.mxu0 0.0
    %654 = vmatprep.subr.mxu0 0.0
    %655 = vmatpush1.msra.mxu0 0.0
    %656 = vmatprep.subr.mxu0 0.0
    %657 = vmatpush1.msra.mxu0 0.0
    %658 = vmatprep.subr.mxu0 0.0
    %659 = vmatpush1.msra.mxu0 0.0
    %660 = vmatprep.subr.mxu0 0.0
    %661 = vmatpush1.msra.mxu0 0.0
    %662 = vmatprep.subr.mxu0 0.0
    %663 = vmatpush1.msra.mxu0 0.0
    %664 = vmatprep.subr.mxu0 0.0
    %665 = vmatpush1.msra.mxu0 0.0
    %666 = vmatprep.subr.mxu0 0.0
    %667 = vmatpush1.msra.mxu0 0.0
    %668 = vmatprep.subr.mxu0 0.0
    %669 = vmatpush1.msra.mxu0 0.0
    %670 = vmatprep.subr.mxu0 0.0
    %671 = vmatpush1.msra.mxu0 0.0
    %672 = vmatprep.subr.mxu0 0.0
    %673 = vmatpush1.msra.mxu0 %v60
    %674 = vmatprep.subr.mxu0 0.0
    %675 = vmatpush1.msra.mxu0 %v59
    %676 = vmatprep.subr.mxu0 0.0
    %677 = vmatpush1.msra.mxu0 %v58
    %678 = vmatprep.subr.mxu0 0.0
    %679 = vmatpush1.msra.mxu0 %v57
    %680 = vmatprep.subr.mxu0 0.0
    %681 = vmatpush2.msra.mxu0 0.0
    %682 = vmatprep.subr.mxu0 0.0
    %683 = vmatpush2.msra.mxu0 0.0
    %684 = vmatprep.subr.mxu0 0.0
    %685 = vmatpush2.msra.mxu0 0.0
    %686 = vmatprep.subr.mxu0 0.0
    %687 = vmatpush2.msra.mxu0 0.0
    %688 = vmatprep.subr.mxu0 0.0
    %689 = vmatpush2.msra.mxu0 0.0
    %690 = vmatprep.subr.mxu0 0.0
    %691 = vmatpush2.msra.mxu0 0.0
    %692 = vmatprep.subr.mxu0 0.0
    %693 = vmatpush2.msra.mxu0 0.0
    %694 = vmatprep.subr.mxu0 0.0
    %695 = vmatpush2.msra.mxu0 0.0
    %696 = vmatprep.subr.mxu0 0.0
    %697 = vmatpush2.msra.mxu0 0.0
    %698 = vmatprep.subr.mxu0 0.0
    %699 = vmatpush2.msra.mxu0 0.0
    %700 = vmatprep.subr.mxu0 0.0
    %701 = vmatpush2.msra.mxu0 0.0
    %702 = vmatprep.subr.mxu0 0.0
    %703 = vmatpush2.msra.mxu0 0.0
    %704 = vmatprep.subr.mxu0 0.0
    %705 = vmatpush2.msra.mxu0 0.0
    %706 = vmatprep.subr.mxu0 0.0
    %707 = vmatpush2.msra.mxu0 0.0
    %708 = vmatprep.subr.mxu0 0.0
    %709 = vmatpush2.msra.mxu0 0.0
    %710 = vmatprep.subr.mxu0 0.0
    %711 = vmatpush2.msra.mxu0 0.0
    %712 = vmatprep.mubr.f32.mxu0 0.0
    %713 = vmatmul.mubr.f32.gmra.mxu0 %v644
    %v714 = vpop.f32.mrf.mxu0
    %v715 = vadd.f32 0.0, %v714
    %v716 = vpop.f32.mrf.mxu0
    %717 = vmatprep.mubr.f32.mxu0 0.0
    %718 = vmatmul.mubr.f32.gmra.mxu0 %v646
    %v719 = vpop.f32.mrf.mxu0
    %v720 = vadd.f32 0.0, %v719
    %v721 = vpop.f32.mrf.mxu0
    %722 = vdwg.mxu0
    %v723 = vmul.f32 %v715, 0.5
    %v724 = vmul.f32 %v720, 0.5
    %v725 = vsub.f32 %v464, %v638
    %v726 = vsub.f32 %v469, %v639
    %v727 = vmul.f32 %v725, 1.442695
    %v728 = vpow.pop %v727
    %v729 = vmul.f32 %v726, 1.442695
    %v730 = vpow.pop %v729
    %v731 = vadd.f32 %v728, 1e-06
    %v732 = vadd.f32 %v730, 1e-06
    %v733 = vmul.f32 %v731, 0.25
    %v734 = vmul.f32 %v732, 0.25
    %v735 = vsub.f32 %v547, %v723
    %v736 = vsub.f32 %v552, %v724
    %v737 = vmul.f32 %v735, 1.442695
    %v738 = vpow.pop %v737
    %v739 = vmul.f32 %v736, 1.442695
    %v740 = vpow.pop %v739
    %v741 = vadd.f32 %v738, 1e-06
    %v742 = vadd.f32 %v740, 1e-06
    %v743 = vmul.f32 %v741, 0.25
    %v744 = vmul.f32 %v742, 0.25
    %v746 = vsel %vm79, %v29, 0
    %v749 = vsel %vm79, %v30, 0
    %v752 = vsel %vm79, %v31, 0
    %v755 = vsel %vm79, %v32, 0
    %v758 = vsel %vm79, %v33, 0
    %v761 = vsel %vm79, %v34, 0
    %v764 = vsel %vm79, %v35, 0
    %v767 = vsel %vm79, %v36, 0
    %769 = vmatprep.subr.mxu0 0.0
    %770 = vmatpush1.msra.mxu0 0.0
    %771 = vmatprep.subr.mxu0 0.0
    %772 = vmatpush1.msra.mxu0 0.0
    %773 = vmatprep.subr.mxu0 0.0
    %774 = vmatpush1.msra.mxu0 0.0
    %775 = vmatprep.subr.mxu0 0.0
    %776 = vmatpush1.msra.mxu0 0.0
    %777 = vmatprep.subr.mxu0 0.0
    %778 = vmatpush1.msra.mxu0 0.0
    %779 = vmatprep.subr.mxu0 0.0
    %780 = vmatpush1.msra.mxu0 0.0
    %781 = vmatprep.subr.mxu0 0.0
    %782 = vmatpush1.msra.mxu0 0.0
    %783 = vmatprep.subr.mxu0 0.0
    %784 = vmatpush1.msra.mxu0 0.0
    %785 = vmatprep.subr.mxu0 0.0
    %786 = vmatpush1.msra.mxu0 0.0
    %787 = vmatprep.subr.mxu0 0.0
    %788 = vmatpush1.msra.mxu0 0.0
    %789 = vmatprep.subr.mxu0 0.0
    %790 = vmatpush1.msra.mxu0 0.0
    %791 = vmatprep.subr.mxu0 0.0
    %792 = vmatpush1.msra.mxu0 0.0
    %793 = vmatprep.subr.mxu0 0.0
    %794 = vmatpush1.msra.mxu0 0.0
    %795 = vmatprep.subr.mxu0 0.0
    %796 = vmatpush1.msra.mxu0 0.0
    %797 = vmatprep.subr.mxu0 0.0
    %798 = vmatpush1.msra.mxu0 %v744
    %799 = vmatprep.subr.mxu0 0.0
    %800 = vmatpush1.msra.mxu0 %v743
    %801 = vmatprep.subr.mxu0 0.0
    %802 = vmatpush2.msra.mxu0 0.0
    %803 = vmatprep.subr.mxu0 0.0
    %804 = vmatpush2.msra.mxu0 0.0
    %805 = vmatprep.subr.mxu0 0.0
    %806 = vmatpush2.msra.mxu0 0.0
    %807 = vmatprep.subr.mxu0 0.0
    %808 = vmatpush2.msra.mxu0 0.0
    %809 = vmatprep.subr.mxu0 0.0
    %810 = vmatpush2.msra.mxu0 0.0
    %811 = vmatprep.subr.mxu0 0.0
    %812 = vmatpush2.msra.mxu0 0.0
    %813 = vmatprep.subr.mxu0 0.0
    %814 = vmatpush2.msra.mxu0 0.0
    %815 = vmatprep.subr.mxu0 0.0
    %816 = vmatpush2.msra.mxu0 0.0
    %817 = vmatprep.subr.mxu0 0.0
    %818 = vmatpush2.msra.mxu0 0.0
    %819 = vmatprep.subr.mxu0 0.0
    %820 = vmatpush2.msra.mxu0 0.0
    %821 = vmatprep.subr.mxu0 0.0
    %822 = vmatpush2.msra.mxu0 0.0
    %823 = vmatprep.subr.mxu0 0.0
    %824 = vmatpush2.msra.mxu0 0.0
    %825 = vmatprep.subr.mxu0 0.0
    %826 = vmatpush2.msra.mxu0 0.0
    %827 = vmatprep.subr.mxu0 0.0
    %828 = vmatpush2.msra.mxu0 0.0
    %829 = vmatprep.subr.mxu0 0.0
    %830 = vmatpush2.msra.mxu0 0.0
    %831 = vmatprep.subr.mxu0 0.0
    %832 = vmatpush2.msra.mxu0 0.0
    %833 = vmatprep.mubr.f32.mxu0 0.0
    %834 = vmatmul.mubr.f32.gmra.mxu0 %v746
    %v835 = vpop.f32.mrf.mxu0
    %v836 = vadd.f32 0.0, %v835
    %v837 = vpop.f32.mrf.mxu0
    %838 = vmatprep.mubr.f32.mxu0 0.0
    %839 = vmatmul.mubr.f32.gmra.mxu0 %v749
    %v840 = vpop.f32.mrf.mxu0
    %v841 = vadd.f32 0.0, %v840
    %v842 = vpop.f32.mrf.mxu0
    %843 = vmatprep.mubr.f32.mxu0 0.0
    %844 = vmatmul.mubr.f32.gmra.mxu0 %v752
    %v845 = vpop.f32.mrf.mxu0
    %v846 = vadd.f32 0.0, %v845
    %v847 = vpop.f32.mrf.mxu0
    %848 = vmatprep.mubr.f32.mxu0 0.0
    %849 = vmatmul.mubr.f32.gmra.mxu0 %v755
    %v850 = vpop.f32.mrf.mxu0
    %v851 = vadd.f32 0.0, %v850
    %v852 = vpop.f32.mrf.mxu0
    %853 = vmatprep.mubr.f32.mxu0 0.0
    %854 = vmatmul.mubr.f32.gmra.mxu0 %v758
    %v855 = vpop.f32.mrf.mxu0
    %v856 = vadd.f32 0.0, %v855
    %v857 = vpop.f32.mrf.mxu0
    %858 = vmatprep.mubr.f32.mxu0 0.0
    %859 = vmatmul.mubr.f32.gmra.mxu0 %v761
    %v860 = vpop.f32.mrf.mxu0
    %v861 = vadd.f32 0.0, %v860
    %v862 = vpop.f32.mrf.mxu0
    %863 = vmatprep.mubr.f32.mxu0 0.0
    %864 = vmatmul.mubr.f32.gmra.mxu0 %v764
    %v865 = vpop.f32.mrf.mxu0
    %v866 = vadd.f32 0.0, %v865
    %v867 = vpop.f32.mrf.mxu0
    %868 = vmatprep.mubr.f32.mxu0 0.0
    %869 = vmatmul.mubr.f32.gmra.mxu0 %v767
    %v870 = vpop.f32.mrf.mxu0
    %v871 = vadd.f32 0.0, %v870
    %v872 = vpop.f32.mrf.mxu0
    %873 = vdwg.mxu0
    %v874 = vmul.f32 %v836, %v37
    %v875 = vmul.f32 %v841, %v38
    %v876 = vmul.f32 %v846, %v39
    %v877 = vmul.f32 %v851, %v40
    %v878 = vmul.f32 %v856, %v41
    %v879 = vmul.f32 %v861, %v42
    %v880 = vmul.f32 %v866, %v43
    %v881 = vmul.f32 %v871, %v44
    %884 = vrot.lane.b32.xlu0 %v377, 64
    %v885 = vpop.permute.xlu0 %884
    %886 = vrot.lane.b32.xlu0 %v382, 64
    %v887 = vpop.permute.xlu0 %886
    %890 = vmatprep.subr.mxu0 0.0
    %891 = vmatpush1.msra.mxu0 0.0
    %892 = vmatprep.subr.mxu0 0.0
    %893 = vmatpush1.msra.mxu0 0.0
    %894 = vmatprep.subr.mxu0 0.0
    %895 = vmatpush1.msra.mxu0 0.0
    %896 = vmatprep.subr.mxu0 0.0
    %897 = vmatpush1.msra.mxu0 0.0
    %898 = vmatprep.subr.mxu0 0.0
    %899 = vmatpush1.msra.mxu0 0.0
    %900 = vmatprep.subr.mxu0 0.0
    %901 = vmatpush1.msra.mxu0 0.0
    %902 = vmatprep.subr.mxu0 0.0
    %903 = vmatpush1.msra.mxu0 0.0
    %904 = vmatprep.subr.mxu0 0.0
    %905 = vmatpush1.msra.mxu0 0.0
    %906 = vmatprep.subr.mxu0 0.0
    %907 = vmatpush1.msra.mxu0 0.0
    %908 = vmatprep.subr.mxu0 0.0
    %909 = vmatpush1.msra.mxu0 0.0
    %910 = vmatprep.subr.mxu0 0.0
    %911 = vmatpush1.msra.mxu0 0.0
    %912 = vmatprep.subr.mxu0 0.0
    %913 = vmatpush1.msra.mxu0 0.0
    %914 = vmatprep.subr.mxu0 0.0
    %915 = vmatpush1.msra.mxu0 0.0
    %916 = vmatprep.subr.mxu0 0.0
    %917 = vmatpush1.msra.mxu0 0.0
    %918 = vmatprep.subr.mxu0 0.0
    %919 = vmatpush1.msra.mxu0 %v887
    %920 = vmatprep.subr.mxu0 0.0
    %921 = vmatpush1.msra.mxu0 %v885
    %922 = vmatprep.subr.mxu0 0.0
    %923 = vmatpush2.msra.mxu0 0.0
    %924 = vmatprep.subr.mxu0 0.0
    %925 = vmatpush2.msra.mxu0 0.0
    %926 = vmatprep.subr.mxu0 0.0
    %927 = vmatpush2.msra.mxu0 0.0
    %928 = vmatprep.subr.mxu0 0.0
    %929 = vmatpush2.msra.mxu0 0.0
    %930 = vmatprep.subr.mxu0 0.0
    %931 = vmatpush2.msra.mxu0 0.0
    %932 = vmatprep.subr.mxu0 0.0
    %933 = vmatpush2.msra.mxu0 0.0
    %934 = vmatprep.subr.mxu0 0.0
    %935 = vmatpush2.msra.mxu0 0.0
    %936 = vmatprep.subr.mxu0 0.0
    %937 = vmatpush2.msra.mxu0 0.0
    %938 = vmatprep.subr.mxu0 0.0
    %939 = vmatpush2.msra.mxu0 0.0
    %940 = vmatprep.subr.mxu0 0.0
    %941 = vmatpush2.msra.mxu0 0.0
    %942 = vmatprep.subr.mxu0 0.0
    %943 = vmatpush2.msra.mxu0 0.0
    %944 = vmatprep.subr.mxu0 0.0
    %945 = vmatpush2.msra.mxu0 0.0
    %946 = vmatprep.subr.mxu0 0.0
    %947 = vmatpush2.msra.mxu0 0.0
    %948 = vmatprep.subr.mxu0 0.0
    %949 = vmatpush2.msra.mxu0 0.0
    %950 = vmatprep.subr.mxu0 0.0
    %951 = vmatpush2.msra.mxu0 0.0
    %952 = vmatprep.subr.mxu0 0.0
    %953 = vmatpush2.msra.mxu0 0.0
    %954 = vmatprep.mubr.f32.mxu0 0.0
    %955 = vmatmul.mubr.f32.gmra.mxu0 %v746
    %v956 = vpop.f32.mrf.mxu0
    %v957 = vadd.f32 0.0, %v956
    %v958 = vpop.f32.mrf.mxu0
    %959 = vmatprep.mubr.f32.mxu0 0.0
    %960 = vmatmul.mubr.f32.gmra.mxu0 %v749
    %v961 = vpop.f32.mrf.mxu0
    %v962 = vadd.f32 0.0, %v961
    %v963 = vpop.f32.mrf.mxu0
    %964 = vmatprep.mubr.f32.mxu0 0.0
    %965 = vmatmul.mubr.f32.gmra.mxu0 %v752
    %v966 = vpop.f32.mrf.mxu0
    %v967 = vadd.f32 0.0, %v966
    %v968 = vpop.f32.mrf.mxu0
    %969 = vmatprep.mubr.f32.mxu0 0.0
    %970 = vmatmul.mubr.f32.gmra.mxu0 %v755
    %v971 = vpop.f32.mrf.mxu0
    %v972 = vadd.f32 0.0, %v971
    %v973 = vpop.f32.mrf.mxu0
    %974 = vmatprep.mubr.f32.mxu0 0.0
    %975 = vmatmul.mubr.f32.gmra.mxu0 %v758
    %v976 = vpop.f32.mrf.mxu0
    %v977 = vadd.f32 0.0, %v976
    %v978 = vpop.f32.mrf.mxu0
    %979 = vmatprep.mubr.f32.mxu0 0.0
    %980 = vmatmul.mubr.f32.gmra.mxu0 %v761
    %v981 = vpop.f32.mrf.mxu0
    %v982 = vadd.f32 0.0, %v981
    %v983 = vpop.f32.mrf.mxu0
    %984 = vmatprep.mubr.f32.mxu0 0.0
    %985 = vmatmul.mubr.f32.gmra.mxu0 %v764
    %v986 = vpop.f32.mrf.mxu0
    %v987 = vadd.f32 0.0, %v986
    %v988 = vpop.f32.mrf.mxu0
    %989 = vmatprep.mubr.f32.mxu0 0.0
    %990 = vmatmul.mubr.f32.gmra.mxu0 %v767
    %v991 = vpop.f32.mrf.mxu0
    %v992 = vadd.f32 0.0, %v991
    %v993 = vpop.f32.mrf.mxu0
    %994 = vdwg.mxu0
    %v995 = vmul.f32 %v957, %v45
    %v996 = vmul.f32 %v962, %v46
    %v997 = vmul.f32 %v967, %v47
    %v998 = vmul.f32 %v972, %v48
    %v999 = vmul.f32 %v977, %v49
    %v1000 = vmul.f32 %v982, %v50
    %v1001 = vmul.f32 %v987, %v51
    %v1002 = vmul.f32 %v992, %v52
    %vm1003 = vcmask 523264
    %v1005 = vsel %vm1003, %v733, 0
    %v1008 = vsel %vm1003, %v734, 0
    %v1011 = vsel %vm1003, %v874, 0
    %v1014 = vsel %vm1003, %v875, 0
    %v1017 = vsel %vm1003, %v876, 0
    %v1020 = vsel %vm1003, %v877, 0
    %v1023 = vsel %vm1003, %v878, 0
    %v1026 = vsel %vm1003, %v879, 0
    %v1029 = vsel %vm1003, %v880, 0
    %v1032 = vsel %vm1003, %v881, 0
    %1034 = vmatprep.subr.mxu0 0.0
    %1035 = vmatpush1.xpose.msra.mxu0 0.0
    %1036 = vmatprep.subr.mxu0 0.0
    %1037 = vmatpush1.xpose.msra.mxu0 0.0
    %1038 = vmatprep.subr.mxu0 0.0
    %1039 = vmatpush1.xpose.msra.mxu0 0.0
    %1040 = vmatprep.subr.mxu0 0.0
    %1041 = vmatpush1.xpose.msra.mxu0 0.0
    %1042 = vmatprep.subr.mxu0 0.0
    %1043 = vmatpush1.xpose.msra.mxu0 0.0
    %1044 = vmatprep.subr.mxu0 0.0
    %1045 = vmatpush1.xpose.msra.mxu0 0.0
    %1046 = vmatprep.subr.mxu0 0.0
    %1047 = vmatpush1.xpose.msra.mxu0 0.0
    %1048 = vmatprep.subr.mxu0 0.0
    %1049 = vmatpush1.xpose.msra.mxu0 0.0
    %1050 = vmatprep.subr.mxu0 0.0
    %1051 = vmatpush1.xpose.msra.mxu0 %v1032
    %1052 = vmatprep.subr.mxu0 0.0
    %1053 = vmatpush1.xpose.msra.mxu0 %v1029
    %1054 = vmatprep.subr.mxu0 0.0
    %1055 = vmatpush1.xpose.msra.mxu0 %v1026
    %1056 = vmatprep.subr.mxu0 0.0
    %1057 = vmatpush1.xpose.msra.mxu0 %v1023
    %1058 = vmatprep.subr.mxu0 0.0
    %1059 = vmatpush1.xpose.msra.mxu0 %v1020
    %1060 = vmatprep.subr.mxu0 0.0
    %1061 = vmatpush1.xpose.msra.mxu0 %v1017
    %1062 = vmatprep.subr.mxu0 0.0
    %1063 = vmatpush1.xpose.msra.mxu0 %v1014
    %1064 = vmatprep.subr.mxu0 0.0
    %1065 = vmatpush1.xpose.msra.mxu0 %v1011
    %1066 = vmatprep.subr.mxu0 0.0
    %1067 = vmatpush2.xpose.msra.mxu0 0.0
    %1068 = vmatprep.subr.mxu0 0.0
    %1069 = vmatpush2.xpose.msra.mxu0 0.0
    %1070 = vmatprep.subr.mxu0 0.0
    %1071 = vmatpush2.xpose.msra.mxu0 0.0
    %1072 = vmatprep.subr.mxu0 0.0
    %1073 = vmatpush2.xpose.msra.mxu0 0.0
    %1074 = vmatprep.subr.mxu0 0.0
    %1075 = vmatpush2.xpose.msra.mxu0 0.0
    %1076 = vmatprep.subr.mxu0 0.0
    %1077 = vmatpush2.xpose.msra.mxu0 0.0
    %1078 = vmatprep.subr.mxu0 0.0
    %1079 = vmatpush2.xpose.msra.mxu0 0.0
    %1080 = vmatprep.subr.mxu0 0.0
    %1081 = vmatpush2.xpose.msra.mxu0 0.0
    %1082 = vmatprep.subr.mxu0 0.0
    %1083 = vmatpush2.xpose.msra.mxu0 0.0
    %1084 = vmatprep.subr.mxu0 0.0
    %1085 = vmatpush2.xpose.msra.mxu0 0.0
    %1086 = vmatprep.subr.mxu0 0.0
    %1087 = vmatpush2.xpose.msra.mxu0 0.0
    %1088 = vmatprep.subr.mxu0 0.0
    %1089 = vmatpush2.xpose.msra.mxu0 0.0
    %1090 = vmatprep.subr.mxu0 0.0
    %1091 = vmatpush2.xpose.msra.mxu0 0.0
    %1092 = vmatprep.subr.mxu0 0.0
    %1093 = vmatpush2.xpose.msra.mxu0 0.0
    %1094 = vmatprep.subr.mxu0 0.0
    %1095 = vmatpush2.xpose.msra.mxu0 0.0
    %1096 = vmatprep.subr.mxu0 0.0
    %1097 = vmatpush2.xpose.msra.mxu0 0.0
    %1098 = vmatprep.mubr.f32.mxu0 0.0
    %1099 = vmatmul.mubr.f32.gmra.mxu0 %v1005
    %v1100 = vpop.f32.mrf.mxu0
    %v1101 = vadd.f32 0.0, %v1100
    %v1102 = vpop.f32.mrf.mxu0
    %1103 = vmatprep.mubr.f32.mxu0 0.0
    %1104 = vmatmul.mubr.f32.gmra.mxu0 %v1008
    %v1105 = vpop.f32.mrf.mxu0
    %v1106 = vadd.f32 0.0, %v1105
    %v1107 = vpop.f32.mrf.mxu0
    %1108 = vdwg.mxu0
    %v1109 = vmul.f32 %v1101, %v53
    %v1110 = vmul.f32 %v1106, %v54
    %v1112 = vsel %vm1003, %v1109, 0
    %v1115 = vsel %vm1003, %v1110, 0
    %1117 = vmatprep.subr.mxu0 0.0
    %1118 = vmatpush1.msra.mxu0 0.0
    %1119 = vmatprep.subr.mxu0 0.0
    %1120 = vmatpush1.msra.mxu0 0.0
    %1121 = vmatprep.subr.mxu0 0.0
    %1122 = vmatpush1.msra.mxu0 0.0
    %1123 = vmatprep.subr.mxu0 0.0
    %1124 = vmatpush1.msra.mxu0 0.0
    %1125 = vmatprep.subr.mxu0 0.0
    %1126 = vmatpush1.msra.mxu0 0.0
    %1127 = vmatprep.subr.mxu0 0.0
    %1128 = vmatpush1.msra.mxu0 0.0
    %1129 = vmatprep.subr.mxu0 0.0
    %1130 = vmatpush1.msra.mxu0 0.0
    %1131 = vmatprep.subr.mxu0 0.0
    %1132 = vmatpush1.msra.mxu0 0.0
    %1133 = vmatprep.subr.mxu0 0.0
    %1134 = vmatpush1.msra.mxu0 %v1002
    %1135 = vmatprep.subr.mxu0 0.0
    %1136 = vmatpush1.msra.mxu0 %v1001
    %1137 = vmatprep.subr.mxu0 0.0
    %1138 = vmatpush1.msra.mxu0 %v1000
    %1139 = vmatprep.subr.mxu0 0.0
    %1140 = vmatpush1.msra.mxu0 %v999
    %1141 = vmatprep.subr.mxu0 0.0
    %1142 = vmatpush1.msra.mxu0 %v998
    %1143 = vmatprep.subr.mxu0 0.0
    %1144 = vmatpush1.msra.mxu0 %v997
    %1145 = vmatprep.subr.mxu0 0.0
    %1146 = vmatpush1.msra.mxu0 %v996
    %1147 = vmatprep.subr.mxu0 0.0
    %1148 = vmatpush1.msra.mxu0 %v995
    %1149 = vmatprep.subr.mxu0 0.0
    %1150 = vmatpush2.msra.mxu0 0.0
    %1151 = vmatprep.subr.mxu0 0.0
    %1152 = vmatpush2.msra.mxu0 0.0
    %1153 = vmatprep.subr.mxu0 0.0
    %1154 = vmatpush2.msra.mxu0 0.0
    %1155 = vmatprep.subr.mxu0 0.0
    %1156 = vmatpush2.msra.mxu0 0.0
    %1157 = vmatprep.subr.mxu0 0.0
    %1158 = vmatpush2.msra.mxu0 0.0
    %1159 = vmatprep.subr.mxu0 0.0
    %1160 = vmatpush2.msra.mxu0 0.0
    %1161 = vmatprep.subr.mxu0 0.0
    %1162 = vmatpush2.msra.mxu0 0.0
    %1163 = vmatprep.subr.mxu0 0.0
    %1164 = vmatpush2.msra.mxu0 0.0
    %1165 = vmatprep.subr.mxu0 0.0
    %1166 = vmatpush2.msra.mxu0 0.0
    %1167 = vmatprep.subr.mxu0 0.0
    %1168 = vmatpush2.msra.mxu0 0.0
    %1169 = vmatprep.subr.mxu0 0.0
    %1170 = vmatpush2.msra.mxu0 0.0
    %1171 = vmatprep.subr.mxu0 0.0
    %1172 = vmatpush2.msra.mxu0 0.0
    %1173 = vmatprep.subr.mxu0 0.0
    %1174 = vmatpush2.msra.mxu0 0.0
    %1175 = vmatprep.subr.mxu0 0.0
    %1176 = vmatpush2.msra.mxu0 0.0
    %1177 = vmatprep.subr.mxu0 0.0
    %1178 = vmatpush2.msra.mxu0 0.0
    %1179 = vmatprep.subr.mxu0 0.0
    %1180 = vmatpush2.msra.mxu0 0.0
    %1181 = vmatprep.mubr.f32.mxu0 0.0
    %1182 = vmatmul.mubr.f32.gmra.mxu0 %v1112
    %v1183 = vpop.f32.mrf.mxu0
    %v1184 = vadd.f32 0.0, %v1183
    %v1185 = vpop.f32.mrf.mxu0
    %1186 = vmatprep.mubr.f32.mxu0 0.0
    %1187 = vmatmul.mubr.f32.gmra.mxu0 %v1115
    %v1188 = vpop.f32.mrf.mxu0
    %v1189 = vadd.f32 0.0, %v1188
    %v1190 = vpop.f32.mrf.mxu0
    %1191 = vdwg.mxu0
    %1192 = vmatprep.subr.mxu0 0.0
    %1193 = vmatpush1.msra.mxu0 0.0
    %1194 = vmatprep.subr.mxu0 0.0
    %1195 = vmatpush1.msra.mxu0 0.0
    %1196 = vmatprep.subr.mxu0 0.0
    %1197 = vmatpush1.msra.mxu0 0.0
    %1198 = vmatprep.subr.mxu0 0.0
    %1199 = vmatpush1.msra.mxu0 0.0
    %1200 = vmatprep.subr.mxu0 0.0
    %1201 = vmatpush1.msra.mxu0 0.0
    %1202 = vmatprep.subr.mxu0 0.0
    %1203 = vmatpush1.msra.mxu0 0.0
    %1204 = vmatprep.subr.mxu0 0.0
    %1205 = vmatpush1.msra.mxu0 0.0
    %1206 = vmatprep.subr.mxu0 0.0
    %1207 = vmatpush1.msra.mxu0 0.0
    %1208 = vmatprep.subr.mxu0 0.0
    %1209 = vmatpush1.msra.mxu0 %v52
    %1210 = vmatprep.subr.mxu0 0.0
    %1211 = vmatpush1.msra.mxu0 %v51
    %1212 = vmatprep.subr.mxu0 0.0
    %1213 = vmatpush1.msra.mxu0 %v50
    %1214 = vmatprep.subr.mxu0 0.0
    %1215 = vmatpush1.msra.mxu0 %v49
    %1216 = vmatprep.subr.mxu0 0.0
    %1217 = vmatpush1.msra.mxu0 %v48
    %1218 = vmatprep.subr.mxu0 0.0
    %1219 = vmatpush1.msra.mxu0 %v47
    %1220 = vmatprep.subr.mxu0 0.0
    %1221 = vmatpush1.msra.mxu0 %v46
    %1222 = vmatprep.subr.mxu0 0.0
    %1223 = vmatpush1.msra.mxu0 %v45
    %1224 = vmatprep.subr.mxu0 0.0
    %1225 = vmatpush2.msra.mxu0 0.0
    %1226 = vmatprep.subr.mxu0 0.0
    %1227 = vmatpush2.msra.mxu0 0.0
    %1228 = vmatprep.subr.mxu0 0.0
    %1229 = vmatpush2.msra.mxu0 0.0
    %1230 = vmatprep.subr.mxu0 0.0
    %1231 = vmatpush2.msra.mxu0 0.0
    %1232 = vmatprep.subr.mxu0 0.0
    %1233 = vmatpush2.msra.mxu0 0.0
    %1234 = vmatprep.subr.mxu0 0.0
    %1235 = vmatpush2.msra.mxu0 0.0
    %1236 = vmatprep.subr.mxu0 0.0
    %1237 = vmatpush2.msra.mxu0 0.0
    %1238 = vmatprep.subr.mxu0 0.0
    %1239 = vmatpush2.msra.mxu0 0.0
    %1240 = vmatprep.subr.mxu0 0.0
    %1241 = vmatpush2.msra.mxu0 0.0
    %1242 = vmatprep.subr.mxu0 0.0
    %1243 = vmatpush2.msra.mxu0 0.0
    %1244 = vmatprep.subr.mxu0 0.0
    %1245 = vmatpush2.msra.mxu0 0.0
    %1246 = vmatprep.subr.mxu0 0.0
    %1247 = vmatpush2.msra.mxu0 0.0
    %1248 = vmatprep.subr.mxu0 0.0
    %1249 = vmatpush2.msra.mxu0 0.0
    %1250 = vmatprep.subr.mxu0 0.0
    %1251 = vmatpush2.msra.mxu0 0.0
    %1252 = vmatprep.subr.mxu0 0.0
    %1253 = vmatpush2.msra.mxu0 0.0
    %1254 = vmatprep.subr.mxu0 0.0
    %1255 = vmatpush2.msra.mxu0 0.0
    %1256 = vmatprep.mubr.f32.mxu0 0.0
    %1257 = vmatmul.mubr.f32.gmra.mxu0 %v1112
    %v1258 = vpop.f32.mrf.mxu0
    %v1259 = vadd.f32 0.0, %v1258
    %v1260 = vpop.f32.mrf.mxu0
    %1261 = vmatprep.mubr.f32.mxu0 0.0
    %1262 = vmatmul.mubr.f32.gmra.mxu0 %v1115
    %v1263 = vpop.f32.mrf.mxu0
    %v1264 = vadd.f32 0.0, %v1263
    %v1265 = vpop.f32.mrf.mxu0
    %1266 = vdwg.mxu0
    %v1267 = vrcp.pop %v1259
    %v1268 = vrcp.pop %v1264
    %v1269 = vmul.f32 %v1184, %v1267
    %v1270 = vmul.f32 %v1189, %v1268
    %v1271 = vld [vmem:[#allocation2 + $0x60] sm:$0xff]
    %v1272 = vld [vmem:[#allocation2 + $0x68] sm:$0xff]
    %v1273 = vld [vmem:[#allocation2 + $0x70] sm:$0xff]
    %v1274 = vld [vmem:[#allocation2 + $0x78] sm:$0xff]
    %v1276 = vsel %vm255, %v1269, 0
    %v1279 = vsel %vm255, %v1270, 0
    %1281 = vmatprep.subr.mxu0 0.0
    %1282 = vmatpush1.msra.mxu0 0.0
    %1283 = vmatprep.subr.mxu0 0.0
    %1284 = vmatpush1.msra.mxu0 0.0
    %1285 = vmatprep.subr.mxu0 0.0
    %1286 = vmatpush1.msra.mxu0 0.0
    %1287 = vmatprep.subr.mxu0 0.0
    %1288 = vmatpush1.msra.mxu0 0.0
    %1289 = vmatprep.subr.mxu0 0.0
    %1290 = vmatpush1.msra.mxu0 0.0
    %1291 = vmatprep.subr.mxu0 0.0
    %1292 = vmatpush1.msra.mxu0 0.0
    %1293 = vmatprep.subr.mxu0 0.0
    %1294 = vmatpush1.msra.mxu0 0.0
    %1295 = vmatprep.subr.mxu0 0.0
    %1296 = vmatpush1.msra.mxu0 0.0
    %1297 = vmatprep.subr.mxu0 0.0
    %1298 = vmatpush1.msra.mxu0 0.0
    %1299 = vmatprep.subr.mxu0 0.0
    %1300 = vmatpush1.msra.mxu0 0.0
    %1301 = vmatprep.subr.mxu0 0.0
    %1302 = vmatpush1.msra.mxu0 0.0
    %1303 = vmatprep.subr.mxu0 0.0
    %1304 = vmatpush1.msra.mxu0 0.0
    %1305 = vmatprep.subr.mxu0 0.0
    %1306 = vmatpush1.msra.mxu0 %v1274
    %1307 = vmatprep.subr.mxu0 0.0
    %1308 = vmatpush1.msra.mxu0 %v1273
    %1309 = vmatprep.subr.mxu0 0.0
    %1310 = vmatpush1.msra.mxu0 %v1272
    %1311 = vmatprep.subr.mxu0 0.0
    %1312 = vmatpush1.msra.mxu0 %v1271
    %1313 = vmatprep.subr.mxu0 0.0
    %1314 = vmatpush2.msra.mxu0 0.0
    %1315 = vmatprep.subr.mxu0 0.0
    %1316 = vmatpush2.msra.mxu0 0.0
    %1317 = vmatprep.subr.mxu0 0.0
    %1318 = vmatpush2.msra.mxu0 0.0
    %1319 = vmatprep.subr.mxu0 0.0
    %1320 = vmatpush2.msra.mxu0 0.0
    %1321 = vmatprep.subr.mxu0 0.0
    %1322 = vmatpush2.msra.mxu0 0.0
    %1323 = vmatprep.subr.mxu0 0.0
    %1324 = vmatpush2.msra.mxu0 0.0
    %1325 = vmatprep.subr.mxu0 0.0
    %1326 = vmatpush2.msra.mxu0 0.0
    %1327 = vmatprep.subr.mxu0 0.0
    %1328 = vmatpush2.msra.mxu0 0.0
    %1329 = vmatprep.subr.mxu0 0.0
    %1330 = vmatpush2.msra.mxu0 0.0
    %1331 = vmatprep.subr.mxu0 0.0
    %1332 = vmatpush2.msra.mxu0 0.0
    %1333 = vmatprep.subr.mxu0 0.0
    %1334 = vmatpush2.msra.mxu0 0.0
    %1335 = vmatprep.subr.mxu0 0.0
    %1336 = vmatpush2.msra.mxu0 0.0
    %1337 = vmatprep.subr.mxu0 0.0
    %1338 = vmatpush2.msra.mxu0 0.0
    %1339 = vmatprep.subr.mxu0 0.0
    %1340 = vmatpush2.msra.mxu0 0.0
    %1341 = vmatprep.subr.mxu0 0.0
    %1342 = vmatpush2.msra.mxu0 0.0
    %1343 = vmatprep.subr.mxu0 0.0
    %1344 = vmatpush2.msra.mxu0 0.0
    %1345 = vmatprep.mubr.f32.mxu0 0.0
    %1346 = vmatmul.mubr.f32.gmra.mxu0 %v1276
    %v1347 = vpop.f32.mrf.mxu0
    %v1348 = vadd.f32 0.0, %v1347
    %v1349 = vpop.f32.mrf.mxu0
    %1350 = vmatprep.mubr.f32.mxu0 0.0
    %1351 = vmatmul.mubr.f32.gmra.mxu0 %v1279
    %v1352 = vpop.f32.mrf.mxu0
    %v1353 = vadd.f32 0.0, %v1352
    %v1354 = vpop.f32.mrf.mxu0
    %1355 = vdwg.mxu0
    %v1356 = vadd.f32 %v251, %v1348
    %v1357 = vadd.f32 %v252, %v1353
    %v1358 = vld [vmem:[#allocation2 + $0x80] sm:$0x1]
    %v1359 = vlaneseq
    %v1360 = vshrl.u32 %v1359, 7
    %v1361 = vsub.s32 0, %v1360
    %v1362 = vrot.slane %v1358, %v1361
    %v1363 = vadd.f32 %v1356, %v1362
    %v1364 = vadd.f32 %v1357, %v1362
    %v1365 = vld [vmem:[#allocation2 + $0xa8] sm:$0x1]
    %v1366 = vld [vmem:[#allocation2 + $0xb0] sm:$0x1]
    %v1367 = vsel %vm255, %v1363, 0.0
    %1368 = vadd.xlane.f32.xlu0 %v1367
    %v1369 = vpop.xlane.xlu0 %1368
    %v1370 = vsel %vm255, %v1364, 0.0
    %1371 = vadd.xlane.f32.xlu0 %v1370
    %v1372 = vpop.xlane.xlu0 %1371
    %v1373 = vmul.f32 %v1369, %v262
    %v1374 = vmul.f32 %v1372, %v262
    %v1375 = vsub.f32 %v1363, %v1373
    %v1376 = vsub.f32 %v1364, %v1374
    %v1377 = vmul.f32 %v1375, %v1375
    %v1378 = vmul.f32 %v1376, %v1376
    %v1379 = vsel %vm255, %v1377, 0.0
    %1380 = vadd.xlane.f32.xlu0 %v1379
    %v1381 = vpop.xlane.xlu0 %1380
    %v1382 = vsel %vm255, %v1378, 0.0
    %1383 = vadd.xlane.f32.xlu0 %v1382
    %v1384 = vpop.xlane.xlu0 %1383
    %v1385 = vmul.f32 %v1381, %v262
    %v1386 = vmul.f32 %v1384, %v262
    %v1387 = vadd.f32 %v1385, 1e-05
    %v1388 = vadd.f32 %v1386, 1e-05
    %v1389 = vrsqrt.pop %v1387
    %v1390 = vrsqrt.pop %v1388
    %v1391 = vmul.f32 %v1375, %v1389
    %v1392 = vmul.f32 %v1376, %v1390
    %v1393 = vlaneseq
    %v1394 = vshrl.u32 %v1393, 7
    %v1395 = vsub.s32 0, %v1394
    %v1396 = vrot.slane %v1365, %v1395
    %v1397 = vmul.f32 %v1391, %v1396
    %v1398 = vmul.f32 %v1392, %v1396
    %v1399 = vlaneseq
    %v1400 = vshrl.u32 %v1399, 7
    %v1401 = vsub.s32 0, %v1400
    %v1402 = vrot.slane %v1366, %v1401
    %v1403 = vadd.f32 %v1397, %v1402
    %v1404 = vadd.f32 %v1398, %v1402
    %v1405 = vld [vmem:[#allocation2 + $0xb8] sm:$0xff]
    %v1406 = vld [vmem:[#allocation2 + $0xc0] sm:$0xff]
    %v1407 = vld [vmem:[#allocation2 + $0xc8] sm:$0xff]
    %v1408 = vld [vmem:[#allocation2 + $0xd0] sm:$0xff]
    %v1409 = vld [vmem:[#allocation2 + $0xd8] sm:$0x1]
    %v1410 = vld [vmem:[#allocation2 + $0xe0] sm:$0xff]
    %v1411 = vld [vmem:[#allocation2 + $0xe8] sm:$0xff]
    %v1412 = vld [vmem:[#allocation2 + $0xf0] sm:$0xff]
    %v1413 = vld [vmem:[#allocation2 + $0xf8] sm:$0xff]
    %v1414 = vld [vmem:[#allocation2 + $0x100] sm:$0xff]
    %v1415 = vld [vmem:[#allocation2 + $0x108] sm:$0xff]
    %v1416 = vld [vmem:[#allocation2 + $0x110] sm:$0xff]
    %v1417 = vld [vmem:[#allocation2 + $0x118] sm:$0xff]
    %v1418 = vld [vmem:[#allocation2 + $0x120] sm:$0xff]
    %v1419 = vld [vmem:[#allocation2 + $0x128] sm:$0xff]
    %v1420 = vld [vmem:[#allocation2 + $0x130] sm:$0xff]
    %v1421 = vld [vmem:[#allocation2 + $0x138] sm:$0xff]
    %v1422 = vld [vmem:[#allocation2 + $0x140] sm:$0xff]
    %v1423 = vld [vmem:[#allocation2 + $0x148] sm:$0xff]
    %v1424 = vld [vmem:[#allocation2 + $0x150] sm:$0xff]
    %v1425 = vld [vmem:[#allocation2 + $0x158] sm:$0xff]
    %v1426 = vld [vmem:[#allocation2 + $0x160] sm:$0x1]
    %v1427 = vlaneseq
    %v1428 = vshrl.u32 %v1427, 7
    %v1429 = vsub.s32 0, %v1428
    %v1430 = vrot.slane %v1409, %v1429
    %v1432 = vsel %vm255, %v1403, 0
    %v1435 = vsel %vm255, %v1404, 0
    %1437 = vmatprep.subr.mxu0 0.0
    %1438 = vmatpush1.msra.mxu0 0.0
    %1439 = vmatprep.subr.mxu0 0.0
    %1440 = vmatpush1.msra.mxu0 0.0
    %1441 = vmatprep.subr.mxu0 0.0
    %1442 = vmatpush1.msra.mxu0 0.0
    %1443 = vmatprep.subr.mxu0 0.0
    %1444 = vmatpush1.msra.mxu0 0.0
    %1445 = vmatprep.subr.mxu0 0.0
    %1446 = vmatpush1.msra.mxu0 0.0
    %1447 = vmatprep.subr.mxu0 0.0
    %1448 = vmatpush1.msra.mxu0 0.0
    %1449 = vmatprep.subr.mxu0 0.0
    %1450 = vmatpush1.msra.mxu0 0.0
    %1451 = vmatprep.subr.mxu0 0.0
    %1452 = vmatpush1.msra.mxu0 0.0
    %1453 = vmatprep.subr.mxu0 0.0
    %1454 = vmatpush1.msra.mxu0 0.0
    %1455 = vmatprep.subr.mxu0 0.0
    %1456 = vmatpush1.msra.mxu0 0.0
    %1457 = vmatprep.subr.mxu0 0.0
    %1458 = vmatpush1.msra.mxu0 0.0
    %1459 = vmatprep.subr.mxu0 0.0
    %1460 = vmatpush1.msra.mxu0 0.0
    %1461 = vmatprep.subr.mxu0 0.0
    %1462 = vmatpush1.msra.mxu0 %v1408
    %1463 = vmatprep.subr.mxu0 0.0
    %1464 = vmatpush1.msra.mxu0 %v1407
    %1465 = vmatprep.subr.mxu0 0.0
    %1466 = vmatpush1.msra.mxu0 %v1406
    %1467 = vmatprep.subr.mxu0 0.0
    %1468 = vmatpush1.msra.mxu0 %v1405
    %1469 = vmatprep.subr.mxu0 0.0
    %1470 = vmatpush2.msra.mxu0 0.0
    %1471 = vmatprep.subr.mxu0 0.0
    %1472 = vmatpush2.msra.mxu0 0.0
    %1473 = vmatprep.subr.mxu0 0.0
    %1474 = vmatpush2.msra.mxu0 0.0
    %1475 = vmatprep.subr.mxu0 0.0
    %1476 = vmatpush2.msra.mxu0 0.0
    %1477 = vmatprep.subr.mxu0 0.0
    %1478 = vmatpush2.msra.mxu0 0.0
    %1479 = vmatprep.subr.mxu0 0.0
    %1480 = vmatpush2.msra.mxu0 0.0
    %1481 = vmatprep.subr.mxu0 0.0
    %1482 = vmatpush2.msra.mxu0 0.0
    %1483 = vmatprep.subr.mxu0 0.0
    %1484 = vmatpush2.msra.mxu0 0.0
    %1485 = vmatprep.subr.mxu0 0.0
    %1486 = vmatpush2.msra.mxu0 0.0
    %1487 = vmatprep.subr.mxu0 0.0
    %1488 = vmatpush2.msra.mxu0 0.0
    %1489 = vmatprep.subr.mxu0 0.0
    %1490 = vmatpush2.msra.mxu0 0.0
    %1491 = vmatprep.subr.mxu0 0.0
    %1492 = vmatpush2.msra.mxu0 0.0
    %1493 = vmatprep.subr.mxu0 0.0
    %1494 = vmatpush2.msra.mxu0 0.0
    %1495 = vmatprep.subr.mxu0 0.0
    %1496 = vmatpush2.msra.mxu0 0.0
    %1497 = vmatprep.subr.mxu0 0.0
    %1498 = vmatpush2.msra.mxu0 0.0
    %1499 = vmatprep.subr.mxu0 0.0
    %1500 = vmatpush2.msra.mxu0 0.0
    %1501 = vmatprep.mubr.f32.mxu0 0.0
    %1502 = vmatmul.mubr.f32.gmra.mxu0 %v1432
    %v1503 = vpop.f32.mrf.mxu0
    %v1504 = vadd.f32 %v1430, %v1503
    %v1505 = vpop.f32.mrf.mxu0
    %1506 = vmatprep.mubr.f32.mxu0 0.0
    %1507 = vmatmul.mubr.f32.gmra.mxu0 %v1435
    %v1508 = vpop.f32.mrf.mxu0
    %v1509 = vadd.f32 %v1430, %v1508
    %v1510 = vpop.f32.mrf.mxu0
    %1511 = vdwg.mxu0
    %v1512 = vmul.f32 %v1504, %v1504
    %v1513 = vmul.f32 %v1509, %v1509
    %v1514 = vmul.f32 %v1504, %v1512
    %v1515 = vmul.f32 %v1509, %v1513
    %v1516 = vmul.f32 %v1514, 0.044715
    %v1517 = vmul.f32 %v1515, 0.044715
    %v1518 = vadd.f32 %v1504, %v1516
    %v1519 = vadd.f32 %v1509, %v1517
    %v1520 = vmul.f32 %v1518, 0.7978846
    %v1521 = vmul.f32 %v1519, 0.7978846
    %v1522 = vtanh.pop %v1520
    %v1523 = vtanh.pop %v1521
    %v1524 = vadd.f32 %v1522, 1.0
    %v1525 = vadd.f32 %v1523, 1.0
    %v1526 = vmul.f32 %v1524, 0.5
    %v1527 = vmul.f32 %v1525, 0.5
    %v1528 = vmul.f32 %v1504, %v1526
    %v1529 = vmul.f32 %v1509, %v1527
    %v1530 = vlaneseq
    %v1531 = vshrl.u32 %v1530, 7
    %v1532 = vsub.s32 0, %v1531
    %v1533 = vrot.slane %v1426, %v1532
    %1534 = vmatprep.subr.mxu0 0.0
    %1535 = vmatpush1.msra.mxu0 %v1425
    %1536 = vmatprep.subr.mxu0 0.0
    %1537 = vmatpush1.msra.mxu0 %v1424
    %1538 = vmatprep.subr.mxu0 0.0
    %1539 = vmatpush1.msra.mxu0 %v1423
    %1540 = vmatprep.subr.mxu0 0.0
    %1541 = vmatpush1.msra.mxu0 %v1422
    %1542 = vmatprep.subr.mxu0 0.0
    %1543 = vmatpush1.msra.mxu0 %v1421
    %1544 = vmatprep.subr.mxu0 0.0
    %1545 = vmatpush1.msra.mxu0 %v1420
    %1546 = vmatprep.subr.mxu0 0.0
    %1547 = vmatpush1.msra.mxu0 %v1419
    %1548 = vmatprep.subr.mxu0 0.0
    %1549 = vmatpush1.msra.mxu0 %v1418
    %1550 = vmatprep.subr.mxu0 0.0
    %1551 = vmatpush1.msra.mxu0 %v1417
    %1552 = vmatprep.subr.mxu0 0.0
    %1553 = vmatpush1.msra.mxu0 %v1416
    %1554 = vmatprep.subr.mxu0 0.0
    %1555 = vmatpush1.msra.mxu0 %v1415
    %1556 = vmatprep.subr.mxu0 0.0
    %1557 = vmatpush1.msra.mxu0 %v1414
    %1558 = vmatprep.subr.mxu0 0.0
    %1559 = vmatpush1.msra.mxu0 %v1413
    %1560 = vmatprep.subr.mxu0 0.0
    %1561 = vmatpush1.msra.mxu0 %v1412
    %1562 = vmatprep.subr.mxu0 0.0
    %1563 = vmatpush1.msra.mxu0 %v1411
    %1564 = vmatprep.subr.mxu0 0.0
    %1565 = vmatpush1.msra.mxu0 %v1410
    %1566 = vmatprep.subr.mxu0 0.0
    %1567 = vmatpush2.msra.mxu0 0.0
    %1568 = vmatprep.subr.mxu0 0.0
    %1569 = vmatpush2.msra.mxu0 0.0
    %1570 = vmatprep.subr.mxu0 0.0
    %1571 = vmatpush2.msra.mxu0 0.0
    %1572 = vmatprep.subr.mxu0 0.0
    %1573 = vmatpush2.msra.mxu0 0.0
    %1574 = vmatprep.subr.mxu0 0.0
    %1575 = vmatpush2.msra.mxu0 0.0
    %1576 = vmatprep.subr.mxu0 0.0
    %1577 = vmatpush2.msra.mxu0 0.0
    %1578 = vmatprep.subr.mxu0 0.0
    %1579 = vmatpush2.msra.mxu0 0.0
    %1580 = vmatprep.subr.mxu0 0.0
    %1581 = vmatpush2.msra.mxu0 0.0
    %1582 = vmatprep.subr.mxu0 0.0
    %1583 = vmatpush2.msra.mxu0 0.0
    %1584 = vmatprep.subr.mxu0 0.0
    %1585 = vmatpush2.msra.mxu0 0.0
    %1586 = vmatprep.subr.mxu0 0.0
    %1587 = vmatpush2.msra.mxu0 0.0
    %1588 = vmatprep.subr.mxu0 0.0
    %1589 = vmatpush2.msra.mxu0 0.0
    %1590 = vmatprep.subr.mxu0 0.0
    %1591 = vmatpush2.msra.mxu0 0.0
    %1592 = vmatprep.subr.mxu0 0.0
    %1593 = vmatpush2.msra.mxu0 0.0
    %1594 = vmatprep.subr.mxu0 0.0
    %1595 = vmatpush2.msra.mxu0 0.0
    %1596 = vmatprep.subr.mxu0 0.0
    %1597 = vmatpush2.msra.mxu0 0.0
    %1598 = vmatprep.mubr.f32.mxu0 0.0
    %1599 = vmatmul.mubr.f32.gmra.mxu0 %v1528
    %v1600 = vpop.f32.mrf.mxu0
    %v1601 = vadd.f32 %v1533, %v1600
    %v1602 = vpop.f32.mrf.mxu0
    %1603 = vmatprep.mubr.f32.mxu0 0.0
    %1604 = vmatmul.mubr.f32.gmra.mxu0 %v1529
    %v1605 = vpop.f32.mrf.mxu0
    %v1606 = vadd.f32 %v1533, %v1605
    %v1607 = vpop.f32.mrf.mxu0
    %1608 = vdwg.mxu0
    %v1609 = vadd.f32 %v1363, %v1601
    %v1610 = vadd.f32 %v1364, %v1606
    %v1611 = vld [vmem:[#allocation2 + $0x168] sm:$0x1]
    %v1612 = vld [vmem:[#allocation2 + $0x170] sm:$0x1]
    %v1613 = vsel %vm255, %v1609, 0.0
    %1614 = vadd.xlane.f32.xlu0 %v1613
    %v1615 = vpop.xlane.xlu0 %1614
    %v1616 = vsel %vm255, %v1610, 0.0
    %1617 = vadd.xlane.f32.xlu0 %v1616
    %v1618 = vpop.xlane.xlu0 %1617
    %v1619 = vmul.f32 %v1615, %v262
    %v1620 = vmul.f32 %v1618, %v262
    %v1621 = vsub.f32 %v1609, %v1619
    %v1622 = vsub.f32 %v1610, %v1620
    %v1623 = vmul.f32 %v1621, %v1621
    %v1624 = vmul.f32 %v1622, %v1622
    %v1625 = vsel %vm255, %v1623, 0.0
    %1626 = vadd.xlane.f32.xlu0 %v1625
    %v1627 = vpop.xlane.xlu0 %1626
    %v1628 = vsel %vm255, %v1624, 0.0
    %1629 = vadd.xlane.f32.xlu0 %v1628
    %v1630 = vpop.xlane.xlu0 %1629
    %v1631 = vmul.f32 %v1627, %v262
    %v1632 = vmul.f32 %v1630, %v262
    %v1633 = vadd.f32 %v1631, 1e-05
    %v1634 = vadd.f32 %v1632, 1e-05
    %v1635 = vrsqrt.pop %v1633
    %v1636 = vrsqrt.pop %v1634
    %v1637 = vmul.f32 %v1621, %v1635
    %v1638 = vmul.f32 %v1622, %v1636
    %v1639 = vlaneseq
    %v1640 = vshrl.u32 %v1639, 7
    %v1641 = vsub.s32 0, %v1640
    %v1642 = vrot.slane %v1611, %v1641
    %v1643 = vmul.f32 %v1637, %v1642
    %v1644 = vmul.f32 %v1638, %v1642
    %v1645 = vlaneseq
    %v1646 = vshrl.u32 %v1645, 7
    %v1647 = vsub.s32 0, %v1646
    %v1648 = vrot.slane %v1612, %v1647
    %v1649 = vadd.f32 %v1643, %v1648
    %v1650 = vadd.f32 %v1644, %v1648
    %v1651 = vld [vmem:[#allocation2 + $0x178] sm:$0xff]
    %v1652 = vld [vmem:[#allocation2 + $0x180] sm:$0xff]
    %v1653 = vld [vmem:[#allocation2 + $0x188] sm:$0xff]
    %v1654 = vld [vmem:[#allocation2 + $0x190] sm:$0xff]
    %v1655 = vld [vmem:[#allocation2 + $0x198] sm:$0x1]
    %v1656 = vlaneseq
    %v1657 = vshrl.u32 %v1656, 7
    %v1658 = vsub.s32 0, %v1657
    %v1659 = vrot.slane %v1655, %v1658
    %v1661 = vsel %vm255, %v1649, 0
    %v1664 = vsel %vm255, %v1650, 0
    %1666 = vmatprep.subr.mxu0 0.0
    %1667 = vmatpush1.msra.mxu0 0.0
    %1668 = vmatprep.subr.mxu0 0.0
    %1669 = vmatpush1.msra.mxu0 0.0
    %1670 = vmatprep.subr.mxu0 0.0
    %1671 = vmatpush1.msra.mxu0 0.0
    %1672 = vmatprep.subr.mxu0 0.0
    %1673 = vmatpush1.msra.mxu0 0.0
    %1674 = vmatprep.subr.mxu0 0.0
    %1675 = vmatpush1.msra.mxu0 0.0
    %1676 = vmatprep.subr.mxu0 0.0
    %1677 = vmatpush1.msra.mxu0 0.0
    %1678 = vmatprep.subr.mxu0 0.0
    %1679 = vmatpush1.msra.mxu0 0.0
    %1680 = vmatprep.subr.mxu0 0.0
    %1681 = vmatpush1.msra.mxu0 0.0
    %1682 = vmatprep.subr.mxu0 0.0
    %1683 = vmatpush1.msra.mxu0 0.0
    %1684 = vmatprep.subr.mxu0 0.0
    %1685 = vmatpush1.msra.mxu0 0.0
    %1686 = vmatprep.subr.mxu0 0.0
    %1687 = vmatpush1.msra.mxu0 0.0
    %1688 = vmatprep.subr.mxu0 0.0
    %1689 = vmatpush1.msra.mxu0 0.0
    %1690 = vmatprep.subr.mxu0 0.0
    %1691 = vmatpush1.msra.mxu0 %v1654
    %1692 = vmatprep.subr.mxu0 0.0
    %1693 = vmatpush1.msra.mxu0 %v1653
    %1694 = vmatprep.subr.mxu0 0.0
    %1695 = vmatpush1.msra.mxu0 %v1652
    %1696 = vmatprep.subr.mxu0 0.0
    %1697 = vmatpush1.msra.mxu0 %v1651
    %1698 = vmatprep.subr.mxu0 0.0
    %1699 = vmatpush2.msra.mxu0 0.0
    %1700 = vmatprep.subr.mxu0 0.0
    %1701 = vmatpush2.msra.mxu0 0.0
    %1702 = vmatprep.subr.mxu0 0.0
    %1703 = vmatpush2.msra.mxu0 0.0
    %1704 = vmatprep.subr.mxu0 0.0
    %1705 = vmatpush2.msra.mxu0 0.0
    %1706 = vmatprep.subr.mxu0 0.0
    %1707 = vmatpush2.msra.mxu0 0.0
    %1708 = vmatprep.subr.mxu0 0.0
    %1709 = vmatpush2.msra.mxu0 0.0
    %1710 = vmatprep.subr.mxu0 0.0
    %1711 = vmatpush2.msra.mxu0 0.0
    %1712 = vmatprep.subr.mxu0 0.0
    %1713 = vmatpush2.msra.mxu0 0.0
    %1714 = vmatprep.subr.mxu0 0.0
    %1715 = vmatpush2.msra.mxu0 0.0
    %1716 = vmatprep.subr.mxu0 0.0
    %1717 = vmatpush2.msra.mxu0 0.0
    %1718 = vmatprep.subr.mxu0 0.0
    %1719 = vmatpush2.msra.mxu0 0.0
    %1720 = vmatprep.subr.mxu0 0.0
    %1721 = vmatpush2.msra.mxu0 0.0
    %1722 = vmatprep.subr.mxu0 0.0
    %1723 = vmatpush2.msra.mxu0 0.0
    %1724 = vmatprep.subr.mxu0 0.0
    %1725 = vmatpush2.msra.mxu0 0.0
    %1726 = vmatprep.subr.mxu0 0.0
    %1727 = vmatpush2.msra.mxu0 0.0
    %1728 = vmatprep.subr.mxu0 0.0
    %1729 = vmatpush2.msra.mxu0 0.0
    %1730 = vmatprep.mubr.f32.mxu0 0.0
    %1731 = vmatmul.mubr.f32.gmra.mxu0 %v1661
    %v1732 = vpop.f32.mrf.mxu0
    %v1733 = vadd.f32 %v1659, %v1732
    %v1734 = vpop.f32.mrf.mxu0
    %1735 = vmatprep.mubr.f32.mxu0 0.0
    %1736 = vmatmul.mubr.f32.gmra.mxu0 %v1664
    %v1737 = vpop.f32.mrf.mxu0
    %v1738 = vadd.f32 %v1659, %v1737
    %v1739 = vpop.f32.mrf.mxu0
    %1740 = vdwg.mxu0
    %v1741 = vld [vmem:[#allocation2 + $0x1c8] sm:$0xff]
    %v1742 = vld [vmem:[#allocation2 + $0x1d0] sm:$0xff]
    %v1743 = vld [vmem:[#allocation2 + $0x1d8] sm:$0xff]
    %v1744 = vld [vmem:[#allocation2 + $0x1e0] sm:$0xff]
    %v1745 = vmul.f32 %v1733, 0.59460354
    %v1746 = vmul.f32 %v1738, 0.59460354
    %v1748 = vsel %vm255, %v1745, 0
    %v1751 = vsel %vm255, %v1746, 0
    %1753 = vmatprep.subr.mxu0 0.0
    %1754 = vmatpush1.msra.mxu0 0.0
    %1755 = vmatprep.subr.mxu0 0.0
    %1756 = vmatpush1.msra.mxu0 0.0
    %1757 = vmatprep.subr.mxu0 0.0
    %1758 = vmatpush1.msra.mxu0 0.0
    %1759 = vmatprep.subr.mxu0 0.0
    %1760 = vmatpush1.msra.mxu0 0.0
    %1761 = vmatprep.subr.mxu0 0.0
    %1762 = vmatpush1.msra.mxu0 0.0
    %1763 = vmatprep.subr.mxu0 0.0
    %1764 = vmatpush1.msra.mxu0 0.0
    %1765 = vmatprep.subr.mxu0 0.0
    %1766 = vmatpush1.msra.mxu0 0.0
    %1767 = vmatprep.subr.mxu0 0.0
    %1768 = vmatpush1.msra.mxu0 0.0
    %1769 = vmatprep.subr.mxu0 0.0
    %1770 = vmatpush1.msra.mxu0 0.0
    %1771 = vmatprep.subr.mxu0 0.0
    %1772 = vmatpush1.msra.mxu0 0.0
    %1773 = vmatprep.subr.mxu0 0.0
    %1774 = vmatpush1.msra.mxu0 0.0
    %1775 = vmatprep.subr.mxu0 0.0
    %1776 = vmatpush1.msra.mxu0 0.0
    %1777 = vmatprep.subr.mxu0 0.0
    %1778 = vmatpush1.msra.mxu0 %v1744
    %1779 = vmatprep.subr.mxu0 0.0
    %1780 = vmatpush1.msra.mxu0 %v1743
    %1781 = vmatprep.subr.mxu0 0.0
    %1782 = vmatpush1.msra.mxu0 %v1742
    %1783 = vmatprep.subr.mxu0 0.0
    %1784 = vmatpush1.msra.mxu0 %v1741
    %1785 = vmatprep.subr.mxu0 0.0
    %1786 = vmatpush2.msra.mxu0 0.0
    %1787 = vmatprep.subr.mxu0 0.0
    %1788 = vmatpush2.msra.mxu0 0.0
    %1789 = vmatprep.subr.mxu0 0.0
    %1790 = vmatpush2.msra.mxu0 0.0
    %1791 = vmatprep.subr.mxu0 0.0
    %1792 = vmatpush2.msra.mxu0 0.0
    %1793 = vmatprep.subr.mxu0 0.0
    %1794 = vmatpush2.msra.mxu0 0.0
    %1795 = vmatprep.subr.mxu0 0.0
    %1796 = vmatpush2.msra.mxu0 0.0
    %1797 = vmatprep.subr.mxu0 0.0
    %1798 = vmatpush2.msra.mxu0 0.0
    %1799 = vmatprep.subr.mxu0 0.0
    %1800 = vmatpush2.msra.mxu0 0.0
    %1801 = vmatprep.subr.mxu0 0.0
    %1802 = vmatpush2.msra.mxu0 0.0
    %1803 = vmatprep.subr.mxu0 0.0
    %1804 = vmatpush2.msra.mxu0 0.0
    %1805 = vmatprep.subr.mxu0 0.0
    %1806 = vmatpush2.msra.mxu0 0.0
    %1807 = vmatprep.subr.mxu0 0.0
    %1808 = vmatpush2.msra.mxu0 0.0
    %1809 = vmatprep.subr.mxu0 0.0
    %1810 = vmatpush2.msra.mxu0 0.0
    %1811 = vmatprep.subr.mxu0 0.0
    %1812 = vmatpush2.msra.mxu0 0.0
    %1813 = vmatprep.subr.mxu0 0.0
    %1814 = vmatpush2.msra.mxu0 0.0
    %1815 = vmatprep.subr.mxu0 0.0
    %1816 = vmatpush2.msra.mxu0 0.0
    %1817 = vmatprep.mubr.f32.mxu0 0.0
    %1818 = vmatmul.mubr.f32.gmra.mxu0 %v1748
    %v1819 = vpop.f32.mrf.mxu0
    %v1820 = vadd.f32 0.0, %v1819
    %v1821 = vpop.f32.mrf.mxu0
    %1822 = vmatprep.mubr.f32.mxu0 0.0
    %1823 = vmatmul.mubr.f32.gmra.mxu0 %v1751
    %v1824 = vpop.f32.mrf.mxu0
    %v1825 = vadd.f32 0.0, %v1824
    %v1826 = vpop.f32.mrf.mxu0
    %1827 = vdwg.mxu0
    %1828 = vrot.lane.b32.xlu0 %v1745, 96
    %v1829 = vpop.permute.xlu0 %1828
    %1830 = vrot.lane.b32.xlu0 %v1746, 96
    %v1831 = vpop.permute.xlu0 %1830
    %v1832 = vsel %vm255, %v1829, 0
    %v1834 = vsel %vm255, %v1831, 0
    %1836 = vmatprep.subr.mxu0 0.0
    %1837 = vmatpush1.msra.mxu0 0.0
    %1838 = vmatprep.subr.mxu0 0.0
    %1839 = vmatpush1.msra.mxu0 0.0
    %1840 = vmatprep.subr.mxu0 0.0
    %1841 = vmatpush1.msra.mxu0 0.0
    %1842 = vmatprep.subr.mxu0 0.0
    %1843 = vmatpush1.msra.mxu0 0.0
    %1844 = vmatprep.subr.mxu0 0.0
    %1845 = vmatpush1.msra.mxu0 0.0
    %1846 = vmatprep.subr.mxu0 0.0
    %1847 = vmatpush1.msra.mxu0 0.0
    %1848 = vmatprep.subr.mxu0 0.0
    %1849 = vmatpush1.msra.mxu0 0.0
    %1850 = vmatprep.subr.mxu0 0.0
    %1851 = vmatpush1.msra.mxu0 0.0
    %1852 = vmatprep.subr.mxu0 0.0
    %1853 = vmatpush1.msra.mxu0 0.0
    %1854 = vmatprep.subr.mxu0 0.0
    %1855 = vmatpush1.msra.mxu0 0.0
    %1856 = vmatprep.subr.mxu0 0.0
    %1857 = vmatpush1.msra.mxu0 0.0
    %1858 = vmatprep.subr.mxu0 0.0
    %1859 = vmatpush1.msra.mxu0 0.0
    %1860 = vmatprep.subr.mxu0 0.0
    %1861 = vmatpush1.msra.mxu0 %v1744
    %1862 = vmatprep.subr.mxu0 0.0
    %1863 = vmatpush1.msra.mxu0 %v1743
    %1864 = vmatprep.subr.mxu0 0.0
    %1865 = vmatpush1.msra.mxu0 %v1742
    %1866 = vmatprep.subr.mxu0 0.0
    %1867 = vmatpush1.msra.mxu0 %v1741
    %1868 = vmatprep.subr.mxu0 0.0
    %1869 = vmatpush2.msra.mxu0 0.0
    %1870 = vmatprep.subr.mxu0 0.0
    %1871 = vmatpush2.msra.mxu0 0.0
    %1872 = vmatprep.subr.mxu0 0.0
    %1873 = vmatpush2.msra.mxu0 0.0
    %1874 = vmatprep.subr.mxu0 0.0
    %1875 = vmatpush2.msra.mxu0 0.0
    %1876 = vmatprep.subr.mxu0 0.0
    %1877 = vmatpush2.msra.mxu0 0.0
    %1878 = vmatprep.subr.mxu0 0.0
    %1879 = vmatpush2.msra.mxu0 0.0
    %1880 = vmatprep.subr.mxu0 0.0
    %1881 = vmatpush2.msra.mxu0 0.0
    %1882 = vmatprep.subr.mxu0 0.0
    %1883 = vmatpush2.msra.mxu0 0.0
    %1884 = vmatprep.subr.mxu0 0.0
    %1885 = vmatpush2.msra.mxu0 0.0
    %1886 = vmatprep.subr.mxu0 0.0
    %1887 = vmatpush2.msra.mxu0 0.0
    %1888 = vmatprep.subr.mxu0 0.0
    %1889 = vmatpush2.msra.mxu0 0.0
    %1890 = vmatprep.subr.mxu0 0.0
    %1891 = vmatpush2.msra.mxu0 0.0
    %1892 = vmatprep.subr.mxu0 0.0
    %1893 = vmatpush2.msra.mxu0 0.0
    %1894 = vmatprep.subr.mxu0 0.0
    %1895 = vmatpush2.msra.mxu0 0.0
    %1896 = vmatprep.subr.mxu0 0.0
    %1897 = vmatpush2.msra.mxu0 0.0
    %1898 = vmatprep.subr.mxu0 0.0
    %1899 = vmatpush2.msra.mxu0 0.0
    %1900 = vmatprep.mubr.f32.mxu0 0.0
    %1901 = vmatmul.mubr.f32.gmra.mxu0 %v1832
    %v1902 = vpop.f32.mrf.mxu0
    %v1903 = vadd.f32 0.0, %v1902
    %v1904 = vpop.f32.mrf.mxu0
    %1905 = vmatprep.mubr.f32.mxu0 0.0
    %1906 = vmatmul.mubr.f32.gmra.mxu0 %v1834
    %v1907 = vpop.f32.mrf.mxu0
    %v1908 = vadd.f32 0.0, %v1907
    %v1909 = vpop.f32.mrf.mxu0
    %1910 = vdwg.mxu0
    %v1911 = vmul.f32 %v1745, %v1745
    %v1912 = vmul.f32 %v1746, %v1746
    %v1914 = vsel %vm255, %v1911, 0
    %v1917 = vsel %vm255, %v1912, 0
    %1919 = vmatprep.subr.mxu0 0.0
    %1920 = vmatpush1.msra.mxu0 0.0
    %1921 = vmatprep.subr.mxu0 0.0
    %1922 = vmatpush1.msra.mxu0 0.0
    %1923 = vmatprep.subr.mxu0 0.0
    %1924 = vmatpush1.msra.mxu0 0.0
    %1925 = vmatprep.subr.mxu0 0.0
    %1926 = vmatpush1.msra.mxu0 0.0
    %1927 = vmatprep.subr.mxu0 0.0
    %1928 = vmatpush1.msra.mxu0 0.0
    %1929 = vmatprep.subr.mxu0 0.0
    %1930 = vmatpush1.msra.mxu0 0.0
    %1931 = vmatprep.subr.mxu0 0.0
    %1932 = vmatpush1.msra.mxu0 0.0
    %1933 = vmatprep.subr.mxu0 0.0
    %1934 = vmatpush1.msra.mxu0 0.0
    %1935 = vmatprep.subr.mxu0 0.0
    %1936 = vmatpush1.msra.mxu0 0.0
    %1937 = vmatprep.subr.mxu0 0.0
    %1938 = vmatpush1.msra.mxu0 0.0
    %1939 = vmatprep.subr.mxu0 0.0
    %1940 = vmatpush1.msra.mxu0 0.0
    %1941 = vmatprep.subr.mxu0 0.0
    %1942 = vmatpush1.msra.mxu0 0.0
    %1943 = vmatprep.subr.mxu0 0.0
    %1944 = vmatpush1.msra.mxu0 %v60
    %1945 = vmatprep.subr.mxu0 0.0
    %1946 = vmatpush1.msra.mxu0 %v59
    %1947 = vmatprep.subr.mxu0 0.0
    %1948 = vmatpush1.msra.mxu0 %v58
    %1949 = vmatprep.subr.mxu0 0.0
    %1950 = vmatpush1.msra.mxu0 %v57
    %1951 = vmatprep.subr.mxu0 0.0
    %1952 = vmatpush2.msra.mxu0 0.0
    %1953 = vmatprep.subr.mxu0 0.0
    %1954 = vmatpush2.msra.mxu0 0.0
    %1955 = vmatprep.subr.mxu0 0.0
    %1956 = vmatpush2.msra.mxu0 0.0
    %1957 = vmatprep.subr.mxu0 0.0
    %1958 = vmatpush2.msra.mxu0 0.0
    %1959 = vmatprep.subr.mxu0 0.0
    %1960 = vmatpush2.msra.mxu0 0.0
    %1961 = vmatprep.subr.mxu0 0.0
    %1962 = vmatpush2.msra.mxu0 0.0
    %1963 = vmatprep.subr.mxu0 0.0
    %1964 = vmatpush2.msra.mxu0 0.0
    %1965 = vmatprep.subr.mxu0 0.0
    %1966 = vmatpush2.msra.mxu0 0.0
    %1967 = vmatprep.subr.mxu0 0.0
    %1968 = vmatpush2.msra.mxu0 0.0
    %1969 = vmatprep.subr.mxu0 0.0
    %1970 = vmatpush2.msra.mxu0 0.0
    %1971 = vmatprep.subr.mxu0 0.0
    %1972 = vmatpush2.msra.mxu0 0.0
    %1973 = vmatprep.subr.mxu0 0.0
    %1974 = vmatpush2.msra.mxu0 0.0
    %1975 = vmatprep.subr.mxu0 0.0
    %1976 = vmatpush2.msra.mxu0 0.0
    %1977 = vmatprep.subr.mxu0 0.0
    %1978 = vmatpush2.msra.mxu0 0.0
    %1979 = vmatprep.subr.mxu0 0.0
    %1980 = vmatpush2.msra.mxu0 0.0
    %1981 = vmatprep.subr.mxu0 0.0
    %1982 = vmatpush2.msra.mxu0 0.0
    %1983 = vmatprep.mubr.f32.mxu0 0.0
    %1984 = vmatmul.mubr.f32.gmra.mxu0 %v1914
    %v1985 = vpop.f32.mrf.mxu0
    %v1986 = vadd.f32 0.0, %v1985
    %v1987 = vpop.f32.mrf.mxu0
    %1988 = vmatprep.mubr.f32.mxu0 0.0
    %1989 = vmatmul.mubr.f32.gmra.mxu0 %v1917
    %v1990 = vpop.f32.mrf.mxu0
    %v1991 = vadd.f32 0.0, %v1990
    %v1992 = vpop.f32.mrf.mxu0
    %1993 = vdwg.mxu0
    %v1994 = vmul.f32 %v1986, 0.5
    %v1995 = vmul.f32 %v1991, 0.5
    %1996 = vrot.lane.b32.xlu0 %v1911, 96
    %v1997 = vpop.permute.xlu0 %1996
    %1998 = vrot.lane.b32.xlu0 %v1912, 96
    %v1999 = vpop.permute.xlu0 %1998
    %v2000 = vsel %vm255, %v1997, 0
    %v2002 = vsel %vm255, %v1999, 0
    %2004 = vmatprep.subr.mxu0 0.0
    %2005 = vmatpush1.msra.mxu0 0.0
    %2006 = vmatprep.subr.mxu0 0.0
    %2007 = vmatpush1.msra.mxu0 0.0
    %2008 = vmatprep.subr.mxu0 0.0
    %2009 = vmatpush1.msra.mxu0 0.0
    %2010 = vmatprep.subr.mxu0 0.0
    %2011 = vmatpush1.msra.mxu0 0.0
    %2012 = vmatprep.subr.mxu0 0.0
    %2013 = vmatpush1.msra.mxu0 0.0
    %2014 = vmatprep.subr.mxu0 0.0
    %2015 = vmatpush1.msra.mxu0 0.0
    %2016 = vmatprep.subr.mxu0 0.0
    %2017 = vmatpush1.msra.mxu0 0.0
    %2018 = vmatprep.subr.mxu0 0.0
    %2019 = vmatpush1.msra.mxu0 0.0
    %2020 = vmatprep.subr.mxu0 0.0
    %2021 = vmatpush1.msra.mxu0 0.0
    %2022 = vmatprep.subr.mxu0 0.0
    %2023 = vmatpush1.msra.mxu0 0.0
    %2024 = vmatprep.subr.mxu0 0.0
    %2025 = vmatpush1.msra.mxu0 0.0
    %2026 = vmatprep.subr.mxu0 0.0
    %2027 = vmatpush1.msra.mxu0 0.0
    %2028 = vmatprep.subr.mxu0 0.0
    %2029 = vmatpush1.msra.mxu0 %v60
    %2030 = vmatprep.subr.mxu0 0.0
    %2031 = vmatpush1.msra.mxu0 %v59
    %2032 = vmatprep.subr.mxu0 0.0
    %2033 = vmatpush1.msra.mxu0 %v58
    %2034 = vmatprep.subr.mxu0 0.0
    %2035 = vmatpush1.msra.mxu0 %v57
    %2036 = vmatprep.subr.mxu0 0.0
    %2037 = vmatpush2.msra.mxu0 0.0
    %2038 = vmatprep.subr.mxu0 0.0
    %2039 = vmatpush2.msra.mxu0 0.0
    %2040 = vmatprep.subr.mxu0 0.0
    %2041 = vmatpush2.msra.mxu0 0.0
    %2042 = vmatprep.subr.mxu0 0.0
    %2043 = vmatpush2.msra.mxu0 0.0
    %2044 = vmatprep.subr.mxu0 0.0
    %2045 = vmatpush2.msra.mxu0 0.0
    %2046 = vmatprep.subr.mxu0 0.0
    %2047 = vmatpush2.msra.mxu0 0.0
    %2048 = vmatprep.subr.mxu0 0.0
    %2049 = vmatpush2.msra.mxu0 0.0
    %2050 = vmatprep.subr.mxu0 0.0
    %2051 = vmatpush2.msra.mxu0 0.0
    %2052 = vmatprep.subr.mxu0 0.0
    %2053 = vmatpush2.msra.mxu0 0.0
    %2054 = vmatprep.subr.mxu0 0.0
    %2055 = vmatpush2.msra.mxu0 0.0
    %2056 = vmatprep.subr.mxu0 0.0
    %2057 = vmatpush2.msra.mxu0 0.0
    %2058 = vmatprep.subr.mxu0 0.0
    %2059 = vmatpush2.msra.mxu0 0.0
    %2060 = vmatprep.subr.mxu0 0.0
    %2061 = vmatpush2.msra.mxu0 0.0
    %2062 = vmatprep.subr.mxu0 0.0
    %2063 = vmatpush2.msra.mxu0 0.0
    %2064 = vmatprep.subr.mxu0 0.0
    %2065 = vmatpush2.msra.mxu0 0.0
    %2066 = vmatprep.subr.mxu0 0.0
    %2067 = vmatpush2.msra.mxu0 0.0
    %2068 = vmatprep.mubr.f32.mxu0 0.0
    %2069 = vmatmul.mubr.f32.gmra.mxu0 %v2000
    %v2070 = vpop.f32.mrf.mxu0
    %v2071 = vadd.f32 0.0, %v2070
    %v2072 = vpop.f32.mrf.mxu0
    %2073 = vmatprep.mubr.f32.mxu0 0.0
    %2074 = vmatmul.mubr.f32.gmra.mxu0 %v2002
    %v2075 = vpop.f32.mrf.mxu0
    %v2076 = vadd.f32 0.0, %v2075
    %v2077 = vpop.f32.mrf.mxu0
    %2078 = vdwg.mxu0
    %v2079 = vmul.f32 %v2071, 0.5
    %v2080 = vmul.f32 %v2076, 0.5
    %v2081 = vsub.f32 %v1820, %v1994
    %v2082 = vsub.f32 %v1825, %v1995
    %v2083 = vmul.f32 %v2081, 1.442695
    %v2084 = vpow.pop %v2083
    %v2085 = vmul.f32 %v2082, 1.442695
    %v2086 = vpow.pop %v2085
    %v2087 = vadd.f32 %v2084, 1e-06
    %v2088 = vadd.f32 %v2086, 1e-06
    %v2089 = vmul.f32 %v2087, 0.25
    %v2090 = vmul.f32 %v2088, 0.25
    %v2091 = vsub.f32 %v1903, %v2079
    %v2092 = vsub.f32 %v1908, %v2080
    %v2093 = vmul.f32 %v2091, 1.442695
    %v2094 = vpow.pop %v2093
    %v2095 = vmul.f32 %v2092, 1.442695
    %v2096 = vpow.pop %v2095
    %v2097 = vadd.f32 %v2094, 1e-06
    %v2098 = vadd.f32 %v2096, 1e-06
    %v2099 = vmul.f32 %v2097, 0.25
    %v2100 = vmul.f32 %v2098, 0.25
    %2101 = vmatprep.subr.mxu0 0.0
    %2102 = vmatpush1.msra.mxu0 0.0
    %2103 = vmatprep.subr.mxu0 0.0
    %2104 = vmatpush1.msra.mxu0 0.0
    %2105 = vmatprep.subr.mxu0 0.0
    %2106 = vmatpush1.msra.mxu0 0.0
    %2107 = vmatprep.subr.mxu0 0.0
    %2108 = vmatpush1.msra.mxu0 0.0
    %2109 = vmatprep.subr.mxu0 0.0
    %2110 = vmatpush1.msra.mxu0 0.0
    %2111 = vmatprep.subr.mxu0 0.0
    %2112 = vmatpush1.msra.mxu0 0.0
    %2113 = vmatprep.subr.mxu0 0.0
    %2114 = vmatpush1.msra.mxu0 0.0
    %2115 = vmatprep.subr.mxu0 0.0
    %2116 = vmatpush1.msra.mxu0 0.0
    %2117 = vmatprep.subr.mxu0 0.0
    %2118 = vmatpush1.msra.mxu0 0.0
    %2119 = vmatprep.subr.mxu0 0.0
    %2120 = vmatpush1.msra.mxu0 0.0
    %2121 = vmatprep.subr.mxu0 0.0
    %2122 = vmatpush1.msra.mxu0 0.0
    %2123 = vmatprep.subr.mxu0 0.0
    %2124 = vmatpush1.msra.mxu0 0.0
    %2125 = vmatprep.subr.mxu0 0.0
    %2126 = vmatpush1.msra.mxu0 0.0
    %2127 = vmatprep.subr.mxu0 0.0
    %2128 = vmatpush1.msra.mxu0 0.0
    %2129 = vmatprep.subr.mxu0 0.0
    %2130 = vmatpush1.msra.mxu0 %v2100
    %2131 = vmatprep.subr.mxu0 0.0
    %2132 = vmatpush1.msra.mxu0 %v2099
    %2133 = vmatprep.subr.mxu0 0.0
    %2134 = vmatpush2.msra.mxu0 0.0
    %2135 = vmatprep.subr.mxu0 0.0
    %2136 = vmatpush2.msra.mxu0 0.0
    %2137 = vmatprep.subr.mxu0 0.0
    %2138 = vmatpush2.msra.mxu0 0.0
    %2139 = vmatprep.subr.mxu0 0.0
    %2140 = vmatpush2.msra.mxu0 0.0
    %2141 = vmatprep.subr.mxu0 0.0
    %2142 = vmatpush2.msra.mxu0 0.0
    %2143 = vmatprep.subr.mxu0 0.0
    %2144 = vmatpush2.msra.mxu0 0.0
    %2145 = vmatprep.subr.mxu0 0.0
    %2146 = vmatpush2.msra.mxu0 0.0
    %2147 = vmatprep.subr.mxu0 0.0
    %2148 = vmatpush2.msra.mxu0 0.0
    %2149 = vmatprep.subr.mxu0 0.0
    %2150 = vmatpush2.msra.mxu0 0.0
    %2151 = vmatprep.subr.mxu0 0.0
    %2152 = vmatpush2.msra.mxu0 0.0
    %2153 = vmatprep.subr.mxu0 0.0
    %2154 = vmatpush2.msra.mxu0 0.0
    %2155 = vmatprep.subr.mxu0 0.0
    %2156 = vmatpush2.msra.mxu0 0.0
    %2157 = vmatprep.subr.mxu0 0.0
    %2158 = vmatpush2.msra.mxu0 0.0
    %2159 = vmatprep.subr.mxu0 0.0
    %2160 = vmatpush2.msra.mxu0 0.0
    %2161 = vmatprep.subr.mxu0 0.0
    %2162 = vmatpush2.msra.mxu0 0.0
    %2163 = vmatprep.subr.mxu0 0.0
    %2164 = vmatpush2.msra.mxu0 0.0
    %2165 = vmatprep.mubr.f32.mxu0 0.0
    %2166 = vmatmul.mubr.f32.gmra.mxu0 %v746
    %v2167 = vpop.f32.mrf.mxu0
    %v2168 = vadd.f32 0.0, %v2167
    %v2169 = vpop.f32.mrf.mxu0
    %2170 = vmatprep.mubr.f32.mxu0 0.0
    %2171 = vmatmul.mubr.f32.gmra.mxu0 %v749
    %v2172 = vpop.f32.mrf.mxu0
    %v2173 = vadd.f32 0.0, %v2172
    %v2174 = vpop.f32.mrf.mxu0
    %2175 = vmatprep.mubr.f32.mxu0 0.0
    %2176 = vmatmul.mubr.f32.gmra.mxu0 %v752
    %v2177 = vpop.f32.mrf.mxu0
    %v2178 = vadd.f32 0.0, %v2177
    %v2179 = vpop.f32.mrf.mxu0
    %2180 = vmatprep.mubr.f32.mxu0 0.0
    %2181 = vmatmul.mubr.f32.gmra.mxu0 %v755
    %v2182 = vpop.f32.mrf.mxu0
    %v2183 = vadd.f32 0.0, %v2182
    %v2184 = vpop.f32.mrf.mxu0
    %2185 = vmatprep.mubr.f32.mxu0 0.0
    %2186 = vmatmul.mubr.f32.gmra.mxu0 %v758
    %v2187 = vpop.f32.mrf.mxu0
    %v2188 = vadd.f32 0.0, %v2187
    %v2189 = vpop.f32.mrf.mxu0
    %2190 = vmatprep.mubr.f32.mxu0 0.0
    %2191 = vmatmul.mubr.f32.gmra.mxu0 %v761
    %v2192 = vpop.f32.mrf.mxu0
    %v2193 = vadd.f32 0.0, %v2192
    %v2194 = vpop.f32.mrf.mxu0
    %2195 = vmatprep.mubr.f32.mxu0 0.0
    %2196 = vmatmul.mubr.f32.gmra.mxu0 %v764
    %v2197 = vpop.f32.mrf.mxu0
    %v2198 = vadd.f32 0.0, %v2197
    %v2199 = vpop.f32.mrf.mxu0
    %2200 = vmatprep.mubr.f32.mxu0 0.0
    %2201 = vmatmul.mubr.f32.gmra.mxu0 %v767
    %v2202 = vpop.f32.mrf.mxu0
    %v2203 = vadd.f32 0.0, %v2202
    %v2204 = vpop.f32.mrf.mxu0
    %2205 = vdwg.mxu0
    %v2206 = vmul.f32 %v2168, %v37
    %v2207 = vmul.f32 %v2173, %v38
    %v2208 = vmul.f32 %v2178, %v39
    %v2209 = vmul.f32 %v2183, %v40
    %v2210 = vmul.f32 %v2188, %v41
    %v2211 = vmul.f32 %v2193, %v42
    %v2212 = vmul.f32 %v2198, %v43
    %v2213 = vmul.f32 %v2203, %v44
    %2216 = vrot.lane.b32.xlu0 %v1733, 64
    %v2217 = vpop.permute.xlu0 %2216
    %2218 = vrot.lane.b32.xlu0 %v1738, 64
    %v2219 = vpop.permute.xlu0 %2218
    %2222 = vmatprep.subr.mxu0 0.0
    %2223 = vmatpush1.msra.mxu0 0.0
    %2224 = vmatprep.subr.mxu0 0.0
    %2225 = vmatpush1.msra.mxu0 0.0
    %2226 = vmatprep.subr.mxu0 0.0
    %2227 = vmatpush1.msra.mxu0 0.0
    %2228 = vmatprep.subr.mxu0 0.0
    %2229 = vmatpush1.msra.mxu0 0.0
    %2230 = vmatprep.subr.mxu0 0.0
    %2231 = vmatpush1.msra.mxu0 0.0
    %2232 = vmatprep.subr.mxu0 0.0
    %2233 = vmatpush1.msra.mxu0 0.0
    %2234 = vmatprep.subr.mxu0 0.0
    %2235 = vmatpush1.msra.mxu0 0.0
    %2236 = vmatprep.subr.mxu0 0.0
    %2237 = vmatpush1.msra.mxu0 0.0
    %2238 = vmatprep.subr.mxu0 0.0
    %2239 = vmatpush1.msra.mxu0 0.0
    %2240 = vmatprep.subr.mxu0 0.0
    %2241 = vmatpush1.msra.mxu0 0.0
    %2242 = vmatprep.subr.mxu0 0.0
    %2243 = vmatpush1.msra.mxu0 0.0
    %2244 = vmatprep.subr.mxu0 0.0
    %2245 = vmatpush1.msra.mxu0 0.0
    %2246 = vmatprep.subr.mxu0 0.0
    %2247 = vmatpush1.msra.mxu0 0.0
    %2248 = vmatprep.subr.mxu0 0.0
    %2249 = vmatpush1.msra.mxu0 0.0
    %2250 = vmatprep.subr.mxu0 0.0
    %2251 = vmatpush1.msra.mxu0 %v2219
    %2252 = vmatprep.subr.mxu0 0.0
    %2253 = vmatpush1.msra.mxu0 %v2217
    %2254 = vmatprep.subr.mxu0 0.0
    %2255 = vmatpush2.msra.mxu0 0.0
    %2256 = vmatprep.subr.mxu0 0.0
    %2257 = vmatpush2.msra.mxu0 0.0
    %2258 = vmatprep.subr.mxu0 0.0
    %2259 = vmatpush2.msra.mxu0 0.0
    %2260 = vmatprep.subr.mxu0 0.0
    %2261 = vmatpush2.msra.mxu0 0.0
    %2262 = vmatprep.subr.mxu0 0.0
    %2263 = vmatpush2.msra.mxu0 0.0
    %2264 = vmatprep.subr.mxu0 0.0
    %2265 = vmatpush2.msra.mxu0 0.0
    %2266 = vmatprep.subr.mxu0 0.0
    %2267 = vmatpush2.msra.mxu0 0.0
    %2268 = vmatprep.subr.mxu0 0.0
    %2269 = vmatpush2.msra.mxu0 0.0
    %2270 = vmatprep.subr.mxu0 0.0
    %2271 = vmatpush2.msra.mxu0 0.0
    %2272 = vmatprep.subr.mxu0 0.0
    %2273 = vmatpush2.msra.mxu0 0.0
    %2274 = vmatprep.subr.mxu0 0.0
    %2275 = vmatpush2.msra.mxu0 0.0
    %2276 = vmatprep.subr.mxu0 0.0
    %2277 = vmatpush2.msra.mxu0 0.0
    %2278 = vmatprep.subr.mxu0 0.0
    %2279 = vmatpush2.msra.mxu0 0.0
    %2280 = vmatprep.subr.mxu0 0.0
    %2281 = vmatpush2.msra.mxu0 0.0
    %2282 = vmatprep.subr.mxu0 0.0
    %2283 = vmatpush2.msra.mxu0 0.0
    %2284 = vmatprep.subr.mxu0 0.0
    %2285 = vmatpush2.msra.mxu0 0.0
    %2286 = vmatprep.mubr.f32.mxu0 0.0
    %2287 = vmatmul.mubr.f32.gmra.mxu0 %v746
    %v2288 = vpop.f32.mrf.mxu0
    %v2289 = vadd.f32 0.0, %v2288
    %v2290 = vpop.f32.mrf.mxu0
    %2291 = vmatprep.mubr.f32.mxu0 0.0
    %2292 = vmatmul.mubr.f32.gmra.mxu0 %v749
    %v2293 = vpop.f32.mrf.mxu0
    %v2294 = vadd.f32 0.0, %v2293
    %v2295 = vpop.f32.mrf.mxu0
    %2296 = vmatprep.mubr.f32.mxu0 0.0
    %2297 = vmatmul.mubr.f32.gmra.mxu0 %v752
    %v2298 = vpop.f32.mrf.mxu0
    %v2299 = vadd.f32 0.0, %v2298
    %v2300 = vpop.f32.mrf.mxu0
    %2301 = vmatprep.mubr.f32.mxu0 0.0
    %2302 = vmatmul.mubr.f32.gmra.mxu0 %v755
    %v2303 = vpop.f32.mrf.mxu0
    %v2304 = vadd.f32 0.0, %v2303
    %v2305 = vpop.f32.mrf.mxu0
    %2306 = vmatprep.mubr.f32.mxu0 0.0
    %2307 = vmatmul.mubr.f32.gmra.mxu0 %v758
    %v2308 = vpop.f32.mrf.mxu0
    %v2309 = vadd.f32 0.0, %v2308
    %v2310 = vpop.f32.mrf.mxu0
    %2311 = vmatprep.mubr.f32.mxu0 0.0
    %2312 = vmatmul.mubr.f32.gmra.mxu0 %v761
    %v2313 = vpop.f32.mrf.mxu0
    %v2314 = vadd.f32 0.0, %v2313
    %v2315 = vpop.f32.mrf.mxu0
    %2316 = vmatprep.mubr.f32.mxu0 0.0
    %2317 = vmatmul.mubr.f32.gmra.mxu0 %v764
    %v2318 = vpop.f32.mrf.mxu0
    %v2319 = vadd.f32 0.0, %v2318
    %v2320 = vpop.f32.mrf.mxu0
    %2321 = vmatprep.mubr.f32.mxu0 0.0
    %2322 = vmatmul.mubr.f32.gmra.mxu0 %v767
    %v2323 = vpop.f32.mrf.mxu0
    %v2324 = vadd.f32 0.0, %v2323
    %v2325 = vpop.f32.mrf.mxu0
    %2326 = vdwg.mxu0
    %v2327 = vmul.f32 %v2289, %v45
    %v2328 = vmul.f32 %v2294, %v46
    %v2329 = vmul.f32 %v2299, %v47
    %v2330 = vmul.f32 %v2304, %v48
    %v2331 = vmul.f32 %v2309, %v49
    %v2332 = vmul.f32 %v2314, %v50
    %v2333 = vmul.f32 %v2319, %v51
    %v2334 = vmul.f32 %v2324, %v52
    %v2336 = vsel %vm1003, %v2089, 0
    %v2339 = vsel %vm1003, %v2090, 0
    %v2342 = vsel %vm1003, %v2206, 0
    %v2345 = vsel %vm1003, %v2207, 0
    %v2348 = vsel %vm1003, %v2208, 0
    %v2351 = vsel %vm1003, %v2209, 0
    %v2354 = vsel %vm1003, %v2210, 0
    %v2357 = vsel %vm1003, %v2211, 0
    %v2360 = vsel %vm1003, %v2212, 0
    %v2363 = vsel %vm1003, %v2213, 0
    %2365 = vmatprep.subr.mxu0 0.0
    %2366 = vmatpush1.xpose.msra.mxu0 0.0
    %2367 = vmatprep.subr.mxu0 0.0
    %2368 = vmatpush1.xpose.msra.mxu0 0.0
    %2369 = vmatprep.subr.mxu0 0.0
    %2370 = vmatpush1.xpose.msra.mxu0 0.0
    %2371 = vmatprep.subr.mxu0 0.0
    %2372 = vmatpush1.xpose.msra.mxu0 0.0
    %2373 = vmatprep.subr.mxu0 0.0
    %2374 = vmatpush1.xpose.msra.mxu0 0.0
    %2375 = vmatprep.subr.mxu0 0.0
    %2376 = vmatpush1.xpose.msra.mxu0 0.0
    %2377 = vmatprep.subr.mxu0 0.0
    %2378 = vmatpush1.xpose.msra.mxu0 0.0
    %2379 = vmatprep.subr.mxu0 0.0
    %2380 = vmatpush1.xpose.msra.mxu0 0.0
    %2381 = vmatprep.subr.mxu0 0.0
    %2382 = vmatpush1.xpose.msra.mxu0 %v2363
    %2383 = vmatprep.subr.mxu0 0.0
    %2384 = vmatpush1.xpose.msra.mxu0 %v2360
    %2385 = vmatprep.subr.mxu0 0.0
    %2386 = vmatpush1.xpose.msra.mxu0 %v2357
    %2387 = vmatprep.subr.mxu0 0.0
    %2388 = vmatpush1.xpose.msra.mxu0 %v2354
    %2389 = vmatprep.subr.mxu0 0.0
    %2390 = vmatpush1.xpose.msra.mxu0 %v2351
    %2391 = vmatprep.subr.mxu0 0.0
    %2392 = vmatpush1.xpose.msra.mxu0 %v2348
    %2393 = vmatprep.subr.mxu0 0.0
    %2394 = vmatpush1.xpose.msra.mxu0 %v2345
    %2395 = vmatprep.subr.mxu0 0.0
    %2396 = vmatpush1.xpose.msra.mxu0 %v2342
    %2397 = vmatprep.subr.mxu0 0.0
    %2398 = vmatpush2.xpose.msra.mxu0 0.0
    %2399 = vmatprep.subr.mxu0 0.0
    %2400 = vmatpush2.xpose.msra.mxu0 0.0
    %2401 = vmatprep.subr.mxu0 0.0
    %2402 = vmatpush2.xpose.msra.mxu0 0.0
    %2403 = vmatprep.subr.mxu0 0.0
    %2404 = vmatpush2.xpose.msra.mxu0 0.0
    %2405 = vmatprep.subr.mxu0 0.0
    %2406 = vmatpush2.xpose.msra.mxu0 0.0
    %2407 = vmatprep.subr.mxu0 0.0
    %2408 = vmatpush2.xpose.msra.mxu0 0.0
    %2409 = vmatprep.subr.mxu0 0.0
    %2410 = vmatpush2.xpose.msra.mxu0 0.0
    %2411 = vmatprep.subr.mxu0 0.0
    %2412 = vmatpush2.xpose.msra.mxu0 0.0
    %2413 = vmatprep.subr.mxu0 0.0
    %2414 = vmatpush2.xpose.msra.mxu0 0.0
    %2415 = vmatprep.subr.mxu0 0.0
    %2416 = vmatpush2.xpose.msra.mxu0 0.0
    %2417 = vmatprep.subr.mxu0 0.0
    %2418 = vmatpush2.xpose.msra.mxu0 0.0
    %2419 = vmatprep.subr.mxu0 0.0
    %2420 = vmatpush2.xpose.msra.mxu0 0.0
    %2421 = vmatprep.subr.mxu0 0.0
    %2422 = vmatpush2.xpose.msra.mxu0 0.0
    %2423 = vmatprep.subr.mxu0 0.0
    %2424 = vmatpush2.xpose.msra.mxu0 0.0
    %2425 = vmatprep.subr.mxu0 0.0
    %2426 = vmatpush2.xpose.msra.mxu0 0.0
    %2427 = vmatprep.subr.mxu0 0.0
    %2428 = vmatpush2.xpose.msra.mxu0 0.0
    %2429 = vmatprep.mubr.f32.mxu0 0.0
    %2430 = vmatmul.mubr.f32.gmra.mxu0 %v2336
    %v2431 = vpop.f32.mrf.mxu0
    %v2432 = vadd.f32 0.0, %v2431
    %v2433 = vpop.f32.mrf.mxu0
    %2434 = vmatprep.mubr.f32.mxu0 0.0
    %2435 = vmatmul.mubr.f32.gmra.mxu0 %v2339
    %v2436 = vpop.f32.mrf.mxu0
    %v2437 = vadd.f32 0.0, %v2436
    %v2438 = vpop.f32.mrf.mxu0
    %2439 = vdwg.mxu0
    %v2440 = vmul.f32 %v2432, %v53
    %v2441 = vmul.f32 %v2437, %v54
    %v2443 = vsel %vm1003, %v2440, 0
    %v2446 = vsel %vm1003, %v2441, 0
    %2448 = vmatprep.subr.mxu0 0.0
    %2449 = vmatpush1.msra.mxu0 0.0
    %2450 = vmatprep.subr.mxu0 0.0
    %2451 = vmatpush1.msra.mxu0 0.0
    %2452 = vmatprep.subr.mxu0 0.0
    %2453 = vmatpush1.msra.mxu0 0.0
    %2454 = vmatprep.subr.mxu0 0.0
    %2455 = vmatpush1.msra.mxu0 0.0
    %2456 = vmatprep.subr.mxu0 0.0
    %2457 = vmatpush1.msra.mxu0 0.0
    %2458 = vmatprep.subr.mxu0 0.0
    %2459 = vmatpush1.msra.mxu0 0.0
    %2460 = vmatprep.subr.mxu0 0.0
    %2461 = vmatpush1.msra.mxu0 0.0
    %2462 = vmatprep.subr.mxu0 0.0
    %2463 = vmatpush1.msra.mxu0 0.0
    %2464 = vmatprep.subr.mxu0 0.0
    %2465 = vmatpush1.msra.mxu0 %v2334
    %2466 = vmatprep.subr.mxu0 0.0
    %2467 = vmatpush1.msra.mxu0 %v2333
    %2468 = vmatprep.subr.mxu0 0.0
    %2469 = vmatpush1.msra.mxu0 %v2332
    %2470 = vmatprep.subr.mxu0 0.0
    %2471 = vmatpush1.msra.mxu0 %v2331
    %2472 = vmatprep.subr.mxu0 0.0
    %2473 = vmatpush1.msra.mxu0 %v2330
    %2474 = vmatprep.subr.mxu0 0.0
    %2475 = vmatpush1.msra.mxu0 %v2329
    %2476 = vmatprep.subr.mxu0 0.0
    %2477 = vmatpush1.msra.mxu0 %v2328
    %2478 = vmatprep.subr.mxu0 0.0
    %2479 = vmatpush1.msra.mxu0 %v2327
    %2480 = vmatprep.subr.mxu0 0.0
    %2481 = vmatpush2.msra.mxu0 0.0
    %2482 = vmatprep.subr.mxu0 0.0
    %2483 = vmatpush2.msra.mxu0 0.0
    %2484 = vmatprep.subr.mxu0 0.0
    %2485 = vmatpush2.msra.mxu0 0.0
    %2486 = vmatprep.subr.mxu0 0.0
    %2487 = vmatpush2.msra.mxu0 0.0
    %2488 = vmatprep.subr.mxu0 0.0
    %2489 = vmatpush2.msra.mxu0 0.0
    %2490 = vmatprep.subr.mxu0 0.0
    %2491 = vmatpush2.msra.mxu0 0.0
    %2492 = vmatprep.subr.mxu0 0.0
    %2493 = vmatpush2.msra.mxu0 0.0
    %2494 = vmatprep.subr.mxu0 0.0
    %2495 = vmatpush2.msra.mxu0 0.0
    %2496 = vmatprep.subr.mxu0 0.0
    %2497 = vmatpush2.msra.mxu0 0.0
    %2498 = vmatprep.subr.mxu0 0.0
    %2499 = vmatpush2.msra.mxu0 0.0
    %2500 = vmatprep.subr.mxu0 0.0
    %2501 = vmatpush2.msra.mxu0 0.0
    %2502 = vmatprep.subr.mxu0 0.0
    %2503 = vmatpush2.msra.mxu0 0.0
    %2504 = vmatprep.subr.mxu0 0.0
    %2505 = vmatpush2.msra.mxu0 0.0
    %2506 = vmatprep.subr.mxu0 0.0
    %2507 = vmatpush2.msra.mxu0 0.0
    %2508 = vmatprep.subr.mxu0 0.0
    %2509 = vmatpush2.msra.mxu0 0.0
    %2510 = vmatprep.subr.mxu0 0.0
    %2511 = vmatpush2.msra.mxu0 0.0
    %2512 = vmatprep.mubr.f32.mxu0 0.0
    %2513 = vmatmul.mubr.f32.gmra.mxu0 %v2443
    %v2514 = vpop.f32.mrf.mxu0
    %v2515 = vadd.f32 0.0, %v2514
    %v2516 = vpop.f32.mrf.mxu0
    %2517 = vmatprep.mubr.f32.mxu0 0.0
    %2518 = vmatmul.mubr.f32.gmra.mxu0 %v2446
    %v2519 = vpop.f32.mrf.mxu0
    %v2520 = vadd.f32 0.0, %v2519
    %v2521 = vpop.f32.mrf.mxu0
    %2522 = vdwg.mxu0
    %2523 = vmatprep.subr.mxu0 0.0
    %2524 = vmatpush1.msra.mxu0 0.0
    %2525 = vmatprep.subr.mxu0 0.0
    %2526 = vmatpush1.msra.mxu0 0.0
    %2527 = vmatprep.subr.mxu0 0.0
    %2528 = vmatpush1.msra.mxu0 0.0
    %2529 = vmatprep.subr.mxu0 0.0
    %2530 = vmatpush1.msra.mxu0 0.0
    %2531 = vmatprep.subr.mxu0 0.0
    %2532 = vmatpush1.msra.mxu0 0.0
    %2533 = vmatprep.subr.mxu0 0.0
    %2534 = vmatpush1.msra.mxu0 0.0
    %2535 = vmatprep.subr.mxu0 0.0
    %2536 = vmatpush1.msra.mxu0 0.0
    %2537 = vmatprep.subr.mxu0 0.0
    %2538 = vmatpush1.msra.mxu0 0.0
    %2539 = vmatprep.subr.mxu0 0.0
    %2540 = vmatpush1.msra.mxu0 %v52
    %2541 = vmatprep.subr.mxu0 0.0
    %2542 = vmatpush1.msra.mxu0 %v51
    %2543 = vmatprep.subr.mxu0 0.0
    %2544 = vmatpush1.msra.mxu0 %v50
    %2545 = vmatprep.subr.mxu0 0.0
    %2546 = vmatpush1.msra.mxu0 %v49
    %2547 = vmatprep.subr.mxu0 0.0
    %2548 = vmatpush1.msra.mxu0 %v48
    %2549 = vmatprep.subr.mxu0 0.0
    %2550 = vmatpush1.msra.mxu0 %v47
    %2551 = vmatprep.subr.mxu0 0.0
    %2552 = vmatpush1.msra.mxu0 %v46
    %2553 = vmatprep.subr.mxu0 0.0
    %2554 = vmatpush1.msra.mxu0 %v45
    %2555 = vmatprep.subr.mxu0 0.0
    %2556 = vmatpush2.msra.mxu0 0.0
    %2557 = vmatprep.subr.mxu0 0.0
    %2558 = vmatpush2.msra.mxu0 0.0
    %2559 = vmatprep.subr.mxu0 0.0
    %2560 = vmatpush2.msra.mxu0 0.0
    %2561 = vmatprep.subr.mxu0 0.0
    %2562 = vmatpush2.msra.mxu0 0.0
    %2563 = vmatprep.subr.mxu0 0.0
    %2564 = vmatpush2.msra.mxu0 0.0
    %2565 = vmatprep.subr.mxu0 0.0
    %2566 = vmatpush2.msra.mxu0 0.0
    %2567 = vmatprep.subr.mxu0 0.0
    %2568 = vmatpush2.msra.mxu0 0.0
    %2569 = vmatprep.subr.mxu0 0.0
    %2570 = vmatpush2.msra.mxu0 0.0
    %2571 = vmatprep.subr.mxu0 0.0
    %2572 = vmatpush2.msra.mxu0 0.0
    %2573 = vmatprep.subr.mxu0 0.0
    %2574 = vmatpush2.msra.mxu0 0.0
    %2575 = vmatprep.subr.mxu0 0.0
    %2576 = vmatpush2.msra.mxu0 0.0
    %2577 = vmatprep.subr.mxu0 0.0
    %2578 = vmatpush2.msra.mxu0 0.0
    %2579 = vmatprep.subr.mxu0 0.0
    %2580 = vmatpush2.msra.mxu0 0.0
    %2581 = vmatprep.subr.mxu0 0.0
    %2582 = vmatpush2.msra.mxu0 0.0
    %2583 = vmatprep.subr.mxu0 0.0
    %2584 = vmatpush2.msra.mxu0 0.0
    %2585 = vmatprep.subr.mxu0 0.0
    %2586 = vmatpush2.msra.mxu0 0.0
    %2587 = vmatprep.mubr.f32.mxu0 0.0
    %2588 = vmatmul.mubr.f32.gmra.mxu0 %v2443
    %v2589 = vpop.f32.mrf.mxu0
    %v2590 = vadd.f32 0.0, %v2589
    %v2591 = vpop.f32.mrf.mxu0
    %2592 = vmatprep.mubr.f32.mxu0 0.0
    %2593 = vmatmul.mubr.f32.gmra.mxu0 %v2446
    %v2594 = vpop.f32.mrf.mxu0
    %v2595 = vadd.f32 0.0, %v2594
    %v2596 = vpop.f32.mrf.mxu0
    %2597 = vdwg.mxu0
    %v2598 = vrcp.pop %v2590
    %v2599 = vrcp.pop %v2595
    %v2600 = vmul.f32 %v2515, %v2598
    %v2601 = vmul.f32 %v2520, %v2599
    %v2602 = vld [vmem:[#allocation2 + $0x1a0] sm:$0xff]
    %v2603 = vld [vmem:[#allocation2 + $0x1a8] sm:$0xff]
    %v2604 = vld [vmem:[#allocation2 + $0x1b0] sm:$0xff]
    %v2605 = vld [vmem:[#allocation2 + $0x1b8] sm:$0xff]
    %v2607 = vsel %vm255, %v2600, 0
    %v2610 = vsel %vm255, %v2601, 0
    %2612 = vmatprep.subr.mxu0 0.0
    %2613 = vmatpush1.msra.mxu0 0.0
    %2614 = vmatprep.subr.mxu0 0.0
    %2615 = vmatpush1.msra.mxu0 0.0
    %2616 = vmatprep.subr.mxu0 0.0
    %2617 = vmatpush1.msra.mxu0 0.0
    %2618 = vmatprep.subr.mxu0 0.0
    %2619 = vmatpush1.msra.mxu0 0.0
    %2620 = vmatprep.subr.mxu0 0.0
    %2621 = vmatpush1.msra.mxu0 0.0
    %2622 = vmatprep.subr.mxu0 0.0
    %2623 = vmatpush1.msra.mxu0 0.0
    %2624 = vmatprep.subr.mxu0 0.0
    %2625 = vmatpush1.msra.mxu0 0.0
    %2626 = vmatprep.subr.mxu0 0.0
    %2627 = vmatpush1.msra.mxu0 0.0
    %2628 = vmatprep.subr.mxu0 0.0
    %2629 = vmatpush1.msra.mxu0 0.0
    %2630 = vmatprep.subr.mxu0 0.0
    %2631 = vmatpush1.msra.mxu0 0.0
    %2632 = vmatprep.subr.mxu0 0.0
    %2633 = vmatpush1.msra.mxu0 0.0
    %2634 = vmatprep.subr.mxu0 0.0
    %2635 = vmatpush1.msra.mxu0 0.0
    %2636 = vmatprep.subr.mxu0 0.0
    %2637 = vmatpush1.msra.mxu0 %v2605
    %2638 = vmatprep.subr.mxu0 0.0
    %2639 = vmatpush1.msra.mxu0 %v2604
    %2640 = vmatprep.subr.mxu0 0.0
    %2641 = vmatpush1.msra.mxu0 %v2603
    %2642 = vmatprep.subr.mxu0 0.0
    %2643 = vmatpush1.msra.mxu0 %v2602
    %2644 = vmatprep.subr.mxu0 0.0
    %2645 = vmatpush2.msra.mxu0 0.0
    %2646 = vmatprep.subr.mxu0 0.0
    %2647 = vmatpush2.msra.mxu0 0.0
    %2648 = vmatprep.subr.mxu0 0.0
    %2649 = vmatpush2.msra.mxu0 0.0
    %2650 = vmatprep.subr.mxu0 0.0
    %2651 = vmatpush2.msra.mxu0 0.0
    %2652 = vmatprep.subr.mxu0 0.0
    %2653 = vmatpush2.msra.mxu0 0.0
    %2654 = vmatprep.subr.mxu0 0.0
    %2655 = vmatpush2.msra.mxu0 0.0
    %2656 = vmatprep.subr.mxu0 0.0
    %2657 = vmatpush2.msra.mxu0 0.0
    %2658 = vmatprep.subr.mxu0 0.0
    %2659 = vmatpush2.msra.mxu0 0.0
    %2660 = vmatprep.subr.mxu0 0.0
    %2661 = vmatpush2.msra.mxu0 0.0
    %2662 = vmatprep.subr.mxu0 0.0
    %2663 = vmatpush2.msra.mxu0 0.0
    %2664 = vmatprep.subr.mxu0 0.0
    %2665 = vmatpush2.msra.mxu0 0.0
    %2666 = vmatprep.subr.mxu0 0.0
    %2667 = vmatpush2.msra.mxu0 0.0
    %2668 = vmatprep.subr.mxu0 0.0
    %2669 = vmatpush2.msra.mxu0 0.0
    %2670 = vmatprep.subr.mxu0 0.0
    %2671 = vmatpush2.msra.mxu0 0.0
    %2672 = vmatprep.subr.mxu0 0.0
    %2673 = vmatpush2.msra.mxu0 0.0
    %2674 = vmatprep.subr.mxu0 0.0
    %2675 = vmatpush2.msra.mxu0 0.0
    %2676 = vmatprep.mubr.f32.mxu0 0.0
    %2677 = vmatmul.mubr.f32.gmra.mxu0 %v2607
    %v2678 = vpop.f32.mrf.mxu0
    %v2679 = vadd.f32 0.0, %v2678
    %v2680 = vpop.f32.mrf.mxu0
    %2681 = vmatprep.mubr.f32.mxu0 0.0
    %2682 = vmatmul.mubr.f32.gmra.mxu0 %v2610
    %v2683 = vpop.f32.mrf.mxu0
    %v2684 = vadd.f32 0.0, %v2683
    %v2685 = vpop.f32.mrf.mxu0
    %2686 = vdwg.mxu0
    %v2687 = vadd.f32 %v1609, %v2679
    %v2688 = vadd.f32 %v1610, %v2684
    %v2689 = vld [vmem:[#allocation2 + $0x1c0] sm:$0x1]
    %v2690 = vlaneseq
    %v2691 = vshrl.u32 %v2690, 7
    %v2692 = vsub.s32 0, %v2691
    %v2693 = vrot.slane %v2689, %v2692
    %v2694 = vadd.f32 %v2687, %v2693
    %v2695 = vadd.f32 %v2688, %v2693
    %v2696 = vld [vmem:[#allocation2 + $0x1e8] sm:$0x1]
    %v2697 = vld [vmem:[#allocation2 + $0x1f0] sm:$0x1]
    %v2698 = vsel %vm255, %v2694, 0.0
    %2699 = vadd.xlane.f32.xlu0 %v2698
    %v2700 = vpop.xlane.xlu0 %2699
    %v2701 = vsel %vm255, %v2695, 0.0
    %2702 = vadd.xlane.f32.xlu0 %v2701
    %v2703 = vpop.xlane.xlu0 %2702
    %v2704 = vmul.f32 %v2700, %v262
    %v2705 = vmul.f32 %v2703, %v262
    %v2706 = vsub.f32 %v2694, %v2704
    %v2707 = vsub.f32 %v2695, %v2705
    %v2708 = vmul.f32 %v2706, %v2706
    %v2709 = vmul.f32 %v2707, %v2707
    %v2710 = vsel %vm255, %v2708, 0.0
    %2711 = vadd.xlane.f32.xlu0 %v2710
    %v2712 = vpop.xlane.xlu0 %2711
    %v2713 = vsel %vm255, %v2709, 0.0
    %2714 = vadd.xlane.f32.xlu0 %v2713
    %v2715 = vpop.xlane.xlu0 %2714
    %v2716 = vmul.f32 %v2712, %v262
    %v2717 = vmul.f32 %v2715, %v262
    %v2718 = vadd.f32 %v2716, 1e-05
    %v2719 = vadd.f32 %v2717, 1e-05
    %v2720 = vrsqrt.pop %v2718
    %v2721 = vrsqrt.pop %v2719
    %v2722 = vmul.f32 %v2706, %v2720
    %v2723 = vmul.f32 %v2707, %v2721
    %v2724 = vlaneseq
    %v2725 = vshrl.u32 %v2724, 7
    %v2726 = vsub.s32 0, %v2725
    %v2727 = vrot.slane %v2696, %v2726
    %v2728 = vmul.f32 %v2722, %v2727
    %v2729 = vmul.f32 %v2723, %v2727
    %v2730 = vlaneseq
    %v2731 = vshrl.u32 %v2730, 7
    %v2732 = vsub.s32 0, %v2731
    %v2733 = vrot.slane %v2697, %v2732
    %v2734 = vadd.f32 %v2728, %v2733
    %v2735 = vadd.f32 %v2729, %v2733
    %v2736 = vld [vmem:[#allocation2 + $0x1f8] sm:$0xff]
    %v2737 = vld [vmem:[#allocation2 + $0x200] sm:$0xff]
    %v2738 = vld [vmem:[#allocation2 + $0x208] sm:$0xff]
    %v2739 = vld [vmem:[#allocation2 + $0x210] sm:$0xff]
    %v2740 = vld [vmem:[#allocation2 + $0x218] sm:$0x1]
    %v2741 = vld [vmem:[#allocation2 + $0x220] sm:$0xff]
    %v2742 = vld [vmem:[#allocation2 + $0x228] sm:$0xff]
    %v2743 = vld [vmem:[#allocation2 + $0x230] sm:$0xff]
    %v2744 = vld [vmem:[#allocation2 + $0x238] sm:$0xff]
    %v2745 = vld [vmem:[#allocation2 + $0x240] sm:$0xff]
    %v2746 = vld [vmem:[#allocation2 + $0x248] sm:$0xff]
    %v2747 = vld [vmem:[#allocation2 + $0x250] sm:$0xff]
    %v2748 = vld [vmem:[#allocation2 + $0x258] sm:$0xff]
    %v2749 = vld [vmem:[#allocation2 + $0x260] sm:$0xff]
    %v2750 = vld [vmem:[#allocation2 + $0x268] sm:$0xff]
    %v2751 = vld [vmem:[#allocation2 + $0x270] sm:$0xff]
    %v2752 = vld [vmem:[#allocation2 + $0x278] sm:$0xff]
    %v2753 = vld [vmem:[#allocation2 + $0x280] sm:$0xff]
    %v2754 = vld [vmem:[#allocation2 + $0x288] sm:$0xff]
    %v2755 = vld [vmem:[#allocation2 + $0x290] sm:$0xff]
    %v2756 = vld [vmem:[#allocation2 + $0x298] sm:$0xff]
    %v2757 = vld [vmem:[#allocation2 + $0x2a0] sm:$0x1]
    %v2758 = vlaneseq
    %v2759 = vshrl.u32 %v2758, 7
    %v2760 = vsub.s32 0, %v2759
    %v2761 = vrot.slane %v2740, %v2760
    %v2763 = vsel %vm255, %v2734, 0
    %v2766 = vsel %vm255, %v2735, 0
    %2768 = vmatprep.subr.mxu0 0.0
    %2769 = vmatpush1.msra.mxu0 0.0
    %2770 = vmatprep.subr.mxu0 0.0
    %2771 = vmatpush1.msra.mxu0 0.0
    %2772 = vmatprep.subr.mxu0 0.0
    %2773 = vmatpush1.msra.mxu0 0.0
    %2774 = vmatprep.subr.mxu0 0.0
    %2775 = vmatpush1.msra.mxu0 0.0
    %2776 = vmatprep.subr.mxu0 0.0
    %2777 = vmatpush1.msra.mxu0 0.0
    %2778 = vmatprep.subr.mxu0 0.0
    %2779 = vmatpush1.msra.mxu0 0.0
    %2780 = vmatprep.subr.mxu0 0.0
    %2781 = vmatpush1.msra.mxu0 0.0
    %2782 = vmatprep.subr.mxu0 0.0
    %2783 = vmatpush1.msra.mxu0 0.0
    %2784 = vmatprep.subr.mxu0 0.0
    %2785 = vmatpush1.msra.mxu0 0.0
    %2786 = vmatprep.subr.mxu0 0.0
    %2787 = vmatpush1.msra.mxu0 0.0
    %2788 = vmatprep.subr.mxu0 0.0
    %2789 = vmatpush1.msra.mxu0 0.0
    %2790 = vmatprep.subr.mxu0 0.0
    %2791 = vmatpush1.msra.mxu0 0.0
    %2792 = vmatprep.subr.mxu0 0.0
    %2793 = vmatpush1.msra.mxu0 %v2739
    %2794 = vmatprep.subr.mxu0 0.0
    %2795 = vmatpush1.msra.mxu0 %v2738
    %2796 = vmatprep.subr.mxu0 0.0
    %2797 = vmatpush1.msra.mxu0 %v2737
    %2798 = vmatprep.subr.mxu0 0.0
    %2799 = vmatpush1.msra.mxu0 %v2736
    %2800 = vmatprep.subr.mxu0 0.0
    %2801 = vmatpush2.msra.mxu0 0.0
    %2802 = vmatprep.subr.mxu0 0.0
    %2803 = vmatpush2.msra.mxu0 0.0
    %2804 = vmatprep.subr.mxu0 0.0
    %2805 = vmatpush2.msra.mxu0 0.0
    %2806 = vmatprep.subr.mxu0 0.0
    %2807 = vmatpush2.msra.mxu0 0.0
    %2808 = vmatprep.subr.mxu0 0.0
    %2809 = vmatpush2.msra.mxu0 0.0
    %2810 = vmatprep.subr.mxu0 0.0
    %2811 = vmatpush2.msra.mxu0 0.0
    %2812 = vmatprep.subr.mxu0 0.0
    %2813 = vmatpush2.msra.mxu0 0.0
    %2814 = vmatprep.subr.mxu0 0.0
    %2815 = vmatpush2.msra.mxu0 0.0
    %2816 = vmatprep.subr.mxu0 0.0
    %2817 = vmatpush2.msra.mxu0 0.0
    %2818 = vmatprep.subr.mxu0 0.0
    %2819 = vmatpush2.msra.mxu0 0.0
    %2820 = vmatprep.subr.mxu0 0.0
    %2821 = vmatpush2.msra.mxu0 0.0
    %2822 = vmatprep.subr.mxu0 0.0
    %2823 = vmatpush2.msra.mxu0 0.0
    %2824 = vmatprep.subr.mxu0 0.0
    %2825 = vmatpush2.msra.mxu0 0.0
    %2826 = vmatprep.subr.mxu0 0.0
    %2827 = vmatpush2.msra.mxu0 0.0
    %2828 = vmatprep.subr.mxu0 0.0
    %2829 = vmatpush2.msra.mxu0 0.0
    %2830 = vmatprep.subr.mxu0 0.0
    %2831 = vmatpush2.msra.mxu0 0.0
    %2832 = vmatprep.mubr.f32.mxu0 0.0
    %2833 = vmatmul.mubr.f32.gmra.mxu0 %v2763
    %v2834 = vpop.f32.mrf.mxu0
    %v2835 = vadd.f32 %v2761, %v2834
    %v2836 = vpop.f32.mrf.mxu0
    %2837 = vmatprep.mubr.f32.mxu0 0.0
    %2838 = vmatmul.mubr.f32.gmra.mxu0 %v2766
    %v2839 = vpop.f32.mrf.mxu0
    %v2840 = vadd.f32 %v2761, %v2839
    %v2841 = vpop.f32.mrf.mxu0
    %2842 = vdwg.mxu0
    %v2843 = vmul.f32 %v2835, %v2835
    %v2844 = vmul.f32 %v2840, %v2840
    %v2845 = vmul.f32 %v2835, %v2843
    %v2846 = vmul.f32 %v2840, %v2844
    %v2847 = vmul.f32 %v2845, 0.044715
    %v2848 = vmul.f32 %v2846, 0.044715
    %v2849 = vadd.f32 %v2835, %v2847
    %v2850 = vadd.f32 %v2840, %v2848
    %v2851 = vmul.f32 %v2849, 0.7978846
    %v2852 = vmul.f32 %v2850, 0.7978846
    %v2853 = vtanh.pop %v2851
    %v2854 = vtanh.pop %v2852
    %v2855 = vadd.f32 %v2853, 1.0
    %v2856 = vadd.f32 %v2854, 1.0
    %v2857 = vmul.f32 %v2855, 0.5
    %v2858 = vmul.f32 %v2856, 0.5
    %v2859 = vmul.f32 %v2835, %v2857
    %v2860 = vmul.f32 %v2840, %v2858
    %v2861 = vlaneseq
    %v2862 = vshrl.u32 %v2861, 7
    %v2863 = vsub.s32 0, %v2862
    %v2864 = vrot.slane %v2757, %v2863
    %2865 = vmatprep.subr.mxu0 0.0
    %2866 = vmatpush1.msra.mxu0 %v2756
    %2867 = vmatprep.subr.mxu0 0.0
    %2868 = vmatpush1.msra.mxu0 %v2755
    %2869 = vmatprep.subr.mxu0 0.0
    %2870 = vmatpush1.msra.mxu0 %v2754
    %2871 = vmatprep.subr.mxu0 0.0
    %2872 = vmatpush1.msra.mxu0 %v2753
    %2873 = vmatprep.subr.mxu0 0.0
    %2874 = vmatpush1.msra.mxu0 %v2752
    %2875 = vmatprep.subr.mxu0 0.0
    %2876 = vmatpush1.msra.mxu0 %v2751
    %2877 = vmatprep.subr.mxu0 0.0
    %2878 = vmatpush1.msra.mxu0 %v2750
    %2879 = vmatprep.subr.mxu0 0.0
    %2880 = vmatpush1.msra.mxu0 %v2749
    %2881 = vmatprep.subr.mxu0 0.0
    %2882 = vmatpush1.msra.mxu0 %v2748
    %2883 = vmatprep.subr.mxu0 0.0
    %2884 = vmatpush1.msra.mxu0 %v2747
    %2885 = vmatprep.subr.mxu0 0.0
    %2886 = vmatpush1.msra.mxu0 %v2746
    %2887 = vmatprep.subr.mxu0 0.0
    %2888 = vmatpush1.msra.mxu0 %v2745
    %2889 = vmatprep.subr.mxu0 0.0
    %2890 = vmatpush1.msra.mxu0 %v2744
    %2891 = vmatprep.subr.mxu0 0.0
    %2892 = vmatpush1.msra.mxu0 %v2743
    %2893 = vmatprep.subr.mxu0 0.0
    %2894 = vmatpush1.msra.mxu0 %v2742
    %2895 = vmatprep.subr.mxu0 0.0
    %2896 = vmatpush1.msra.mxu0 %v2741
    %2897 = vmatprep.subr.mxu0 0.0
    %2898 = vmatpush2.msra.mxu0 0.0
    %2899 = vmatprep.subr.mxu0 0.0
    %2900 = vmatpush2.msra.mxu0 0.0
    %2901 = vmatprep.subr.mxu0 0.0
    %2902 = vmatpush2.msra.mxu0 0.0
    %2903 = vmatprep.subr.mxu0 0.0
    %2904 = vmatpush2.msra.mxu0 0.0
    %2905 = vmatprep.subr.mxu0 0.0
    %2906 = vmatpush2.msra.mxu0 0.0
    %2907 = vmatprep.subr.mxu0 0.0
    %2908 = vmatpush2.msra.mxu0 0.0
    %2909 = vmatprep.subr.mxu0 0.0
    %2910 = vmatpush2.msra.mxu0 0.0
    %2911 = vmatprep.subr.mxu0 0.0
    %2912 = vmatpush2.msra.mxu0 0.0
    %2913 = vmatprep.subr.mxu0 0.0
    %2914 = vmatpush2.msra.mxu0 0.0
    %2915 = vmatprep.subr.mxu0 0.0
    %2916 = vmatpush2.msra.mxu0 0.0
    %2917 = vmatprep.subr.mxu0 0.0
    %2918 = vmatpush2.msra.mxu0 0.0
    %2919 = vmatprep.subr.mxu0 0.0
    %2920 = vmatpush2.msra.mxu0 0.0
    %2921 = vmatprep.subr.mxu0 0.0
    %2922 = vmatpush2.msra.mxu0 0.0
    %2923 = vmatprep.subr.mxu0 0.0
    %2924 = vmatpush2.msra.mxu0 0.0
    %2925 = vmatprep.subr.mxu0 0.0
    %2926 = vmatpush2.msra.mxu0 0.0
    %2927 = vmatprep.subr.mxu0 0.0
    %2928 = vmatpush2.msra.mxu0 0.0
    %2929 = vmatprep.mubr.f32.mxu0 0.0
    %2930 = vmatmul.mubr.f32.gmra.mxu0 %v2859
    %v2931 = vpop.f32.mrf.mxu0
    %v2932 = vadd.f32 %v2864, %v2931
    %v2933 = vpop.f32.mrf.mxu0
    %2934 = vmatprep.mubr.f32.mxu0 0.0
    %2935 = vmatmul.mubr.f32.gmra.mxu0 %v2860
    %v2936 = vpop.f32.mrf.mxu0
    %v2937 = vadd.f32 %v2864, %v2936
    %v2938 = vpop.f32.mrf.mxu0
    %2939 = vdwg.mxu0
    %v2940 = vadd.f32 %v2694, %v2932
    %v2941 = vadd.f32 %v2695, %v2937
    %v2942 = vld [vmem:[#allocation2 + $0x2a8] sm:$0x1]
    %v2943 = vld [vmem:[#allocation2 + $0x2b0] sm:$0x1]
    %v2944 = vsel %vm255, %v2940, 0.0
    %2945 = vadd.xlane.f32.xlu0 %v2944
    %v2946 = vpop.xlane.xlu0 %2945
    %v2947 = vsel %vm255, %v2941, 0.0
    %2948 = vadd.xlane.f32.xlu0 %v2947
    %v2949 = vpop.xlane.xlu0 %2948
    %v2950 = vmul.f32 %v2946, %v262
    %v2951 = vmul.f32 %v2949, %v262
    %v2952 = vsub.f32 %v2940, %v2950
    %v2953 = vsub.f32 %v2941, %v2951
    %v2954 = vmul.f32 %v2952, %v2952
    %v2955 = vmul.f32 %v2953, %v2953
    %v2956 = vsel %vm255, %v2954, 0.0
    %2957 = vadd.xlane.f32.xlu0 %v2956
    %v2958 = vpop.xlane.xlu0 %2957
    %v2959 = vsel %vm255, %v2955, 0.0
    %2960 = vadd.xlane.f32.xlu0 %v2959
    %v2961 = vpop.xlane.xlu0 %2960
    %v2962 = vmul.f32 %v2958, %v262
    %v2963 = vmul.f32 %v2961, %v262
    %v2964 = vadd.f32 %v2962, 1e-05
    %v2965 = vadd.f32 %v2963, 1e-05
    %v2966 = vrsqrt.pop %v2964
    %v2967 = vrsqrt.pop %v2965
    %v2968 = vmul.f32 %v2952, %v2966
    %v2969 = vmul.f32 %v2953, %v2967
    %v2970 = vlaneseq
    %v2971 = vshrl.u32 %v2970, 7
    %v2972 = vsub.s32 0, %v2971
    %v2973 = vrot.slane %v2942, %v2972
    %v2974 = vmul.f32 %v2968, %v2973
    %v2975 = vmul.f32 %v2969, %v2973
    %v2976 = vlaneseq
    %v2977 = vshrl.u32 %v2976, 7
    %v2978 = vsub.s32 0, %v2977
    %v2979 = vrot.slane %v2943, %v2978
    %v2980 = vadd.f32 %v2974, %v2979
    %v2981 = vadd.f32 %v2975, %v2979
    %v2982 = vld [vmem:[#allocation2 + $0x2b8] sm:$0x1]
    %v2983 = vld [vmem:[#allocation2 + $0x2c0] sm:$0x1]
    %v2984 = vsel %vm255, %v243, 0.0
    %2985 = vadd.xlane.f32.xlu0 %v2984
    %v2986 = vpop.xlane.xlu0 %2985
    %v2987 = vsel %vm255, %v248, 0.0
    %2988 = vadd.xlane.f32.xlu0 %v2987
    %v2989 = vpop.xlane.xlu0 %2988
    %v2990 = vmul.f32 %v2986, %v262
    %v2991 = vmul.f32 %v2989, %v262
    %v2992 = vsub.f32 %v243, %v2990
    %v2993 = vsub.f32 %v248, %v2991
    %v2994 = vmul.f32 %v2992, %v2992
    %v2995 = vmul.f32 %v2993, %v2993
    %v2996 = vsel %vm255, %v2994, 0.0
    %2997 = vadd.xlane.f32.xlu0 %v2996
    %v2998 = vpop.xlane.xlu0 %2997
    %v2999 = vsel %vm255, %v2995, 0.0
    %3000 = vadd.xlane.f32.xlu0 %v2999
    %v3001 = vpop.xlane.xlu0 %3000
    %v3002 = vmul.f32 %v2998, %v262
    %v3003 = vmul.f32 %v3001, %v262
    %v3004 = vadd.f32 %v3002, 1e-05
    %v3005 = vadd.f32 %v3003, 1e-05
    %v3006 = vrsqrt.pop %v3004
    %v3007 = vrsqrt.pop %v3005
    %v3008 = vmul.f32 %v2992, %v3006
    %v3009 = vmul.f32 %v2993, %v3007
    %v3010 = vlaneseq
    %v3011 = vshrl.u32 %v3010, 7
    %v3012 = vsub.s32 0, %v3011
    %v3013 = vrot.slane %v2982, %v3012
    %v3014 = vmul.f32 %v3008, %v3013
    %v3015 = vmul.f32 %v3009, %v3013
    %v3016 = vlaneseq
    %v3017 = vshrl.u32 %v3016, 7
    %v3018 = vsub.s32 0, %v3017
    %v3019 = vrot.slane %v2983, %v3018
    %v3020 = vadd.f32 %v3014, %v3019
    %v3021 = vadd.f32 %v3015, %v3019
    %v3022 = vld [vmem:[#allocation2 + $0x2c8] sm:$0xff]
    %v3023 = vld [vmem:[#allocation2 + $0x2d0] sm:$0xff]
    %v3024 = vld [vmem:[#allocation2 + $0x2d8] sm:$0xff]
    %v3025 = vld [vmem:[#allocation2 + $0x2e0] sm:$0xff]
    %v3026 = vld [vmem:[#allocation2 + $0x2e8] sm:$0x1]
    %v3027 = vlaneseq
    %v3028 = vshrl.u32 %v3027, 7
    %v3029 = vsub.s32 0, %v3028
    %v3030 = vrot.slane %v3026, %v3029
    %v3032 = vsel %vm255, %v3020, 0
    %v3035 = vsel %vm255, %v3021, 0
    %3037 = vmatprep.subr.mxu0 0.0
    %3038 = vmatpush1.msra.mxu0 0.0
    %3039 = vmatprep.subr.mxu0 0.0
    %3040 = vmatpush1.msra.mxu0 0.0
    %3041 = vmatprep.subr.mxu0 0.0
    %3042 = vmatpush1.msra.mxu0 0.0
    %3043 = vmatprep.subr.mxu0 0.0
    %3044 = vmatpush1.msra.mxu0 0.0
    %3045 = vmatprep.subr.mxu0 0.0
    %3046 = vmatpush1.msra.mxu0 0.0
    %3047 = vmatprep.subr.mxu0 0.0
    %3048 = vmatpush1.msra.mxu0 0.0
    %3049 = vmatprep.subr.mxu0 0.0
    %3050 = vmatpush1.msra.mxu0 0.0
    %3051 = vmatprep.subr.mxu0 0.0
    %3052 = vmatpush1.msra.mxu0 0.0
    %3053 = vmatprep.subr.mxu0 0.0
    %3054 = vmatpush1.msra.mxu0 0.0
    %3055 = vmatprep.subr.mxu0 0.0
    %3056 = vmatpush1.msra.mxu0 0.0
    %3057 = vmatprep.subr.mxu0 0.0
    %3058 = vmatpush1.msra.mxu0 0.0
    %3059 = vmatprep.subr.mxu0 0.0
    %3060 = vmatpush1.msra.mxu0 0.0
    %3061 = vmatprep.subr.mxu0 0.0
    %3062 = vmatpush1.msra.mxu0 %v3025
    %3063 = vmatprep.subr.mxu0 0.0
    %3064 = vmatpush1.msra.mxu0 %v3024
    %3065 = vmatprep.subr.mxu0 0.0
    %3066 = vmatpush1.msra.mxu0 %v3023
    %3067 = vmatprep.subr.mxu0 0.0
    %3068 = vmatpush1.msra.mxu0 %v3022
    %3069 = vmatprep.subr.mxu0 0.0
    %3070 = vmatpush2.msra.mxu0 0.0
    %3071 = vmatprep.subr.mxu0 0.0
    %3072 = vmatpush2.msra.mxu0 0.0
    %3073 = vmatprep.subr.mxu0 0.0
    %3074 = vmatpush2.msra.mxu0 0.0
    %3075 = vmatprep.subr.mxu0 0.0
    %3076 = vmatpush2.msra.mxu0 0.0
    %3077 = vmatprep.subr.mxu0 0.0
    %3078 = vmatpush2.msra.mxu0 0.0
    %3079 = vmatprep.subr.mxu0 0.0
    %3080 = vmatpush2.msra.mxu0 0.0
    %3081 = vmatprep.subr.mxu0 0.0
    %3082 = vmatpush2.msra.mxu0 0.0
    %3083 = vmatprep.subr.mxu0 0.0
    %3084 = vmatpush2.msra.mxu0 0.0
    %3085 = vmatprep.subr.mxu0 0.0
    %3086 = vmatpush2.msra.mxu0 0.0
    %3087 = vmatprep.subr.mxu0 0.0
    %3088 = vmatpush2.msra.mxu0 0.0
    %3089 = vmatprep.subr.mxu0 0.0
    %3090 = vmatpush2.msra.mxu0 0.0
    %3091 = vmatprep.subr.mxu0 0.0
    %3092 = vmatpush2.msra.mxu0 0.0
    %3093 = vmatprep.subr.mxu0 0.0
    %3094 = vmatpush2.msra.mxu0 0.0
    %3095 = vmatprep.subr.mxu0 0.0
    %3096 = vmatpush2.msra.mxu0 0.0
    %3097 = vmatprep.subr.mxu0 0.0
    %3098 = vmatpush2.msra.mxu0 0.0
    %3099 = vmatprep.subr.mxu0 0.0
    %3100 = vmatpush2.msra.mxu0 0.0
    %3101 = vmatprep.mubr.f32.mxu0 0.0
    %3102 = vmatmul.mubr.f32.gmra.mxu0 %v3032
    %v3103 = vpop.f32.mrf.mxu0
    %v3104 = vadd.f32 %v3030, %v3103
    %v3105 = vpop.f32.mrf.mxu0
    %3106 = vmatprep.mubr.f32.mxu0 0.0
    %3107 = vmatmul.mubr.f32.gmra.mxu0 %v3035
    %v3108 = vpop.f32.mrf.mxu0
    %v3109 = vadd.f32 %v3030, %v3108
    %v3110 = vpop.f32.mrf.mxu0
    %3111 = vdwg.mxu0
    %v3112 = vld [vmem:[#allocation2 + $0x2f0] sm:$0xff]
    %v3113 = vld [vmem:[#allocation2 + $0x2f8] sm:$0xff]
    %v3114 = vld [vmem:[#allocation2 + $0x300] sm:$0xff]
    %v3115 = vld [vmem:[#allocation2 + $0x308] sm:$0xff]
    %v3116 = vld [vmem:[#allocation2 + $0x310] sm:$0x1]
    %v3117 = vlaneseq
    %v3118 = vshrl.u32 %v3117, 7
    %v3119 = vsub.s32 0, %v3118
    %v3120 = vrot.slane %v3116, %v3119
    %v3122 = vsel %vm255, %v2980, 0
    %v3125 = vsel %vm255, %v2981, 0
    %3127 = vmatprep.subr.mxu0 0.0
    %3128 = vmatpush1.msra.mxu0 0.0
    %3129 = vmatprep.subr.mxu0 0.0
    %3130 = vmatpush1.msra.mxu0 0.0
    %3131 = vmatprep.subr.mxu0 0.0
    %3132 = vmatpush1.msra.mxu0 0.0
    %3133 = vmatprep.subr.mxu0 0.0
    %3134 = vmatpush1.msra.mxu0 0.0
    %3135 = vmatprep.subr.mxu0 0.0
    %3136 = vmatpush1.msra.mxu0 0.0
    %3137 = vmatprep.subr.mxu0 0.0
    %3138 = vmatpush1.msra.mxu0 0.0
    %3139 = vmatprep.subr.mxu0 0.0
    %3140 = vmatpush1.msra.mxu0 0.0
    %3141 = vmatprep.subr.mxu0 0.0
    %3142 = vmatpush1.msra.mxu0 0.0
    %3143 = vmatprep.subr.mxu0 0.0
    %3144 = vmatpush1.msra.mxu0 0.0
    %3145 = vmatprep.subr.mxu0 0.0
    %3146 = vmatpush1.msra.mxu0 0.0
    %3147 = vmatprep.subr.mxu0 0.0
    %3148 = vmatpush1.msra.mxu0 0.0
    %3149 = vmatprep.subr.mxu0 0.0
    %3150 = vmatpush1.msra.mxu0 0.0
    %3151 = vmatprep.subr.mxu0 0.0
    %3152 = vmatpush1.msra.mxu0 %v3115
    %3153 = vmatprep.subr.mxu0 0.0
    %3154 = vmatpush1.msra.mxu0 %v3114
    %3155 = vmatprep.subr.mxu0 0.0
    %3156 = vmatpush1.msra.mxu0 %v3113
    %3157 = vmatprep.subr.mxu0 0.0
    %3158 = vmatpush1.msra.mxu0 %v3112
    %3159 = vmatprep.subr.mxu0 0.0
    %3160 = vmatpush2.msra.mxu0 0.0
    %3161 = vmatprep.subr.mxu0 0.0
    %3162 = vmatpush2.msra.mxu0 0.0
    %3163 = vmatprep.subr.mxu0 0.0
    %3164 = vmatpush2.msra.mxu0 0.0
    %3165 = vmatprep.subr.mxu0 0.0
    %3166 = vmatpush2.msra.mxu0 0.0
    %3167 = vmatprep.subr.mxu0 0.0
    %3168 = vmatpush2.msra.mxu0 0.0
    %3169 = vmatprep.subr.mxu0 0.0
    %3170 = vmatpush2.msra.mxu0 0.0
    %3171 = vmatprep.subr.mxu0 0.0
    %3172 = vmatpush2.msra.mxu0 0.0
    %3173 = vmatprep.subr.mxu0 0.0
    %3174 = vmatpush2.msra.mxu0 0.0
    %3175 = vmatprep.subr.mxu0 0.0
    %3176 = vmatpush2.msra.mxu0 0.0
    %3177 = vmatprep.subr.mxu0 0.0
    %3178 = vmatpush2.msra.mxu0 0.0
    %3179 = vmatprep.subr.mxu0 0.0
    %3180 = vmatpush2.msra.mxu0 0.0
    %3181 = vmatprep.subr.mxu0 0.0
    %3182 = vmatpush2.msra.mxu0 0.0
    %3183 = vmatprep.subr.mxu0 0.0
    %3184 = vmatpush2.msra.mxu0 0.0
    %3185 = vmatprep.subr.mxu0 0.0
    %3186 = vmatpush2.msra.mxu0 0.0
    %3187 = vmatprep.subr.mxu0 0.0
    %3188 = vmatpush2.msra.mxu0 0.0
    %3189 = vmatprep.subr.mxu0 0.0
    %3190 = vmatpush2.msra.mxu0 0.0
    %3191 = vmatprep.mubr.f32.mxu0 0.0
    %3192 = vmatmul.mubr.f32.gmra.mxu0 %v3122
    %v3193 = vpop.f32.mrf.mxu0
    %v3194 = vadd.f32 %v3120, %v3193
    %v3195 = vpop.f32.mrf.mxu0
    %3196 = vmatprep.mubr.f32.mxu0 0.0
    %3197 = vmatmul.mubr.f32.gmra.mxu0 %v3125
    %v3198 = vpop.f32.mrf.mxu0
    %v3199 = vadd.f32 %v3120, %v3198
    %v3200 = vpop.f32.mrf.mxu0
    %3201 = vdwg.mxu0
    %3202 = vmatprep.subr.mxu0 0.0
    %3203 = vmatpush1.msra.mxu0 0.0
    %3204 = vmatprep.subr.mxu0 0.0
    %3205 = vmatpush1.msra.mxu0 0.0
    %3206 = vmatprep.subr.mxu0 0.0
    %3207 = vmatpush1.msra.mxu0 0.0
    %3208 = vmatprep.subr.mxu0 0.0
    %3209 = vmatpush1.msra.mxu0 0.0
    %3210 = vmatprep.subr.mxu0 0.0
    %3211 = vmatpush1.msra.mxu0 0.0
    %3212 = vmatprep.subr.mxu0 0.0
    %3213 = vmatpush1.msra.mxu0 0.0
    %3214 = vmatprep.subr.mxu0 0.0
    %3215 = vmatpush1.msra.mxu0 0.0
    %3216 = vmatprep.subr.mxu0 0.0
    %3217 = vmatpush1.msra.mxu0 0.0
    %3218 = vmatprep.subr.mxu0 0.0
    %3219 = vmatpush1.msra.mxu0 0.0
    %3220 = vmatprep.subr.mxu0 0.0
    %3221 = vmatpush1.msra.mxu0 0.0
    %3222 = vmatprep.subr.mxu0 0.0
    %3223 = vmatpush1.msra.mxu0 0.0
    %3224 = vmatprep.subr.mxu0 0.0
    %3225 = vmatpush1.msra.mxu0 0.0
    %3226 = vmatprep.subr.mxu0 0.0
    %3227 = vmatpush1.msra.mxu0 0.0
    %3228 = vmatprep.subr.mxu0 0.0
    %3229 = vmatpush1.msra.mxu0 0.0
    %3230 = vmatprep.subr.mxu0 0.0
    %3231 = vmatpush1.msra.mxu0 %v3199
    %3232 = vmatprep.subr.mxu0 0.0
    %3233 = vmatpush1.msra.mxu0 %v3194
    %3234 = vmatprep.subr.mxu0 0.0
    %3235 = vmatpush2.msra.mxu0 0.0
    %3236 = vmatprep.subr.mxu0 0.0
    %3237 = vmatpush2.msra.mxu0 0.0
    %3238 = vmatprep.subr.mxu0 0.0
    %3239 = vmatpush2.msra.mxu0 0.0
    %3240 = vmatprep.subr.mxu0 0.0
    %3241 = vmatpush2.msra.mxu0 0.0
    %3242 = vmatprep.subr.mxu0 0.0
    %3243 = vmatpush2.msra.mxu0 0.0
    %3244 = vmatprep.subr.mxu0 0.0
    %3245 = vmatpush2.msra.mxu0 0.0
    %3246 = vmatprep.subr.mxu0 0.0
    %3247 = vmatpush2.msra.mxu0 0.0
    %3248 = vmatprep.subr.mxu0 0.0
    %3249 = vmatpush2.msra.mxu0 0.0
    %3250 = vmatprep.subr.mxu0 0.0
    %3251 = vmatpush2.msra.mxu0 0.0
    %3252 = vmatprep.subr.mxu0 0.0
    %3253 = vmatpush2.msra.mxu0 0.0
    %3254 = vmatprep.subr.mxu0 0.0
    %3255 = vmatpush2.msra.mxu0 0.0
    %3256 = vmatprep.subr.mxu0 0.0
    %3257 = vmatpush2.msra.mxu0 0.0
    %3258 = vmatprep.subr.mxu0 0.0
    %3259 = vmatpush2.msra.mxu0 0.0
    %3260 = vmatprep.subr.mxu0 0.0
    %3261 = vmatpush2.msra.mxu0 0.0
    %3262 = vmatprep.subr.mxu0 0.0
    %3263 = vmatpush2.msra.mxu0 0.0
    %3264 = vmatprep.subr.mxu0 0.0
    %3265 = vmatpush2.msra.mxu0 0.0
    %3266 = vmatprep.mubr.f32.mxu0 0.0
    %3267 = vmatmul.mubr.f32.gmra.mxu0 %v746
    %v3268 = vpop.f32.mrf.mxu0
    %v3269 = vadd.f32 0.0, %v3268
    %v3270 = vpop.f32.mrf.mxu0
    %3271 = vmatprep.mubr.f32.mxu0 0.0
    %3272 = vmatmul.mubr.f32.gmra.mxu0 %v749
    %v3273 = vpop.f32.mrf.mxu0
    %v3274 = vadd.f32 0.0, %v3273
    %v3275 = vpop.f32.mrf.mxu0
    %3276 = vmatprep.mubr.f32.mxu0 0.0
    %3277 = vmatmul.mubr.f32.gmra.mxu0 %v752
    %v3278 = vpop.f32.mrf.mxu0
    %v3279 = vadd.f32 0.0, %v3278
    %v3280 = vpop.f32.mrf.mxu0
    %3281 = vmatprep.mubr.f32.mxu0 0.0
    %3282 = vmatmul.mubr.f32.gmra.mxu0 %v755
    %v3283 = vpop.f32.mrf.mxu0
    %v3284 = vadd.f32 0.0, %v3283
    %v3285 = vpop.f32.mrf.mxu0
    %3286 = vmatprep.mubr.f32.mxu0 0.0
    %3287 = vmatmul.mubr.f32.gmra.mxu0 %v758
    %v3288 = vpop.f32.mrf.mxu0
    %v3289 = vadd.f32 0.0, %v3288
    %v3290 = vpop.f32.mrf.mxu0
    %3291 = vmatprep.mubr.f32.mxu0 0.0
    %3292 = vmatmul.mubr.f32.gmra.mxu0 %v761
    %v3293 = vpop.f32.mrf.mxu0
    %v3294 = vadd.f32 0.0, %v3293
    %v3295 = vpop.f32.mrf.mxu0
    %3296 = vmatprep.mubr.f32.mxu0 0.0
    %3297 = vmatmul.mubr.f32.gmra.mxu0 %v764
    %v3298 = vpop.f32.mrf.mxu0
    %v3299 = vadd.f32 0.0, %v3298
    %v3300 = vpop.f32.mrf.mxu0
    %3301 = vmatprep.mubr.f32.mxu0 0.0
    %3302 = vmatmul.mubr.f32.gmra.mxu0 %v767
    %v3303 = vpop.f32.mrf.mxu0
    %v3304 = vadd.f32 0.0, %v3303
    %v3305 = vpop.f32.mrf.mxu0
    %3306 = vdwg.mxu0
    %v3307 = vmul.f32 %v3269, %v45
    %v3308 = vmul.f32 %v3274, %v46
    %v3309 = vmul.f32 %v3279, %v47
    %v3310 = vmul.f32 %v3284, %v48
    %v3311 = vmul.f32 %v3289, %v49
    %v3312 = vmul.f32 %v3294, %v50
    %v3313 = vmul.f32 %v3299, %v51
    %v3314 = vmul.f32 %v3304, %v52
    %3317 = vrot.lane.b32.xlu0 %v3194, 96
    %v3318 = vpop.permute.xlu0 %3317
    %3319 = vrot.lane.b32.xlu0 %v3199, 96
    %v3320 = vpop.permute.xlu0 %3319
    %3323 = vmatprep.subr.mxu0 0.0
    %3324 = vmatpush1.msra.mxu0 0.0
    %3325 = vmatprep.subr.mxu0 0.0
    %3326 = vmatpush1.msra.mxu0 0.0
    %3327 = vmatprep.subr.mxu0 0.0
    %3328 = vmatpush1.msra.mxu0 0.0
    %3329 = vmatprep.subr.mxu0 0.0
    %3330 = vmatpush1.msra.mxu0 0.0
    %3331 = vmatprep.subr.mxu0 0.0
    %3332 = vmatpush1.msra.mxu0 0.0
    %3333 = vmatprep.subr.mxu0 0.0
    %3334 = vmatpush1.msra.mxu0 0.0
    %3335 = vmatprep.subr.mxu0 0.0
    %3336 = vmatpush1.msra.mxu0 0.0
    %3337 = vmatprep.subr.mxu0 0.0
    %3338 = vmatpush1.msra.mxu0 0.0
    %3339 = vmatprep.subr.mxu0 0.0
    %3340 = vmatpush1.msra.mxu0 0.0
    %3341 = vmatprep.subr.mxu0 0.0
    %3342 = vmatpush1.msra.mxu0 0.0
    %3343 = vmatprep.subr.mxu0 0.0
    %3344 = vmatpush1.msra.mxu0 0.0
    %3345 = vmatprep.subr.mxu0 0.0
    %3346 = vmatpush1.msra.mxu0 0.0
    %3347 = vmatprep.subr.mxu0 0.0
    %3348 = vmatpush1.msra.mxu0 0.0
    %3349 = vmatprep.subr.mxu0 0.0
    %3350 = vmatpush1.msra.mxu0 0.0
    %3351 = vmatprep.subr.mxu0 0.0
    %3352 = vmatpush1.msra.mxu0 %v3320
    %3353 = vmatprep.subr.mxu0 0.0
    %3354 = vmatpush1.msra.mxu0 %v3318
    %3355 = vmatprep.subr.mxu0 0.0
    %3356 = vmatpush2.msra.mxu0 0.0
    %3357 = vmatprep.subr.mxu0 0.0
    %3358 = vmatpush2.msra.mxu0 0.0
    %3359 = vmatprep.subr.mxu0 0.0
    %3360 = vmatpush2.msra.mxu0 0.0
    %3361 = vmatprep.subr.mxu0 0.0
    %3362 = vmatpush2.msra.mxu0 0.0
    %3363 = vmatprep.subr.mxu0 0.0
    %3364 = vmatpush2.msra.mxu0 0.0
    %3365 = vmatprep.subr.mxu0 0.0
    %3366 = vmatpush2.msra.mxu0 0.0
    %3367 = vmatprep.subr.mxu0 0.0
    %3368 = vmatpush2.msra.mxu0 0.0
    %3369 = vmatprep.subr.mxu0 0.0
    %3370 = vmatpush2.msra.mxu0 0.0
    %3371 = vmatprep.subr.mxu0 0.0
    %3372 = vmatpush2.msra.mxu0 0.0
    %3373 = vmatprep.subr.mxu0 0.0
    %3374 = vmatpush2.msra.mxu0 0.0
    %3375 = vmatprep.subr.mxu0 0.0
    %3376 = vmatpush2.msra.mxu0 0.0
    %3377 = vmatprep.subr.mxu0 0.0
    %3378 = vmatpush2.msra.mxu0 0.0
    %3379 = vmatprep.subr.mxu0 0.0
    %3380 = vmatpush2.msra.mxu0 0.0
    %3381 = vmatprep.subr.mxu0 0.0
    %3382 = vmatpush2.msra.mxu0 0.0
    %3383 = vmatprep.subr.mxu0 0.0
    %3384 = vmatpush2.msra.mxu0 0.0
    %3385 = vmatprep.subr.mxu0 0.0
    %3386 = vmatpush2.msra.mxu0 0.0
    %3387 = vmatprep.mubr.f32.mxu0 0.0
    %3388 = vmatmul.mubr.f32.gmra.mxu0 %v746
    %v3389 = vpop.f32.mrf.mxu0
    %v3390 = vadd.f32 0.0, %v3389
    %v3391 = vpop.f32.mrf.mxu0
    %3392 = vmatprep.mubr.f32.mxu0 0.0
    %3393 = vmatmul.mubr.f32.gmra.mxu0 %v749
    %v3394 = vpop.f32.mrf.mxu0
    %v3395 = vadd.f32 0.0, %v3394
    %v3396 = vpop.f32.mrf.mxu0
    %3397 = vmatprep.mubr.f32.mxu0 0.0
    %3398 = vmatmul.mubr.f32.gmra.mxu0 %v752
    %v3399 = vpop.f32.mrf.mxu0
    %v3400 = vadd.f32 0.0, %v3399
    %v3401 = vpop.f32.mrf.mxu0
    %3402 = vmatprep.mubr.f32.mxu0 0.0
    %3403 = vmatmul.mubr.f32.gmra.mxu0 %v755
    %v3404 = vpop.f32.mrf.mxu0
    %v3405 = vadd.f32 0.0, %v3404
    %v3406 = vpop.f32.mrf.mxu0
    %3407 = vmatprep.mubr.f32.mxu0 0.0
    %3408 = vmatmul.mubr.f32.gmra.mxu0 %v758
    %v3409 = vpop.f32.mrf.mxu0
    %v3410 = vadd.f32 0.0, %v3409
    %v3411 = vpop.f32.mrf.mxu0
    %3412 = vmatprep.mubr.f32.mxu0 0.0
    %3413 = vmatmul.mubr.f32.gmra.mxu0 %v761
    %v3414 = vpop.f32.mrf.mxu0
    %v3415 = vadd.f32 0.0, %v3414
    %v3416 = vpop.f32.mrf.mxu0
    %3417 = vmatprep.mubr.f32.mxu0 0.0
    %3418 = vmatmul.mubr.f32.gmra.mxu0 %v764
    %v3419 = vpop.f32.mrf.mxu0
    %v3420 = vadd.f32 0.0, %v3419
    %v3421 = vpop.f32.mrf.mxu0
    %3422 = vmatprep.mubr.f32.mxu0 0.0
    %3423 = vmatmul.mubr.f32.gmra.mxu0 %v767
    %v3424 = vpop.f32.mrf.mxu0
    %v3425 = vadd.f32 0.0, %v3424
    %v3426 = vpop.f32.mrf.mxu0
    %3427 = vdwg.mxu0
    %v3428 = vmul.f32 %v3390, %v45
    %v3429 = vmul.f32 %v3395, %v46
    %v3430 = vmul.f32 %v3400, %v47
    %v3431 = vmul.f32 %v3405, %v48
    %v3432 = vmul.f32 %v3410, %v49
    %v3433 = vmul.f32 %v3415, %v50
    %v3434 = vmul.f32 %v3420, %v51
    %v3435 = vmul.f32 %v3425, %v52
    %v3437 = vsel %vm255, %v3104, 0
    %v3440 = vsel %vm255, %v3109, 0
    %v3443 = vsel %vm255, %v3307, 0
    %v3446 = vsel %vm255, %v3308, 0
    %v3449 = vsel %vm255, %v3309, 0
    %v3452 = vsel %vm255, %v3310, 0
    %v3455 = vsel %vm255, %v3311, 0
    %v3458 = vsel %vm255, %v3312, 0
    %v3461 = vsel %vm255, %v3313, 0
    %v3464 = vsel %vm255, %v3314, 0
    %3466 = vmatprep.subr.mxu0 0.0
    %3467 = vmatpush1.xpose.msra.mxu0 0.0
    %3468 = vmatprep.subr.mxu0 0.0
    %3469 = vmatpush1.xpose.msra.mxu0 0.0
    %3470 = vmatprep.subr.mxu0 0.0
    %3471 = vmatpush1.xpose.msra.mxu0 0.0
    %3472 = vmatprep.subr.mxu0 0.0
    %3473 = vmatpush1.xpose.msra.mxu0 0.0
    %3474 = vmatprep.subr.mxu0 0.0
    %3475 = vmatpush1.xpose.msra.mxu0 0.0
    %3476 = vmatprep.subr.mxu0 0.0
    %3477 = vmatpush1.xpose.msra.mxu0 0.0
    %3478 = vmatprep.subr.mxu0 0.0
    %3479 = vmatpush1.xpose.msra.mxu0 0.0
    %3480 = vmatprep.subr.mxu0 0.0
    %3481 = vmatpush1.xpose.msra.mxu0 0.0
    %3482 = vmatprep.subr.mxu0 0.0
    %3483 = vmatpush1.xpose.msra.mxu0 %v3464
    %3484 = vmatprep.subr.mxu0 0.0
    %3485 = vmatpush1.xpose.msra.mxu0 %v3461
    %3486 = vmatprep.subr.mxu0 0.0
    %3487 = vmatpush1.xpose.msra.mxu0 %v3458
    %3488 = vmatprep.subr.mxu0 0.0
    %3489 = vmatpush1.xpose.msra.mxu0 %v3455
    %3490 = vmatprep.subr.mxu0 0.0
    %3491 = vmatpush1.xpose.msra.mxu0 %v3452
    %3492 = vmatprep.subr.mxu0 0.0
    %3493 = vmatpush1.xpose.msra.mxu0 %v3449
    %3494 = vmatprep.subr.mxu0 0.0
    %3495 = vmatpush1.xpose.msra.mxu0 %v3446
    %3496 = vmatprep.subr.mxu0 0.0
    %3497 = vmatpush1.xpose.msra.mxu0 %v3443
    %3498 = vmatprep.subr.mxu0 0.0
    %3499 = vmatpush2.xpose.msra.mxu0 0.0
    %3500 = vmatprep.subr.mxu0 0.0
    %3501 = vmatpush2.xpose.msra.mxu0 0.0
    %3502 = vmatprep.subr.mxu0 0.0
    %3503 = vmatpush2.xpose.msra.mxu0 0.0
    %3504 = vmatprep.subr.mxu0 0.0
    %3505 = vmatpush2.xpose.msra.mxu0 0.0
    %3506 = vmatprep.subr.mxu0 0.0
    %3507 = vmatpush2.xpose.msra.mxu0 0.0
    %3508 = vmatprep.subr.mxu0 0.0
    %3509 = vmatpush2.xpose.msra.mxu0 0.0
    %3510 = vmatprep.subr.mxu0 0.0
    %3511 = vmatpush2.xpose.msra.mxu0 0.0
    %3512 = vmatprep.subr.mxu0 0.0
    %3513 = vmatpush2.xpose.msra.mxu0 0.0
    %3514 = vmatprep.subr.mxu0 0.0
    %3515 = vmatpush2.xpose.msra.mxu0 0.0
    %3516 = vmatprep.subr.mxu0 0.0
    %3517 = vmatpush2.xpose.msra.mxu0 0.0
    %3518 = vmatprep.subr.mxu0 0.0
    %3519 = vmatpush2.xpose.msra.mxu0 0.0
    %3520 = vmatprep.subr.mxu0 0.0
    %3521 = vmatpush2.xpose.msra.mxu0 0.0
    %3522 = vmatprep.subr.mxu0 0.0
    %3523 = vmatpush2.xpose.msra.mxu0 0.0
    %3524 = vmatprep.subr.mxu0 0.0
    %3525 = vmatpush2.xpose.msra.mxu0 0.0
    %3526 = vmatprep.subr.mxu0 0.0
    %3527 = vmatpush2.xpose.msra.mxu0 0.0
    %3528 = vmatprep.subr.mxu0 0.0
    %3529 = vmatpush2.xpose.msra.mxu0 0.0
    %3530 = vmatprep.mubr.f32.mxu0 0.0
    %3531 = vmatmul.mubr.f32.gmra.mxu0 %v3437
    %v3532 = vpop.f32.mrf.mxu0
    %v3533 = vadd.f32 0.0, %v3532
    %v3534 = vpop.f32.mrf.mxu0
    %3535 = vmatprep.mubr.f32.mxu0 0.0
    %3536 = vmatmul.mubr.f32.gmra.mxu0 %v3440
    %v3537 = vpop.f32.mrf.mxu0
    %v3538 = vadd.f32 0.0, %v3537
    %v3539 = vpop.f32.mrf.mxu0
    %3540 = vdwg.mxu0
    %v3541 = vmul.f32 %v3533, 0.35355338
    %v3542 = vmul.f32 %v3538, 0.35355338
    %vm3543 = vcmp.gt.f32.partialorder %v55, 0.5
    %vm3544 = vcmp.gt.f32.partialorder %v56, 0.5
    %v3545 = vsel %vm3543, %v3541, -1e+30
    %v3546 = vsel %vm3544, %v3542, -1e+30
    %v3547 = vsel %vm1003, %v3545, -inf
    %3548 = vmax.xlane.f32.xlu0 %v3547
    %v3549 = vpop.xlane.xlu0 %3548
    %v3550 = vsel %vm1003, %v3546, -inf
    %3551 = vmax.xlane.f32.xlu0 %v3550
    %v3552 = vpop.xlane.xlu0 %3551
    %v3553 = vsub.f32 %v3545, %v3549
    %v3554 = vsub.f32 %v3546, %v3552
    %v3555 = vmul.f32 %v3553, 1.442695
    %v3556 = vpow.pop %v3555
    %v3557 = vmul.f32 %v3554, 1.442695
    %v3558 = vpow.pop %v3557
    %v3559 = vmul.f32 %v3556, %v55
    %v3560 = vmul.f32 %v3558, %v56
    %v3562 = vsel %vm1003, %v3559, 0
    %v3565 = vsel %vm1003, %v3560, 0
    %3567 = vmatprep.subr.mxu0 0.0
    %3568 = vmatpush1.msra.mxu0 0.0
    %3569 = vmatprep.subr.mxu0 0.0
    %3570 = vmatpush1.msra.mxu0 0.0
    %3571 = vmatprep.subr.mxu0 0.0
    %3572 = vmatpush1.msra.mxu0 0.0
    %3573 = vmatprep.subr.mxu0 0.0
    %3574 = vmatpush1.msra.mxu0 0.0
    %3575 = vmatprep.subr.mxu0 0.0
    %3576 = vmatpush1.msra.mxu0 0.0
    %3577 = vmatprep.subr.mxu0 0.0
    %3578 = vmatpush1.msra.mxu0 0.0
    %3579 = vmatprep.subr.mxu0 0.0
    %3580 = vmatpush1.msra.mxu0 0.0
    %3581 = vmatprep.subr.mxu0 0.0
    %3582 = vmatpush1.msra.mxu0 0.0
    %3583 = vmatprep.subr.mxu0 0.0
    %3584 = vmatpush1.msra.mxu0 %v3435
    %3585 = vmatprep.subr.mxu0 0.0
    %3586 = vmatpush1.msra.mxu0 %v3434
    %3587 = vmatprep.subr.mxu0 0.0
    %3588 = vmatpush1.msra.mxu0 %v3433
    %3589 = vmatprep.subr.mxu0 0.0
    %3590 = vmatpush1.msra.mxu0 %v3432
    %3591 = vmatprep.subr.mxu0 0.0
    %3592 = vmatpush1.msra.mxu0 %v3431
    %3593 = vmatprep.subr.mxu0 0.0
    %3594 = vmatpush1.msra.mxu0 %v3430
    %3595 = vmatprep.subr.mxu0 0.0
    %3596 = vmatpush1.msra.mxu0 %v3429
    %3597 = vmatprep.subr.mxu0 0.0
    %3598 = vmatpush1.msra.mxu0 %v3428
    %3599 = vmatprep.subr.mxu0 0.0
    %3600 = vmatpush2.msra.mxu0 0.0
    %3601 = vmatprep.subr.mxu0 0.0
    %3602 = vmatpush2.msra.mxu0 0.0
    %3603 = vmatprep.subr.mxu0 0.0
    %3604 = vmatpush2.msra.mxu0 0.0
    %3605 = vmatprep.subr.mxu0 0.0
    %3606 = vmatpush2.msra.mxu0 0.0
    %3607 = vmatprep.subr.mxu0 0.0
    %3608 = vmatpush2.msra.mxu0 0.0
    %3609 = vmatprep.subr.mxu0 0.0
    %3610 = vmatpush2.msra.mxu0 0.0
    %3611 = vmatprep.subr.mxu0 0.0
    %3612 = vmatpush2.msra.mxu0 0.0
    %3613 = vmatprep.subr.mxu0 0.0
    %3614 = vmatpush2.msra.mxu0 0.0
    %3615 = vmatprep.subr.mxu0 0.0
    %3616 = vmatpush2.msra.mxu0 0.0
    %3617 = vmatprep.subr.mxu0 0.0
    %3618 = vmatpush2.msra.mxu0 0.0
    %3619 = vmatprep.subr.mxu0 0.0
    %3620 = vmatpush2.msra.mxu0 0.0
    %3621 = vmatprep.subr.mxu0 0.0
    %3622 = vmatpush2.msra.mxu0 0.0
    %3623 = vmatprep.subr.mxu0 0.0
    %3624 = vmatpush2.msra.mxu0 0.0
    %3625 = vmatprep.subr.mxu0 0.0
    %3626 = vmatpush2.msra.mxu0 0.0
    %3627 = vmatprep.subr.mxu0 0.0
    %3628 = vmatpush2.msra.mxu0 0.0
    %3629 = vmatprep.subr.mxu0 0.0
    %3630 = vmatpush2.msra.mxu0 0.0
    %3631 = vmatprep.mubr.f32.mxu0 0.0
    %3632 = vmatmul.mubr.f32.gmra.mxu0 %v3562
    %v3633 = vpop.f32.mrf.mxu0
    %v3634 = vadd.f32 0.0, %v3633
    %v3635 = vpop.f32.mrf.mxu0
    %3636 = vmatprep.mubr.f32.mxu0 0.0
    %3637 = vmatmul.mubr.f32.gmra.mxu0 %v3565
    %v3638 = vpop.f32.mrf.mxu0
    %v3639 = vadd.f32 0.0, %v3638
    %v3640 = vpop.f32.mrf.mxu0
    %3641 = vdwg.mxu0
    %3642 = vmatprep.subr.mxu0 0.0
    %3643 = vmatpush1.msra.mxu0 0.0
    %3644 = vmatprep.subr.mxu0 0.0
    %3645 = vmatpush1.msra.mxu0 0.0
    %3646 = vmatprep.subr.mxu0 0.0
    %3647 = vmatpush1.msra.mxu0 0.0
    %3648 = vmatprep.subr.mxu0 0.0
    %3649 = vmatpush1.msra.mxu0 0.0
    %3650 = vmatprep.subr.mxu0 0.0
    %3651 = vmatpush1.msra.mxu0 0.0
    %3652 = vmatprep.subr.mxu0 0.0
    %3653 = vmatpush1.msra.mxu0 0.0
    %3654 = vmatprep.subr.mxu0 0.0
    %3655 = vmatpush1.msra.mxu0 0.0
    %3656 = vmatprep.subr.mxu0 0.0
    %3657 = vmatpush1.msra.mxu0 0.0
    %3658 = vmatprep.subr.mxu0 0.0
    %3659 = vmatpush1.msra.mxu0 %v52
    %3660 = vmatprep.subr.mxu0 0.0
    %3661 = vmatpush1.msra.mxu0 %v51
    %3662 = vmatprep.subr.mxu0 0.0
    %3663 = vmatpush1.msra.mxu0 %v50
    %3664 = vmatprep.subr.mxu0 0.0
    %3665 = vmatpush1.msra.mxu0 %v49
    %3666 = vmatprep.subr.mxu0 0.0
    %3667 = vmatpush1.msra.mxu0 %v48
    %3668 = vmatprep.subr.mxu0 0.0
    %3669 = vmatpush1.msra.mxu0 %v47
    %3670 = vmatprep.subr.mxu0 0.0
    %3671 = vmatpush1.msra.mxu0 %v46
    %3672 = vmatprep.subr.mxu0 0.0
    %3673 = vmatpush1.msra.mxu0 %v45
    %3674 = vmatprep.subr.mxu0 0.0
    %3675 = vmatpush2.msra.mxu0 0.0
    %3676 = vmatprep.subr.mxu0 0.0
    %3677 = vmatpush2.msra.mxu0 0.0
    %3678 = vmatprep.subr.mxu0 0.0
    %3679 = vmatpush2.msra.mxu0 0.0
    %3680 = vmatprep.subr.mxu0 0.0
    %3681 = vmatpush2.msra.mxu0 0.0
    %3682 = vmatprep.subr.mxu0 0.0
    %3683 = vmatpush2.msra.mxu0 0.0
    %3684 = vmatprep.subr.mxu0 0.0
    %3685 = vmatpush2.msra.mxu0 0.0
    %3686 = vmatprep.subr.mxu0 0.0
    %3687 = vmatpush2.msra.mxu0 0.0
    %3688 = vmatprep.subr.mxu0 0.0
    %3689 = vmatpush2.msra.mxu0 0.0
    %3690 = vmatprep.subr.mxu0 0.0
    %3691 = vmatpush2.msra.mxu0 0.0
    %3692 = vmatprep.subr.mxu0 0.0
    %3693 = vmatpush2.msra.mxu0 0.0
    %3694 = vmatprep.subr.mxu0 0.0
    %3695 = vmatpush2.msra.mxu0 0.0
    %3696 = vmatprep.subr.mxu0 0.0
    %3697 = vmatpush2.msra.mxu0 0.0
    %3698 = vmatprep.subr.mxu0 0.0
    %3699 = vmatpush2.msra.mxu0 0.0
    %3700 = vmatprep.subr.mxu0 0.0
    %3701 = vmatpush2.msra.mxu0 0.0
    %3702 = vmatprep.subr.mxu0 0.0
    %3703 = vmatpush2.msra.mxu0 0.0
    %3704 = vmatprep.subr.mxu0 0.0
    %3705 = vmatpush2.msra.mxu0 0.0
    %3706 = vmatprep.mubr.f32.mxu0 0.0
    %3707 = vmatmul.mubr.f32.gmra.mxu0 %v3562
    %v3708 = vpop.f32.mrf.mxu0
    %v3709 = vadd.f32 1e-09, %v3708
    %v3710 = vpop.f32.mrf.mxu0
    %3711 = vmatprep.mubr.f32.mxu0 0.0
    %3712 = vmatmul.mubr.f32.gmra.mxu0 %v3565
    %v3713 = vpop.f32.mrf.mxu0
    %v3714 = vadd.f32 1e-09, %v3713
    %v3715 = vpop.f32.mrf.mxu0
    %3716 = vdwg.mxu0
    %v3717 = vrcp.pop %v3709
    %v3718 = vrcp.pop %v3714
    %v3719 = vmul.f32 %v3634, %v3717
    %v3720 = vmul.f32 %v3639, %v3718
    %v3721 = vld [vmem:[#allocation2 + $0x318] sm:$0xff]
    %v3722 = vld [vmem:[#allocation2 + $0x320] sm:$0xff]
    %v3723 = vld [vmem:[#allocation2 + $0x328] sm:$0xff]
    %v3724 = vld [vmem:[#allocation2 + $0x330] sm:$0xff]
    %v3725 = vld [vmem:[#allocation2 + $0x338] sm:$0x1]
    %v3726 = vlaneseq
    %v3727 = vshrl.u32 %v3726, 7
    %v3728 = vsub.s32 0, %v3727
    %v3729 = vrot.slane %v3725, %v3728
    %v3731 = vsel %vm255, %v3719, 0
    %v3734 = vsel %vm255, %v3720, 0
    %3736 = vmatprep.subr.mxu0 0.0
    %3737 = vmatpush1.msra.mxu0 0.0
    %3738 = vmatprep.subr.mxu0 0.0
    %3739 = vmatpush1.msra.mxu0 0.0
    %3740 = vmatprep.subr.mxu0 0.0
    %3741 = vmatpush1.msra.mxu0 0.0
    %3742 = vmatprep.subr.mxu0 0.0
    %3743 = vmatpush1.msra.mxu0 0.0
    %3744 = vmatprep.subr.mxu0 0.0
    %3745 = vmatpush1.msra.mxu0 0.0
    %3746 = vmatprep.subr.mxu0 0.0
    %3747 = vmatpush1.msra.mxu0 0.0
    %3748 = vmatprep.subr.mxu0 0.0
    %3749 = vmatpush1.msra.mxu0 0.0
    %3750 = vmatprep.subr.mxu0 0.0
    %3751 = vmatpush1.msra.mxu0 0.0
    %3752 = vmatprep.subr.mxu0 0.0
    %3753 = vmatpush1.msra.mxu0 0.0
    %3754 = vmatprep.subr.mxu0 0.0
    %3755 = vmatpush1.msra.mxu0 0.0
    %3756 = vmatprep.subr.mxu0 0.0
    %3757 = vmatpush1.msra.mxu0 0.0
    %3758 = vmatprep.subr.mxu0 0.0
    %3759 = vmatpush1.msra.mxu0 0.0
    %3760 = vmatprep.subr.mxu0 0.0
    %3761 = vmatpush1.msra.mxu0 %v3724
    %3762 = vmatprep.subr.mxu0 0.0
    %3763 = vmatpush1.msra.mxu0 %v3723
    %3764 = vmatprep.subr.mxu0 0.0
    %3765 = vmatpush1.msra.mxu0 %v3722
    %3766 = vmatprep.subr.mxu0 0.0
    %3767 = vmatpush1.msra.mxu0 %v3721
    %3768 = vmatprep.subr.mxu0 0.0
    %3769 = vmatpush2.msra.mxu0 0.0
    %3770 = vmatprep.subr.mxu0 0.0
    %3771 = vmatpush2.msra.mxu0 0.0
    %3772 = vmatprep.subr.mxu0 0.0
    %3773 = vmatpush2.msra.mxu0 0.0
    %3774 = vmatprep.subr.mxu0 0.0
    %3775 = vmatpush2.msra.mxu0 0.0
    %3776 = vmatprep.subr.mxu0 0.0
    %3777 = vmatpush2.msra.mxu0 0.0
    %3778 = vmatprep.subr.mxu0 0.0
    %3779 = vmatpush2.msra.mxu0 0.0
    %3780 = vmatprep.subr.mxu0 0.0
    %3781 = vmatpush2.msra.mxu0 0.0
    %3782 = vmatprep.subr.mxu0 0.0
    %3783 = vmatpush2.msra.mxu0 0.0
    %3784 = vmatprep.subr.mxu0 0.0
    %3785 = vmatpush2.msra.mxu0 0.0
    %3786 = vmatprep.subr.mxu0 0.0
    %3787 = vmatpush2.msra.mxu0 0.0
    %3788 = vmatprep.subr.mxu0 0.0
    %3789 = vmatpush2.msra.mxu0 0.0
    %3790 = vmatprep.subr.mxu0 0.0
    %3791 = vmatpush2.msra.mxu0 0.0
    %3792 = vmatprep.subr.mxu0 0.0
    %3793 = vmatpush2.msra.mxu0 0.0
    %3794 = vmatprep.subr.mxu0 0.0
    %3795 = vmatpush2.msra.mxu0 0.0
    %3796 = vmatprep.subr.mxu0 0.0
    %3797 = vmatpush2.msra.mxu0 0.0
    %3798 = vmatprep.subr.mxu0 0.0
    %3799 = vmatpush2.msra.mxu0 0.0
    %3800 = vmatprep.mubr.f32.mxu0 0.0
    %3801 = vmatmul.mubr.f32.gmra.mxu0 %v3731
    %v3802 = vpop.f32.mrf.mxu0
    %v3803 = vadd.f32 %v3729, %v3802
    %v3804 = vpop.f32.mrf.mxu0
    %3805 = vmatprep.mubr.f32.mxu0 0.0
    %3806 = vmatmul.mubr.f32.gmra.mxu0 %v3734
    %v3807 = vpop.f32.mrf.mxu0
    %v3808 = vadd.f32 %v3729, %v3807
    %v3809 = vpop.f32.mrf.mxu0
    %3810 = vdwg.mxu0
    %v3811 = vlaneseq
    %v3812 = vshrl.u32 %v3811, 7
    %v3813 = vadd.s32 %v3812, 8
    %vm3814 = vcmp.eq.s32.totalorder %v3812, 0
    %vm3815 = vcmp.eq.s32.totalorder %v3813, 0
    %vm3816 = vcmp.eq.s32.totalorder %v3812, 8
    %vm3817 = vcmp.eq.s32.totalorder %v3813, 8
    %vm3818 = vmor %vm3814, %vm3816
    %vm3819 = vmor %vm3815, %vm3817
    %v3820 = vsel %vm3818, %v3020, %v3803
    %v3821 = vsel %vm3819, %v3021, %v3808
    %v3822 = vld [vmem:[#allocation2 + $0x340] sm:$0x1]
    %v3823 = vld [vmem:[#allocation2 + $0x348] sm:$0x1]
    %v3824 = vsel %vm255, %v3820, 0.0
    %3825 = vadd.xlane.f32.xlu0 %v3824
    %v3826 = vpop.xlane.xlu0 %3825
    %v3827 = vsel %vm255, %v3821, 0.0
    %3828 = vadd.xlane.f32.xlu0 %v3827
    %v3829 = vpop.xlane.xlu0 %3828
    %v3830 = vmul.f32 %v3826, %v262
    %v3831 = vmul.f32 %v3829, %v262
    %v3832 = vsub.f32 %v3820, %v3830
    %v3833 = vsub.f32 %v3821, %v3831
    %v3834 = vmul.f32 %v3832, %v3832
    %v3835 = vmul.f32 %v3833, %v3833
    %v3836 = vsel %vm255, %v3834, 0.0
    %3837 = vadd.xlane.f32.xlu0 %v3836
    %v3838 = vpop.xlane.xlu0 %3837
    %v3839 = vsel %vm255, %v3835, 0.0
    %3840 = vadd.xlane.f32.xlu0 %v3839
    %v3841 = vpop.xlane.xlu0 %3840
    %v3842 = vmul.f32 %v3838, %v262
    %v3843 = vmul.f32 %v3841, %v262
    %v3844 = vadd.f32 %v3842, 1e-05
    %v3845 = vadd.f32 %v3843, 1e-05
    %v3846 = vrsqrt.pop %v3844
    %v3847 = vrsqrt.pop %v3845
    %v3848 = vmul.f32 %v3832, %v3846
    %v3849 = vmul.f32 %v3833, %v3847
    %v3850 = vlaneseq
    %v3851 = vshrl.u32 %v3850, 7
    %v3852 = vsub.s32 0, %v3851
    %v3853 = vrot.slane %v3822, %v3852
    %v3854 = vmul.f32 %v3848, %v3853
    %v3855 = vmul.f32 %v3849, %v3853
    %v3856 = vlaneseq
    %v3857 = vshrl.u32 %v3856, 7
    %v3858 = vsub.s32 0, %v3857
    %v3859 = vrot.slane %v3823, %v3858
    %v3860 = vadd.f32 %v3854, %v3859
    %v3861 = vadd.f32 %v3855, %v3859
    %v3862 = vld [vmem:[#allocation2 + $0x350] sm:$0xff]
    %v3863 = vld [vmem:[#allocation2 + $0x358] sm:$0xff]
    %v3864 = vld [vmem:[#allocation2 + $0x360] sm:$0xff]
    %v3865 = vld [vmem:[#allocation2 + $0x368] sm:$0xff]
    %v3866 = vld [vmem:[#allocation2 + $0x370] sm:$0x1]
    %v3867 = vld [vmem:[#allocation2 + $0x378] sm:$0xff]
    %v3868 = vld [vmem:[#allocation2 + $0x380] sm:$0xff]
    %v3869 = vld [vmem:[#allocation2 + $0x388] sm:$0xff]
    %v3870 = vld [vmem:[#allocation2 + $0x390] sm:$0xff]
    %v3871 = vld [vmem:[#allocation2 + $0x398] sm:$0xff]
    %v3872 = vld [vmem:[#allocation2 + $0x3a0] sm:$0xff]
    %v3873 = vld [vmem:[#allocation2 + $0x3a8] sm:$0xff]
    %v3874 = vld [vmem:[#allocation2 + $0x3b0] sm:$0xff]
    %v3875 = vld [vmem:[#allocation2 + $0x3b8] sm:$0xff]
    %v3876 = vld [vmem:[#allocation2 + $0x3c0] sm:$0xff]
    %v3877 = vld [vmem:[#allocation2 + $0x3c8] sm:$0xff]
    %v3878 = vld [vmem:[#allocation2 + $0x3d0] sm:$0xff]
    %v3879 = vld [vmem:[#allocation2 + $0x3d8] sm:$0xff]
    %v3880 = vld [vmem:[#allocation2 + $0x3e0] sm:$0xff]
    %v3881 = vld [vmem:[#allocation2 + $0x3e8] sm:$0xff]
    %v3882 = vld [vmem:[#allocation2 + $0x3f0] sm:$0xff]
    %v3883 = vld [vmem:[#allocation2 + $0x3f8] sm:$0x1]
    %v3884 = vlaneseq
    %v3885 = vshrl.u32 %v3884, 7
    %v3886 = vsub.s32 0, %v3885
    %v3887 = vrot.slane %v3866, %v3886
    %v3889 = vsel %vm255, %v3860, 0
    %v3892 = vsel %vm255, %v3861, 0
    %3894 = vmatprep.subr.mxu0 0.0
    %3895 = vmatpush1.msra.mxu0 0.0
    %3896 = vmatprep.subr.mxu0 0.0
    %3897 = vmatpush1.msra.mxu0 0.0
    %3898 = vmatprep.subr.mxu0 0.0
    %3899 = vmatpush1.msra.mxu0 0.0
    %3900 = vmatprep.subr.mxu0 0.0
    %3901 = vmatpush1.msra.mxu0 0.0
    %3902 = vmatprep.subr.mxu0 0.0
    %3903 = vmatpush1.msra.mxu0 0.0
    %3904 = vmatprep.subr.mxu0 0.0
    %3905 = vmatpush1.msra.mxu0 0.0
    %3906 = vmatprep.subr.mxu0 0.0
    %3907 = vmatpush1.msra.mxu0 0.0
    %3908 = vmatprep.subr.mxu0 0.0
    %3909 = vmatpush1.msra.mxu0 0.0
    %3910 = vmatprep.subr.mxu0 0.0
    %3911 = vmatpush1.msra.mxu0 0.0
    %3912 = vmatprep.subr.mxu0 0.0
    %3913 = vmatpush1.msra.mxu0 0.0
    %3914 = vmatprep.subr.mxu0 0.0
    %3915 = vmatpush1.msra.mxu0 0.0
    %3916 = vmatprep.subr.mxu0 0.0
    %3917 = vmatpush1.msra.mxu0 0.0
    %3918 = vmatprep.subr.mxu0 0.0
    %3919 = vmatpush1.msra.mxu0 %v3865
    %3920 = vmatprep.subr.mxu0 0.0
    %3921 = vmatpush1.msra.mxu0 %v3864
    %3922 = vmatprep.subr.mxu0 0.0
    %3923 = vmatpush1.msra.mxu0 %v3863
    %3924 = vmatprep.subr.mxu0 0.0
    %3925 = vmatpush1.msra.mxu0 %v3862
    %3926 = vmatprep.subr.mxu0 0.0
    %3927 = vmatpush2.msra.mxu0 0.0
    %3928 = vmatprep.subr.mxu0 0.0
    %3929 = vmatpush2.msra.mxu0 0.0
    %3930 = vmatprep.subr.mxu0 0.0
    %3931 = vmatpush2.msra.mxu0 0.0
    %3932 = vmatprep.subr.mxu0 0.0
    %3933 = vmatpush2.msra.mxu0 0.0
    %3934 = vmatprep.subr.mxu0 0.0
    %3935 = vmatpush2.msra.mxu0 0.0
    %3936 = vmatprep.subr.mxu0 0.0
    %3937 = vmatpush2.msra.mxu0 0.0
    %3938 = vmatprep.subr.mxu0 0.0
    %3939 = vmatpush2.msra.mxu0 0.0
    %3940 = vmatprep.subr.mxu0 0.0
    %3941 = vmatpush2.msra.mxu0 0.0
    %3942 = vmatprep.subr.mxu0 0.0
    %3943 = vmatpush2.msra.mxu0 0.0
    %3944 = vmatprep.subr.mxu0 0.0
    %3945 = vmatpush2.msra.mxu0 0.0
    %3946 = vmatprep.subr.mxu0 0.0
    %3947 = vmatpush2.msra.mxu0 0.0
    %3948 = vmatprep.subr.mxu0 0.0
    %3949 = vmatpush2.msra.mxu0 0.0
    %3950 = vmatprep.subr.mxu0 0.0
    %3951 = vmatpush2.msra.mxu0 0.0
    %3952 = vmatprep.subr.mxu0 0.0
    %3953 = vmatpush2.msra.mxu0 0.0
    %3954 = vmatprep.subr.mxu0 0.0
    %3955 = vmatpush2.msra.mxu0 0.0
    %3956 = vmatprep.subr.mxu0 0.0
    %3957 = vmatpush2.msra.mxu0 0.0
    %3958 = vmatprep.mubr.f32.mxu0 0.0
    %3959 = vmatmul.mubr.f32.gmra.mxu0 %v3889
    %v3960 = vpop.f32.mrf.mxu0
    %v3961 = vadd.f32 %v3887, %v3960
    %v3962 = vpop.f32.mrf.mxu0
    %3963 = vmatprep.mubr.f32.mxu0 0.0
    %3964 = vmatmul.mubr.f32.gmra.mxu0 %v3892
    %v3965 = vpop.f32.mrf.mxu0
    %v3966 = vadd.f32 %v3887, %v3965
    %v3967 = vpop.f32.mrf.mxu0
    %3968 = vdwg.mxu0
    %v3969 = vmul.f32 %v3961, %v3961
    %v3970 = vmul.f32 %v3966, %v3966
    %v3971 = vmul.f32 %v3961, %v3969
    %v3972 = vmul.f32 %v3966, %v3970
    %v3973 = vmul.f32 %v3971, 0.044715
    %v3974 = vmul.f32 %v3972, 0.044715
    %v3975 = vadd.f32 %v3961, %v3973
    %v3976 = vadd.f32 %v3966, %v3974
    %v3977 = vmul.f32 %v3975, 0.7978846
    %v3978 = vmul.f32 %v3976, 0.7978846
    %v3979 = vtanh.pop %v3977
    %v3980 = vtanh.pop %v3978
    %v3981 = vadd.f32 %v3979, 1.0
    %v3982 = vadd.f32 %v3980, 1.0
    %v3983 = vmul.f32 %v3981, 0.5
    %v3984 = vmul.f32 %v3982, 0.5
    %v3985 = vmul.f32 %v3961, %v3983
    %v3986 = vmul.f32 %v3966, %v3984
    %v3987 = vlaneseq
    %v3988 = vshrl.u32 %v3987, 7
    %v3989 = vsub.s32 0, %v3988
    %v3990 = vrot.slane %v3883, %v3989
    %3991 = vmatprep.subr.mxu0 0.0
    %3992 = vmatpush1.msra.mxu0 %v3882
    %3993 = vmatprep.subr.mxu0 0.0
    %3994 = vmatpush1.msra.mxu0 %v3881
    %3995 = vmatprep.subr.mxu0 0.0
    %3996 = vmatpush1.msra.mxu0 %v3880
    %3997 = vmatprep.subr.mxu0 0.0
    %3998 = vmatpush1.msra.mxu0 %v3879
    %3999 = vmatprep.subr.mxu0 0.0
    %4000 = vmatpush1.msra.mxu0 %v3878
    %4001 = vmatprep.subr.mxu0 0.0
    %4002 = vmatpush1.msra.mxu0 %v3877
    %4003 = vmatprep.subr.mxu0 0.0
    %4004 = vmatpush1.msra.mxu0 %v3876
    %4005 = vmatprep.subr.mxu0 0.0
    %4006 = vmatpush1.msra.mxu0 %v3875
    %4007 = vmatprep.subr.mxu0 0.0
    %4008 = vmatpush1.msra.mxu0 %v3874
    %4009 = vmatprep.subr.mxu0 0.0
    %4010 = vmatpush1.msra.mxu0 %v3873
    %4011 = vmatprep.subr.mxu0 0.0
    %4012 = vmatpush1.msra.mxu0 %v3872
    %4013 = vmatprep.subr.mxu0 0.0
    %4014 = vmatpush1.msra.mxu0 %v3871
    %4015 = vmatprep.subr.mxu0 0.0
    %4016 = vmatpush1.msra.mxu0 %v3870
    %4017 = vmatprep.subr.mxu0 0.0
    %4018 = vmatpush1.msra.mxu0 %v3869
    %4019 = vmatprep.subr.mxu0 0.0
    %4020 = vmatpush1.msra.mxu0 %v3868
    %4021 = vmatprep.subr.mxu0 0.0
    %4022 = vmatpush1.msra.mxu0 %v3867
    %4023 = vmatprep.subr.mxu0 0.0
    %4024 = vmatpush2.msra.mxu0 0.0
    %4025 = vmatprep.subr.mxu0 0.0
    %4026 = vmatpush2.msra.mxu0 0.0
    %4027 = vmatprep.subr.mxu0 0.0
    %4028 = vmatpush2.msra.mxu0 0.0
    %4029 = vmatprep.subr.mxu0 0.0
    %4030 = vmatpush2.msra.mxu0 0.0
    %4031 = vmatprep.subr.mxu0 0.0
    %4032 = vmatpush2.msra.mxu0 0.0
    %4033 = vmatprep.subr.mxu0 0.0
    %4034 = vmatpush2.msra.mxu0 0.0
    %4035 = vmatprep.subr.mxu0 0.0
    %4036 = vmatpush2.msra.mxu0 0.0
    %4037 = vmatprep.subr.mxu0 0.0
    %4038 = vmatpush2.msra.mxu0 0.0
    %4039 = vmatprep.subr.mxu0 0.0
    %4040 = vmatpush2.msra.mxu0 0.0
    %4041 = vmatprep.subr.mxu0 0.0
    %4042 = vmatpush2.msra.mxu0 0.0
    %4043 = vmatprep.subr.mxu0 0.0
    %4044 = vmatpush2.msra.mxu0 0.0
    %4045 = vmatprep.subr.mxu0 0.0
    %4046 = vmatpush2.msra.mxu0 0.0
    %4047 = vmatprep.subr.mxu0 0.0
    %4048 = vmatpush2.msra.mxu0 0.0
    %4049 = vmatprep.subr.mxu0 0.0
    %4050 = vmatpush2.msra.mxu0 0.0
    %4051 = vmatprep.subr.mxu0 0.0
    %4052 = vmatpush2.msra.mxu0 0.0
    %4053 = vmatprep.subr.mxu0 0.0
    %4054 = vmatpush2.msra.mxu0 0.0
    %4055 = vmatprep.mubr.f32.mxu0 0.0
    %4056 = vmatmul.mubr.f32.gmra.mxu0 %v3985
    %v4057 = vpop.f32.mrf.mxu0
    %v4058 = vadd.f32 %v3990, %v4057
    %v4059 = vpop.f32.mrf.mxu0
    %4060 = vmatprep.mubr.f32.mxu0 0.0
    %4061 = vmatmul.mubr.f32.gmra.mxu0 %v3986
    %v4062 = vpop.f32.mrf.mxu0
    %v4063 = vadd.f32 %v3990, %v4062
    %v4064 = vpop.f32.mrf.mxu0
    %4065 = vdwg.mxu0
    %v4066 = vld [vmem:[#allocation2 + $0x400] sm:$0xff]
    %v4067 = vld [vmem:[#allocation2 + $0x408] sm:$0xff]
    %v4068 = vld [vmem:[#allocation2 + $0x410] sm:$0xff]
    %v4069 = vld [vmem:[#allocation2 + $0x418] sm:$0xff]
    %v4070 = vld [vmem:[#allocation2 + $0x420] sm:$0x1]
    %v4071 = vlaneseq
    %v4072 = vshrl.u32 %v4071, 7
    %v4073 = vsub.s32 0, %v4072
    %v4074 = vrot.slane %v4070, %v4073
    %v4076 = vsel %vm255, %v4058, 0
    %v4079 = vsel %vm255, %v4063, 0
    %4081 = vmatprep.subr.mxu0 0.0
    %4082 = vmatpush1.msra.mxu0 0.0
    %4083 = vmatprep.subr.mxu0 0.0
    %4084 = vmatpush1.msra.mxu0 0.0
    %4085 = vmatprep.subr.mxu0 0.0
    %4086 = vmatpush1.msra.mxu0 0.0
    %4087 = vmatprep.subr.mxu0 0.0
    %4088 = vmatpush1.msra.mxu0 0.0
    %4089 = vmatprep.subr.mxu0 0.0
    %4090 = vmatpush1.msra.mxu0 0.0
    %4091 = vmatprep.subr.mxu0 0.0
    %4092 = vmatpush1.msra.mxu0 0.0
    %4093 = vmatprep.subr.mxu0 0.0
    %4094 = vmatpush1.msra.mxu0 0.0
    %4095 = vmatprep.subr.mxu0 0.0
    %4096 = vmatpush1.msra.mxu0 0.0
    %4097 = vmatprep.subr.mxu0 0.0
    %4098 = vmatpush1.msra.mxu0 0.0
    %4099 = vmatprep.subr.mxu0 0.0
    %4100 = vmatpush1.msra.mxu0 0.0
    %4101 = vmatprep.subr.mxu0 0.0
    %4102 = vmatpush1.msra.mxu0 0.0
    %4103 = vmatprep.subr.mxu0 0.0
    %4104 = vmatpush1.msra.mxu0 0.0
    %4105 = vmatprep.subr.mxu0 0.0
    %4106 = vmatpush1.msra.mxu0 %v4069
    %4107 = vmatprep.subr.mxu0 0.0
    %4108 = vmatpush1.msra.mxu0 %v4068
    %4109 = vmatprep.subr.mxu0 0.0
    %4110 = vmatpush1.msra.mxu0 %v4067
    %4111 = vmatprep.subr.mxu0 0.0
    %4112 = vmatpush1.msra.mxu0 %v4066
    %4113 = vmatprep.subr.mxu0 0.0
    %4114 = vmatpush2.msra.mxu0 0.0
    %4115 = vmatprep.subr.mxu0 0.0
    %4116 = vmatpush2.msra.mxu0 0.0
    %4117 = vmatprep.subr.mxu0 0.0
    %4118 = vmatpush2.msra.mxu0 0.0
    %4119 = vmatprep.subr.mxu0 0.0
    %4120 = vmatpush2.msra.mxu0 0.0
    %4121 = vmatprep.subr.mxu0 0.0
    %4122 = vmatpush2.msra.mxu0 0.0
    %4123 = vmatprep.subr.mxu0 0.0
    %4124 = vmatpush2.msra.mxu0 0.0
    %4125 = vmatprep.subr.mxu0 0.0
    %4126 = vmatpush2.msra.mxu0 0.0
    %4127 = vmatprep.subr.mxu0 0.0
    %4128 = vmatpush2.msra.mxu0 0.0
    %4129 = vmatprep.subr.mxu0 0.0
    %4130 = vmatpush2.msra.mxu0 0.0
    %4131 = vmatprep.subr.mxu0 0.0
    %4132 = vmatpush2.msra.mxu0 0.0
    %4133 = vmatprep.subr.mxu0 0.0
    %4134 = vmatpush2.msra.mxu0 0.0
    %4135 = vmatprep.subr.mxu0 0.0
    %4136 = vmatpush2.msra.mxu0 0.0
    %4137 = vmatprep.subr.mxu0 0.0
    %4138 = vmatpush2.msra.mxu0 0.0
    %4139 = vmatprep.subr.mxu0 0.0
    %4140 = vmatpush2.msra.mxu0 0.0
    %4141 = vmatprep.subr.mxu0 0.0
    %4142 = vmatpush2.msra.mxu0 0.0
    %4143 = vmatprep.subr.mxu0 0.0
    %4144 = vmatpush2.msra.mxu0 0.0
    %4145 = vmatprep.mubr.f32.mxu0 0.0
    %4146 = vmatmul.mubr.f32.gmra.mxu0 %v4076
    %v4147 = vpop.f32.mrf.mxu0
    %v4148 = vadd.f32 %v4074, %v4147
    %v4149 = vpop.f32.mrf.mxu0
    %4150 = vmatprep.mubr.f32.mxu0 0.0
    %4151 = vmatmul.mubr.f32.gmra.mxu0 %v4079
    %v4152 = vpop.f32.mrf.mxu0
    %v4153 = vadd.f32 %v4074, %v4152
    %v4154 = vpop.f32.mrf.mxu0
    %4155 = vdwg.mxu0
    %4156 = vst.msk [vmem:[#allocation5] sm:$0xff] %vm79, %v4148
    %4157 = vst.msk [vmem:[#allocation5 + $0x8] sm:$0xff] %vm79, %v4153
    // Predicated region
    $region18: #{forward.1} parent=1 // pred_check
      _
    $region19: #{forward.1} parent=1 // pred_check_branch
      %4159 = sbr.rel (0) target = $region21
    $region20: #{forward.1} parent=1 // pred_region
      %s4161 = ssub.s32 256, 256
      %4162 = vsyncadd [#allocation4], %s4161
      %s4163 = sshll.u32 [#allocation5], 4
      %s4164 = int_to_ptr.vmem [resolvable:$true] %s4163
      %4169 = dma.vmem_to_hbm [thread:$0]  %s4164, 256, %s3, [#allocation4], 128, 128, 8
    $region21: #{forward.1} parent=1 // pred_fallthru
      _
    // Predicated region
    $region22: #{forward.1} parent=1 // pred_check
      _
    $region23: #{forward.1} parent=1 // pred_check_branch
      %4171 = sbr.rel (0) target = $region25
    $region24: #{forward.1} parent=1 // pred_region
      %4172 = dma.done [#allocation4], 256
    $region25: #{forward.1} parent=1 // pred_fallthru
      _
    %4173 = vsyncpa [#allocation3], 1
    %4174 = vsyncpa [#allocation4], 1

</llo_original>
